<compile_context>
chip_gen: v6e
topology: v6e:2x2x1
jax: 0.10.0
libtpu: 0.0.40
codegen_flags: <defaults>
</compile_context>

<pallas_src>
import functools

import jax
import jax.numpy as jnp
from jax.experimental import pallas as pl
from jax.experimental.pallas import tpu as pltpu

NEG_SLOPE = 0.2
BN_EPS = 1e-5


# ---------------------------------------------------------------------------
# helpers
# ---------------------------------------------------------------------------
def _round_up(x, m):
    return ((x + m - 1) // m) * m


def _vmem_limit_bytes():
    # 75% of physical VMEM, capped at 96 MiB (v5e/v6e: 96 MiB, v7x: ~48 MiB).
    try:
        cap = pltpu.get_tpu_info().vmem_capacity_bytes
    except Exception:
        cap = 64 * 1024 * 1024
    return int(min(96 * 1024 * 1024, cap * 3 // 4))


_VMEM_LIMIT = _vmem_limit_bytes()


def _pick_bm(m):
    # Large row tiles amortize per-grid-step overhead on mem-bound layers.
    return min(1024, _round_up(m, 8))


def _choose_k_tiling(k):
    """Return (kp, tk): (possibly padded) K and the per-step K chunk."""
    if k <= 2048:
        return k, k
    for tk in (2048, 1024, 512, 256, 128):
        if k % tk == 0:
            return k, tk
    kp = _round_up(k, 256)
    for tk in (2048, 1024, 512, 256):
        if kp % tk == 0:
            return kp, tk
    return kp, 256  # unreachable


# ---------------------------------------------------------------------------
# Pallas kernel: fused conv-as-GEMM
#   * optional fused input normalization (previous layer's BN scale/shift +
#     LeakyReLU applied per K-element to the bf16 A tile)
#   * resident weights (full K x Cout block, sliced per K step with pl.ds)
#   * optional bias / output LeakyReLU epilogue
#   * optional BN sufficient statistics (per-tile partial sum / sum-of-squares
#     computed from the f32 accumulator, padded rows masked out)
# ---------------------------------------------------------------------------
def _conv_gemm_kernel(*refs, nk, tk, bm, m_total, cout_p,
                      has_norm, has_bias, out_act, want_stats):
    it = iter(refs)
    a_ref = next(it)
    w_ref = next(it)
    scale_ref = next(it) if has_norm else None
    shift_ref = next(it) if has_norm else None
    bias_ref = next(it) if has_bias else None
    o_ref = next(it)
    sum_ref = next(it) if want_stats else None
    ssq_ref = next(it) if want_stats else None
    acc_ref = next(it) if nk > 1 else None

    k = pl.program_id(1)

    a = a_ref[...]
    if has_norm:
        # previous layer's BatchNorm + LeakyReLU, fused on the bf16 A tile
        a = a * scale_ref[...].astype(a.dtype) + shift_ref[...].astype(a.dtype)
        a = jnp.maximum(a, a * NEG_SLOPE)

    if nk == 1:
        wv = w_ref[...]
    else:
        koff = pl.multiple_of(k * tk, tk)
        wv = w_ref[pl.ds(koff, tk), :]

    part = jnp.dot(a, wv, preferred_element_type=jnp.float32)

    def epilogue(y):  # y: (bm, cout_p) f32
        if want_stats:
            # mask rows beyond the true M (padding rows can be non-zero when
            # the fused input-norm shift is non-zero)
            row = (jax.lax.broadcasted_iota(jnp.int32, (bm, 1), 0)
                   + pl.program_id(0) * bm)
            valid = (row < m_total).astype(jnp.float32)
            ym = y * valid
            g = ym.reshape(8, bm // 8, cout_p)
            sum_ref[...] = jnp.sum(g, axis=1)
            ssq_ref[...] = jnp.sum(g * g, axis=1)
        z = y
        if has_bias:
            z = z + bias_ref[...]
        if out_act:
            z = jnp.maximum(z, z * NEG_SLOPE)
        o_ref[...] = z.astype(o_ref.dtype)

    if nk == 1:
        # single K step: no scratch, no zero-init, write straight through
        epilogue(part)
    else:
        @pl.when(k == 0)
        def _():
            acc_ref[...] = part

        @pl.when(k > 0)
        def _():
            acc_ref[...] += part

        @pl.when(k == nk - 1)
        def _():
            epilogue(acc_ref[...])


def conv_gemm(a, w, *, in_scale=None, in_shift=None, bias=None,
              out_act=False, want_stats=False, lane_pad=False,
              out_dtype=jnp.bfloat16):
    """a: (M, K) patches, w: (K, Cout).

    Returns (out[(M, Cout)], stats) where stats is (sum_c, sumsq_c) per output
    channel (f32, from the f32 accumulator) when want_stats else None.
    """
    m, kdim = a.shape
    cout = w.shape[1]
    cout_p = _round_up(cout, 128) if lane_pad else cout

    kp, tk = _choose_k_tiling(kdim)
    bm = _pick_bm(m)
    mp = _round_up(m, bm)
    nm, nk = mp // bm, kp // tk

    if (mp, kp) != (m, kdim):
        a = jnp.pad(a, ((0, mp - m), (0, kp - kdim)))
    a = a.astype(jnp.bfloat16)
    if (kp, cout_p) != (kdim, cout):
        w = jnp.pad(w, ((0, kp - kdim), (0, cout_p - cout)))
    w = w.astype(jnp.bfloat16)

    has_norm = in_scale is not None
    has_bias = bias is not None

    in_specs = [
        pl.BlockSpec((bm, tk), lambda i, k: (i, k)),
        # resident weights: one full block, constant index -> DMA'd once
        pl.BlockSpec((kp, cout_p), lambda i, k: (0, 0)),
    ]
    args = [a, w]
    if has_norm:
        sc = in_scale if kp == kdim else jnp.pad(in_scale, (0, kp - kdim))
        sh = in_shift if kp == kdim else jnp.pad(in_shift, (0, kp - kdim))
        in_specs += [pl.BlockSpec((1, tk), lambda i, k: (0, k)),
                     pl.BlockSpec((1, tk), lambda i, k: (0, k))]
        args += [sc.reshape(1, kp).astype(jnp.float32),
                 sh.reshape(1, kp).astype(jnp.float32)]
    if has_bias:
        b = bias if cout_p == cout else jnp.pad(bias, (0, cout_p - cout))
        in_specs.append(pl.BlockSpec((1, cout_p), lambda i, k: (0, 0)))
        args.append(b.reshape(1, cout_p).astype(jnp.float32))

    if want_stats:
        out_shape = (jax.ShapeDtypeStruct((mp, cout_p), out_dtype),
                     jax.ShapeDtypeStruct((nm * 8, cout_p), jnp.float32),
                     jax.ShapeDtypeStruct((nm * 8, cout_p), jnp.float32))
        out_specs = [pl.BlockSpec((bm, cout_p), lambda i, k: (i, 0)),
                     pl.BlockSpec((8, cout_p), lambda i, k: (i, 0)),
                     pl.BlockSpec((8, cout_p), lambda i, k: (i, 0))]
    else:
        out_shape = jax.ShapeDtypeStruct((mp, cout_p), out_dtype)
        out_specs = pl.BlockSpec((bm, cout_p), lambda i, k: (i, 0))

    scratch = [] if nk == 1 else [pltpu.VMEM((bm, cout_p), jnp.float32)]

    res = pl.pallas_call(
        functools.partial(_conv_gemm_kernel, nk=nk, tk=tk, bm=bm,
                          m_total=m, cout_p=cout_p,
                          has_norm=has_norm, has_bias=has_bias,
                          out_act=out_act, want_stats=want_stats),
        out_shape=out_shape,
        grid=(nm, nk),
        in_specs=in_specs,
        out_specs=out_specs,
        scratch_shapes=scratch,
        compiler_params=pltpu.CompilerParams(
            dimension_semantics=("parallel", "arbitrary"),
            vmem_limit_bytes=_VMEM_LIMIT,
        ),
    )(*args)

    if want_stats:
        out, s, q = res
        sum_c = jnp.sum(s, axis=0)[:cout]
        ssq_c = jnp.sum(q, axis=0)[:cout]
        return out[:m, :cout], (sum_c, ssq_c)
    return res[:m, :cout], None


# ---------------------------------------------------------------------------
# JAX glue: reflect padding, im2col, layer driver
# ---------------------------------------------------------------------------
def _reflect_pad(x):  # NHWC, pad=1 on H and W (PyTorch padding_mode='reflect')
    return jnp.pad(x, ((0, 0), (1, 1), (1, 1), (0, 0)), mode="reflect")


def _im2col(xp, k, stride):
    # xp: padded NHWC -> patches (N*OH*OW, k*k*C); kh slowest, kw, C fastest.
    n, hp, wp, c = xp.shape
    oh = (hp - k) // stride + 1
    ow = (wp - k) // stride + 1
    cols = []
    for kh in range(k):
        for kw in range(k):
            cols.append(
                xp[:, kh:kh + stride * (oh - 1) + 1:stride,
                   kw:kw + stride * (ow - 1) + 1:stride, :]
            )
    patches = jnp.stack(cols, axis=3)            # (N, OH, OW, k*k, C)
    return patches.reshape(n * oh * ow, k * k * c), oh, ow


def conv_layer(x, w4, *, bias, stride, in_norm, out_act, want_stats=False,
               lane_pad=False, out_dtype=jnp.bfloat16):
    """x: NHWC (bf16); w4: (KH, KW, Cin, Cout).

    in_norm: None or (scale_c, shift_c) — the *previous* layer's fused
    BatchNorm+LeakyReLU, applied per input channel inside the GEMM kernel
    (per-channel affine + LReLU commute with reflect padding / im2col).
    """
    n = x.shape[0]
    k, _, cin, cout = w4.shape
    xp = _reflect_pad(x)
    patches, oh, ow = _im2col(xp, k, stride)
    w2 = w4.reshape(k * k * cin, cout)

    if in_norm is not None:
        scale_c, shift_c = in_norm
        in_scale = jnp.tile(scale_c, k * k)      # matches (kh,kw major, C minor)
        in_shift = jnp.tile(shift_c, k * k)
    else:
        in_scale = in_shift = None

    out2, stats = conv_gemm(patches, w2, in_scale=in_scale, in_shift=in_shift,
                            bias=bias, out_act=out_act, want_stats=want_stats,
                            lane_pad=lane_pad, out_dtype=out_dtype)
    out = out2.reshape(n, oh, ow, cout)
    if want_stats:
        return out, (stats[0], stats[1], n * oh * ow)
    return out, None


# ---------------------------------------------------------------------------
# Parameter init + full forward
# ---------------------------------------------------------------------------
def init_params(key, in_channels, features):
    params = {}
    keys = jax.random.split(key, 2 + 2 * len(features))
    ki = iter(range(len(keys)))

    def conv_w(kk, cin, cout):
        return 0.05 * jax.random.normal(kk, (4, 4, cin, cout), jnp.float32)

    # initial block: 2*in_channels -> features[0], bias=True
    params["w0"] = conv_w(keys[next(ki)], 2 * in_channels, features[0])
    params["b0"] = 0.05 * jax.random.normal(keys[next(ki)], (features[0],), jnp.float32)

    cin = features[0]
    params["mid"] = []
    for f in features[1:]:
        w = conv_w(keys[next(ki)], cin, f)
        params["mid"].append({"w": w,
                              "gamma": jnp.ones((f,), jnp.float32),
                              "beta": jnp.zeros((f,), jnp.float32)})
        cin = f

    # final conv: cin -> 1, bias=True, no activation
    params["wf"] = conv_w(keys[next(ki)], cin, 1)
    params["bf"] = 0.05 * jax.random.normal(keys[next(ki)], (1,), jnp.float32)
    return params


def discriminator_forward(params, x, y, features):
    # x, y: NCHW (PyTorch convention)
    h = jnp.concatenate([x, y], axis=1)                        # cat on channels
    h = jnp.transpose(h, (0, 2, 3, 1)).astype(jnp.bfloat16)    # -> NHWC, bf16

    # initial: stride 2, bias, LeakyReLU fused in the GEMM epilogue
    h, _ = conv_layer(h, params["w0"], bias=params["b0"], stride=2,
                      in_norm=None, out_act=True, out_dtype=jnp.bfloat16)

    # middle blocks: reflect conv (bias=False); BatchNorm+LeakyReLU is
    # deferred and fused into the NEXT conv's GEMM kernel as input-norm.
    # Batch statistics come from the kernel's f32 epilogue (sum / sum^2).
    pending_norm = None
    for p, f in zip(params["mid"], features[1:]):
        stride = 1 if f == features[-1] else 2
        h, (sum_c, ssq_c, cnt) = conv_layer(
            h, p["w"], bias=None, stride=stride, in_norm=pending_norm,
            out_act=False, want_stats=True, out_dtype=jnp.bfloat16)
        mean = sum_c / cnt
        var = jnp.maximum(ssq_c / cnt - mean * mean, 0.0)      # biased var
        inv = jax.lax.rsqrt(var + BN_EPS)
        scale = p["gamma"] * inv
        shift = p["beta"] - mean * scale
        pending_norm = (scale, shift)

    # final: stride 1, bias, no activation; consumes last BN+LReLU fused.
    # Cout=1 is zero-padded to 128 lanes inside conv_gemm (lane-dense stores).
    out, _ = conv_layer(h, params["wf"], bias=params["bf"], stride=1,
                        in_norm=pending_norm, out_act=False, lane_pad=True,
                        out_dtype=jnp.float32)

    return jnp.transpose(out, (0, 3, 1, 2))                    # back to NCHW


if __name__ == "__main__":
    # Small shapes consistent with the module (scaled-down channels/features).
    in_channels = 4
    features = (8, 16, 32, 64)
    N, H, W = 2, 32, 32

    key = jax.random.PRNGKey(0)
    kx, ky, kp = jax.random.split(key, 3)
    x = jax.random.normal(kx, (N, in_channels, H, W), jnp.float32)
    y = jax.random.normal(ky, (N, in_channels, H, W), jnp.float32)

    params = init_params(kp, in_channels, features)

    fwd = jax.jit(functools.partial(discriminator_forward, features=features))
    out = fwd(params, x, y)
    jax.block_until_ready(out)

    # 32 -> 16 -> 8 -> 4 -> 3 -> 2 : PatchGAN logits of shape (N, 1, 2, 2)
    assert out.shape == (N, 1, 2, 2), out.shape
    assert jnp.all(jnp.isfinite(out))
    print("KERNEL_OK")
</pallas_src>

<mosaic_0001>
module attributes {stable_mosaic.version = 11 : i64} {
  func.func @_conv_gemm_kernel(%arg0: i32, %arg1: i32, %arg2: memref<512x128xbf16, #tpu.memory_space<vmem>>, %arg3: memref<128x8xbf16, #tpu.memory_space<vmem>>, %arg4: memref<1x8xf32, #tpu.memory_space<vmem>>, %arg5: memref<512x8xbf16, #tpu.memory_space<vmem>>) attributes {dimension_semantics = [#tpu.dimension_semantics<parallel>, #tpu.dimension_semantics<arbitrary>], iteration_bounds = array<i64: 1, 1>, scalar_prefetch = 0 : i64, scratch_operands = 0 : i64, tpu.core_type = #tpu.core_type<tc>, window_params = [{transform_indices = @transform_0, window_bounds = array<i64: 512, 128>}, {pipeline_mode = #tpu.pipeline_mode<synchronous>, transform_indices = @transform_1, window_bounds = array<i64: 128, 8>}, {pipeline_mode = #tpu.pipeline_mode<synchronous>, transform_indices = @transform_2, window_bounds = array<i64: 1, 8>}, {transform_indices = @transform_3, window_bounds = array<i64: 512, 8>}]} {
    %c0 = arith.constant 0 : index
    %c0_0 = arith.constant 0 : index
    %0 = vector.load %arg2[%c0, %c0_0] : memref<512x128xbf16, #tpu.memory_space<vmem>>, vector<512x128xbf16>
    %c0_1 = arith.constant 0 : index
    %c0_2 = arith.constant 0 : index
    %1 = vector.load %arg3[%c0_1, %c0_2] : memref<128x8xbf16, #tpu.memory_space<vmem>>, vector<128x8xbf16>
    %cst = arith.constant dense<0.000000e+00> : vector<512x8xf32>
    %2 = tpu.matmul %0, %1, %cst {dimension_numbers = #tpu.dot_dimension_numbers<[1], [0], [0], [1], [0, 0, 1, 1], [], []>} : vector<512x128xbf16>, vector<128x8xbf16>, vector<512x8xf32> -> vector<512x8xf32>
    %c0_3 = arith.constant 0 : index
    %c0_4 = arith.constant 0 : index
    %3 = vector.load %arg4[%c0_3, %c0_4] : memref<1x8xf32, #tpu.memory_space<vmem>>, vector<1x8xf32>
    %4 = vector.broadcast %3 : vector<1x8xf32> to vector<512x8xf32>
    %5 = arith.addf %2, %4 : vector<512x8xf32>
    %cst_5 = arith.constant 2.000000e-01 : f32
    %6 = vector.broadcast %cst_5 : f32 to vector<512x8xf32>
    %7 = arith.mulf %5, %6 : vector<512x8xf32>
    %8 = arith.maximumf %5, %7 : vector<512x8xf32>
    %9 = arith.truncf %8 : vector<512x8xf32> to vector<512x8xbf16>
    %c0_6 = arith.constant 0 : index
    %c0_7 = arith.constant 0 : index
    %10 = vector.load %arg5[%c0_6, %c0_7] : memref<512x8xbf16, #tpu.memory_space<vmem>>, vector<512x8xbf16>
    tpu.vector_store %arg5[%c0_6, %c0_7], %9 {strides = array<i32>} : memref<512x8xbf16, #tpu.memory_space<vmem>>, vector<512x8xbf16>,
    return
  }
  func.func @transform_0(%arg0: i32, %arg1: i32) -> (i32, i32) {
    %c0_i32 = arith.constant 0 : i32
    return %arg0, %arg1 : i32, i32
  }
  func.func @transform_1(%arg0: i32, %arg1: i32) -> (i32, i32) {
    %c0_i32 = arith.constant 0 : i32
    %c0_i32_0 = arith.constant 0 : i32
    %c0_i32_1 = arith.constant 0 : i32
    return %c0_i32, %c0_i32_0 : i32, i32
  }
  func.func @transform_2(%arg0: i32, %arg1: i32) -> (i32, i32) {
    %c0_i32 = arith.constant 0 : i32
    %c0_i32_0 = arith.constant 0 : i32
    %c0_i32_1 = arith.constant 0 : i32
    return %c0_i32, %c0_i32_0 : i32, i32
  }
  func.func @transform_3(%arg0: i32, %arg1: i32) -> (i32, i32) {
    %c0_i32 = arith.constant 0 : i32
    %c0_i32_0 = arith.constant 0 : i32
    return %arg0, %c0_i32 : i32, i32
  }
}

module attributes {stable_mosaic.version = 11 : i64} {
  func.func @_conv_gemm_kernel(%arg0: i32, %arg1: i32, %arg2: memref<128x128xbf16, #tpu.memory_space<vmem>>, %arg3: memref<128x16xbf16, #tpu.memory_space<vmem>>, %arg4: memref<128x16xbf16, #tpu.memory_space<vmem>>, %arg5: memref<8x16xf32, #tpu.memory_space<vmem>>, %arg6: memref<8x16xf32, #tpu.memory_space<vmem>>) attributes {dimension_semantics = [#tpu.dimension_semantics<parallel>, #tpu.dimension_semantics<arbitrary>], iteration_bounds = array<i64: 1, 1>, scalar_prefetch = 0 : i64, scratch_operands = 0 : i64, tpu.core_type = #tpu.core_type<tc>, window_params = [{transform_indices = @transform_0, window_bounds = array<i64: 128, 128>}, {pipeline_mode = #tpu.pipeline_mode<synchronous>, transform_indices = @transform_1, window_bounds = array<i64: 128, 16>}, {transform_indices = @transform_2, window_bounds = array<i64: 128, 16>}, {transform_indices = @transform_3, window_bounds = array<i64: 8, 16>}, {transform_indices = @transform_4, window_bounds = array<i64: 8, 16>}]} {
    %c0 = arith.constant 0 : index
    %c0_0 = arith.constant 0 : index
    %0 = vector.load %arg2[%c0, %c0_0] : memref<128x128xbf16, #tpu.memory_space<vmem>>, vector<128x128xbf16>
    %c0_1 = arith.constant 0 : index
    %c0_2 = arith.constant 0 : index
    %1 = vector.load %arg3[%c0_1, %c0_2] : memref<128x16xbf16, #tpu.memory_space<vmem>>, vector<128x16xbf16>
    %cst = arith.constant dense<0.000000e+00> : vector<128x16xf32>
    %2 = tpu.matmul %0, %1, %cst {dimension_numbers = #tpu.dot_dimension_numbers<[1], [0], [0], [1], [0, 0, 1, 1], [], []>} : vector<128x128xbf16>, vector<128x16xbf16>, vector<128x16xf32> -> vector<128x16xf32>
    %3 = tpu.iota {dimensions = array<i32: 0>} : vector<128x1xi32>
    %c128_i32 = arith.constant 128 : i32
    %4 = arith.muli %arg0, %c128_i32 : i32
    %5 = vector.broadcast %4 : i32 to vector<128x1xi32>
    %6 = arith.addi %3, %5 : vector<128x1xi32>
    %c128_i32_3 = arith.constant 128 : i32
    %7 = vector.broadcast %c128_i32_3 : i32 to vector<128x1xi32>
    %8 = arith.cmpi slt, %6, %7 : vector<128x1xi32>
    %9 = arith.extui %8 : vector<128x1xi1> to vector<128x1xi32>
    %10 = arith.sitofp %9 : vector<128x1xi32> to vector<128x1xf32>
    %11 = vector.broadcast %10 : vector<128x1xf32> to vector<128x16xf32>
    %12 = arith.mulf %2, %11 : vector<128x16xf32>
    %13 = vector.shape_cast %12 : vector<128x16xf32> to vector<8x16x16xf32>
    %cst_4 = arith.constant dense<0.000000e+00> : vector<8x16xf32>
    %14 = vector.multi_reduction <add>, %13, %cst_4 [1] : vector<8x16x16xf32> to vector<8x16xf32>
    %c0_5 = arith.constant 0 : index
    %c0_6 = arith.constant 0 : index
    %15 = vector.load %arg5[%c0_5, %c0_6] : memref<8x16xf32, #tpu.memory_space<vmem>>, vector<8x16xf32>
    tpu.vector_store %arg5[%c0_5, %c0_6], %14 {strides = array<i32>} : memref<8x16xf32, #tpu.memory_space<vmem>>, vector<8x16xf32>,
    %16 = arith.mulf %13, %13 : vector<8x16x16xf32>
    %cst_7 = arith.constant dense<0.000000e+00> : vector<8x16xf32>
    %17 = vector.multi_reduction <add>, %16, %cst_7 [1] : vector<8x16x16xf32> to vector<8x16xf32>
    %c0_8 = arith.constant 0 : index
    %c0_9 = arith.constant 0 : index
    %18 = vector.load %arg6[%c0_8, %c0_9] : memref<8x16xf32, #tpu.memory_space<vmem>>, vector<8x16xf32>
    tpu.vector_store %arg6[%c0_8, %c0_9], %17 {strides = array<i32>} : memref<8x16xf32, #tpu.memory_space<vmem>>, vector<8x16xf32>,
    %19 = arith.truncf %2 : vector<128x16xf32> to vector<128x16xbf16>
    %c0_10 = arith.constant 0 : index
    %c0_11 = arith.constant 0 : index
    %20 = vector.load %arg4[%c0_10, %c0_11] : memref<128x16xbf16, #tpu.memory_space<vmem>>, vector<128x16xbf16>
    tpu.vector_store %arg4[%c0_10, %c0_11], %19 {strides = array<i32>} : memref<128x16xbf16, #tpu.memory_space<vmem>>, vector<128x16xbf16>,
    return
  }
  func.func @transform_0(%arg0: i32, %arg1: i32) -> (i32, i32) {
    %c0_i32 = arith.constant 0 : i32
    return %arg0, %arg1 : i32, i32
  }
  func.func @transform_1(%arg0: i32, %arg1: i32) -> (i32, i32) {
    %c0_i32 = arith.constant 0 : i32
    %c0_i32_0 = arith.constant 0 : i32
    %c0_i32_1 = arith.constant 0 : i32
    return %c0_i32, %c0_i32_0 : i32, i32
  }
  func.func @transform_2(%arg0: i32, %arg1: i32) -> (i32, i32) {
    %c0_i32 = arith.constant 0 : i32
    %c0_i32_0 = arith.constant 0 : i32
    return %arg0, %c0_i32 : i32, i32
  }
  func.func @transform_3(%arg0: i32, %arg1: i32) -> (i32, i32) {
    %c0_i32 = arith.constant 0 : i32
    %c0_i32_0 = arith.constant 0 : i32
    return %arg0, %c0_i32 : i32, i32
  }
  func.func @transform_4(%arg0: i32, %arg1: i32) -> (i32, i32) {
    %c0_i32 = arith.constant 0 : i32
    %c0_i32_0 = arith.constant 0 : i32
    return %arg0, %c0_i32 : i32, i32
  }
}

module attributes {stable_mosaic.version = 11 : i64} {
  func.func @_conv_gemm_kernel(%arg0: i32, %arg1: i32, %arg2: memref<32x256xbf16, #tpu.memory_space<vmem>>, %arg3: memref<256x32xbf16, #tpu.memory_space<vmem>>, %arg4: memref<1x256xf32, #tpu.memory_space<vmem>>, %arg5: memref<1x256xf32, #tpu.memory_space<vmem>>, %arg6: memref<32x32xbf16, #tpu.memory_space<vmem>>, %arg7: memref<8x32xf32, #tpu.memory_space<vmem>>, %arg8: memref<8x32xf32, #tpu.memory_space<vmem>>) attributes {dimension_semantics = [#tpu.dimension_semantics<parallel>, #tpu.dimension_semantics<arbitrary>], iteration_bounds = array<i64: 1, 1>, scalar_prefetch = 0 : i64, scratch_operands = 0 : i64, tpu.core_type = #tpu.core_type<tc>, window_params = [{transform_indices = @transform_0, window_bounds = array<i64: 32, 256>}, {pipeline_mode = #tpu.pipeline_mode<synchronous>, transform_indices = @transform_1, window_bounds = array<i64: 256, 32>}, {transform_indices = @transform_2, window_bounds = array<i64: 1, 256>}, {transform_indices = @transform_3, window_bounds = array<i64: 1, 256>}, {transform_indices = @transform_4, window_bounds = array<i64: 32, 32>}, {transform_indices = @transform_5, window_bounds = array<i64: 8, 32>}, {transform_indices = @transform_6, window_bounds = array<i64: 8, 32>}]} {
    %c0 = arith.constant 0 : index
    %c0_0 = arith.constant 0 : index
    %0 = vector.load %arg2[%c0, %c0_0] : memref<32x256xbf16, #tpu.memory_space<vmem>>, vector<32x256xbf16>
    %c0_1 = arith.constant 0 : index
    %c0_2 = arith.constant 0 : index
    %1 = vector.load %arg4[%c0_1, %c0_2] : memref<1x256xf32, #tpu.memory_space<vmem>>, vector<1x256xf32>
    %2 = arith.truncf %1 : vector<1x256xf32> to vector<1x256xbf16>
    %3 = vector.broadcast %2 : vector<1x256xbf16> to vector<32x256xbf16>
    %4 = arith.mulf %0, %3 : vector<32x256xbf16>
    %c0_3 = arith.constant 0 : index
    %c0_4 = arith.constant 0 : index
    %5 = vector.load %arg5[%c0_3, %c0_4] : memref<1x256xf32, #tpu.memory_space<vmem>>, vector<1x256xf32>
    %6 = arith.truncf %5 : vector<1x256xf32> to vector<1x256xbf16>
    %7 = vector.broadcast %6 : vector<1x256xbf16> to vector<32x256xbf16>
    %8 = arith.addf %4, %7 : vector<32x256xbf16>
    %cst = arith.constant 2.001950e-01 : bf16
    %9 = vector.broadcast %cst : bf16 to vector<32x256xbf16>
    %10 = arith.mulf %8, %9 : vector<32x256xbf16>
    %11 = arith.maximumf %8, %10 : vector<32x256xbf16>
    %c0_5 = arith.constant 0 : index
    %c0_6 = arith.constant 0 : index
    %12 = vector.load %arg3[%c0_5, %c0_6] : memref<256x32xbf16, #tpu.memory_space<vmem>>, vector<256x32xbf16>
    %cst_7 = arith.constant dense<0.000000e+00> : vector<32x32xf32>
    %13 = tpu.matmul %11, %12, %cst_7 {dimension_numbers = #tpu.dot_dimension_numbers<[1], [0], [0], [1], [0, 0, 1, 1], [], []>} : vector<32x256xbf16>, vector<256x32xbf16>, vector<32x32xf32> -> vector<32x32xf32>
    %14 = tpu.iota {dimensions = array<i32: 0>} : vector<32x1xi32>
    %c32_i32 = arith.constant 32 : i32
    %15 = arith.muli %arg0, %c32_i32 : i32
    %16 = vector.broadcast %15 : i32 to vector<32x1xi32>
    %17 = arith.addi %14, %16 : vector<32x1xi32>
    %c32_i32_8 = arith.constant 32 : i32
    %18 = vector.broadcast %c32_i32_8 : i32 to vector<32x1xi32>
    %19 = arith.cmpi slt, %17, %18 : vector<32x1xi32>
    %20 = arith.extui %19 : vector<32x1xi1> to vector<32x1xi32>
    %21 = arith.sitofp %20 : vector<32x1xi32> to vector<32x1xf32>
    %22 = vector.broadcast %21 : vector<32x1xf32> to vector<32x32xf32>
    %23 = arith.mulf %13, %22 : vector<32x32xf32>
    %24 = vector.shape_cast %23 : vector<32x32xf32> to vector<8x4x32xf32>
    %cst_9 = arith.constant dense<0.000000e+00> : vector<8x32xf32>
    %25 = vector.multi_reduction <add>, %24, %cst_9 [1] : vector<8x4x32xf32> to vector<8x32xf32>
    %c0_10 = arith.constant 0 : index
    %c0_11 = arith.constant 0 : index
    %26 = vector.load %arg7[%c0_10, %c0_11] : memref<8x32xf32, #tpu.memory_space<vmem>>, vector<8x32xf32>
    tpu.vector_store %arg7[%c0_10, %c0_11], %25 {strides = array<i32>} : memref<8x32xf32, #tpu.memory_space<vmem>>, vector<8x32xf32>,
    %27 = arith.mulf %24, %24 : vector<8x4x32xf32>
    %cst_12 = arith.constant dense<0.000000e+00> : vector<8x32xf32>
    %28 = vector.multi_reduction <add>, %27, %cst_12 [1] : vector<8x4x32xf32> to vector<8x32xf32>
    %c0_13 = arith.constant 0 : index
    %c0_14 = arith.constant 0 : index
    %29 = vector.load %arg8[%c0_13, %c0_14] : memref<8x32xf32, #tpu.memory_space<vmem>>, vector<8x32xf32>
    tpu.vector_store %arg8[%c0_13, %c0_14], %28 {strides = array<i32>} : memref<8x32xf32, #tpu.memory_space<vmem>>, vector<8x32xf32>,
    %30 = arith.truncf %13 : vector<32x32xf32> to vector<32x32xbf16>
    %c0_15 = arith.constant 0 : index
    %c0_16 = arith.constant 0 : index
    %31 = vector.load %arg6[%c0_15, %c0_16] : memref<32x32xbf16, #tpu.memory_space<vmem>>, vector<32x32xbf16>
    tpu.vector_store %arg6[%c0_15, %c0_16], %30 {strides = array<i32>} : memref<32x32xbf16, #tpu.memory_space<vmem>>, vector<32x32xbf16>,
    return
  }
  func.func @transform_0(%arg0: i32, %arg1: i32) -> (i32, i32) {
    %c0_i32 = arith.constant 0 : i32
    return %arg0, %arg1 : i32, i32
  }
  func.func @transform_1(%arg0: i32, %arg1: i32) -> (i32, i32) {
    %c0_i32 = arith.constant 0 : i32
    %c0_i32_0 = arith.constant 0 : i32
    %c0_i32_1 = arith.constant 0 : i32
    return %c0_i32, %c0_i32_0 : i32, i32
  }
  func.func @transform_2(%arg0: i32, %arg1: i32) -> (i32, i32) {
    %c0_i32 = arith.constant 0 : i32
    %c0_i32_0 = arith.constant 0 : i32
    return %c0_i32, %arg1 : i32, i32
  }
  func.func @transform_3(%arg0: i32, %arg1: i32) -> (i32, i32) {
    %c0_i32 = arith.constant 0 : i32
    %c0_i32_0 = arith.constant 0 : i32
    return %c0_i32, %arg1 : i32, i32
  }
  func.func @transform_4(%arg0: i32, %arg1: i32) -> (i32, i32) {
    %c0_i32 = arith.constant 0 : i32
    %c0_i32_0 = arith.constant 0 : i32
    return %arg0, %c0_i32 : i32, i32
  }
  func.func @transform_5(%arg0: i32, %arg1: i32) -> (i32, i32) {
    %c0_i32 = arith.constant 0 : i32
    %c0_i32_0 = arith.constant 0 : i32
    return %arg0, %c0_i32 : i32, i32
  }
  func.func @transform_6(%arg0: i32, %arg1: i32) -> (i32, i32) {
    %c0_i32 = arith.constant 0 : i32
    %c0_i32_0 = arith.constant 0 : i32
    return %arg0, %c0_i32 : i32, i32
  }
}

module attributes {stable_mosaic.version = 11 : i64} {
  func.func @_conv_gemm_kernel(%arg0: i32, %arg1: i32, %arg2: memref<24x512xbf16, #tpu.memory_space<vmem>>, %arg3: memref<512x64xbf16, #tpu.memory_space<vmem>>, %arg4: memref<1x512xf32, #tpu.memory_space<vmem>>, %arg5: memref<1x512xf32, #tpu.memory_space<vmem>>, %arg6: memref<24x64xbf16, #tpu.memory_space<vmem>>, %arg7: memref<8x64xf32, #tpu.memory_space<vmem>>, %arg8: memref<8x64xf32, #tpu.memory_space<vmem>>) attributes {dimension_semantics = [#tpu.dimension_semantics<parallel>, #tpu.dimension_semantics<arbitrary>], iteration_bounds = array<i64: 1, 1>, scalar_prefetch = 0 : i64, scratch_operands = 0 : i64, tpu.core_type = #tpu.core_type<tc>, window_params = [{transform_indices = @transform_0, window_bounds = array<i64: 24, 512>}, {pipeline_mode = #tpu.pipeline_mode<synchronous>, transform_indices = @transform_1, window_bounds = array<i64: 512, 64>}, {transform_indices = @transform_2, window_bounds = array<i64: 1, 512>}, {transform_indices = @transform_3, window_bounds = array<i64: 1, 512>}, {transform_indices = @transform_4, window_bounds = array<i64: 24, 64>}, {transform_indices = @transform_5, window_bounds = array<i64: 8, 64>}, {transform_indices = @transform_6, window_bounds = array<i64: 8, 64>}]} {
    %c0 = arith.constant 0 : index
    %c0_0 = arith.constant 0 : index
    %0 = vector.load %arg2[%c0, %c0_0] : memref<24x512xbf16, #tpu.memory_space<vmem>>, vector<24x512xbf16>
    %c0_1 = arith.constant 0 : index
    %c0_2 = arith.constant 0 : index
    %1 = vector.load %arg4[%c0_1, %c0_2] : memref<1x512xf32, #tpu.memory_space<vmem>>, vector<1x512xf32>
    %2 = arith.truncf %1 : vector<1x512xf32> to vector<1x512xbf16>
    %3 = vector.broadcast %2 : vector<1x512xbf16> to vector<24x512xbf16>
    %4 = arith.mulf %0, %3 : vector<24x512xbf16>
    %c0_3 = arith.constant 0 : index
    %c0_4 = arith.constant 0 : index
    %5 = vector.load %arg5[%c0_3, %c0_4] : memref<1x512xf32, #tpu.memory_space<vmem>>, vector<1x512xf32>
    %6 = arith.truncf %5 : vector<1x512xf32> to vector<1x512xbf16>
    %7 = vector.broadcast %6 : vector<1x512xbf16> to vector<24x512xbf16>
    %8 = arith.addf %4, %7 : vector<24x512xbf16>
    %cst = arith.constant 2.001950e-01 : bf16
    %9 = vector.broadcast %cst : bf16 to vector<24x512xbf16>
    %10 = arith.mulf %8, %9 : vector<24x512xbf16>
    %11 = arith.maximumf %8, %10 : vector<24x512xbf16>
    %c0_5 = arith.constant 0 : index
    %c0_6 = arith.constant 0 : index
    %12 = vector.load %arg3[%c0_5, %c0_6] : memref<512x64xbf16, #tpu.memory_space<vmem>>, vector<512x64xbf16>
    %cst_7 = arith.constant dense<0.000000e+00> : vector<24x64xf32>
    %13 = tpu.matmul %11, %12, %cst_7 {dimension_numbers = #tpu.dot_dimension_numbers<[1], [0], [0], [1], [0, 0, 1, 1], [], []>} : vector<24x512xbf16>, vector<512x64xbf16>, vector<24x64xf32> -> vector<24x64xf32>
    %14 = tpu.iota {dimensions = array<i32: 0>} : vector<24x1xi32>
    %c24_i32 = arith.constant 24 : i32
    %15 = arith.muli %arg0, %c24_i32 : i32
    %16 = vector.broadcast %15 : i32 to vector<24x1xi32>
    %17 = arith.addi %14, %16 : vector<24x1xi32>
    %c18_i32 = arith.constant 18 : i32
    %18 = vector.broadcast %c18_i32 : i32 to vector<24x1xi32>
    %19 = arith.cmpi slt, %17, %18 : vector<24x1xi32>
    %20 = arith.extui %19 : vector<24x1xi1> to vector<24x1xi32>
    %21 = arith.sitofp %20 : vector<24x1xi32> to vector<24x1xf32>
    %22 = vector.broadcast %21 : vector<24x1xf32> to vector<24x64xf32>
    %23 = arith.mulf %13, %22 : vector<24x64xf32>
    %24 = vector.shape_cast %23 : vector<24x64xf32> to vector<8x3x64xf32>
    %cst_8 = arith.constant dense<0.000000e+00> : vector<8x64xf32>
    %25 = vector.multi_reduction <add>, %24, %cst_8 [1] : vector<8x3x64xf32> to vector<8x64xf32>
    %c0_9 = arith.constant 0 : index
    %c0_10 = arith.constant 0 : index
    %26 = vector.load %arg7[%c0_9, %c0_10] : memref<8x64xf32, #tpu.memory_space<vmem>>, vector<8x64xf32>
    tpu.vector_store %arg7[%c0_9, %c0_10], %25 {strides = array<i32>} : memref<8x64xf32, #tpu.memory_space<vmem>>, vector<8x64xf32>,
    %27 = arith.mulf %24, %24 : vector<8x3x64xf32>
    %cst_11 = arith.constant dense<0.000000e+00> : vector<8x64xf32>
    %28 = vector.multi_reduction <add>, %27, %cst_11 [1] : vector<8x3x64xf32> to vector<8x64xf32>
    %c0_12 = arith.constant 0 : index
    %c0_13 = arith.constant 0 : index
    %29 = vector.load %arg8[%c0_12, %c0_13] : memref<8x64xf32, #tpu.memory_space<vmem>>, vector<8x64xf32>
    tpu.vector_store %arg8[%c0_12, %c0_13], %28 {strides = array<i32>} : memref<8x64xf32, #tpu.memory_space<vmem>>, vector<8x64xf32>,
    %30 = arith.truncf %13 : vector<24x64xf32> to vector<24x64xbf16>
    %c0_14 = arith.constant 0 : index
    %c0_15 = arith.constant 0 : index
    %31 = vector.load %arg6[%c0_14, %c0_15] : memref<24x64xbf16, #tpu.memory_space<vmem>>, vector<24x64xbf16>
    tpu.vector_store %arg6[%c0_14, %c0_15], %30 {strides = array<i32>} : memref<24x64xbf16, #tpu.memory_space<vmem>>, vector<24x64xbf16>,
    return
  }
  func.func @transform_0(%arg0: i32, %arg1: i32) -> (i32, i32) {
    %c0_i32 = arith.constant 0 : i32
    return %arg0, %arg1 : i32, i32
  }
  func.func @transform_1(%arg0: i32, %arg1: i32) -> (i32, i32) {
    %c0_i32 = arith.constant 0 : i32
    %c0_i32_0 = arith.constant 0 : i32
    %c0_i32_1 = arith.constant 0 : i32
    return %c0_i32, %c0_i32_0 : i32, i32
  }
  func.func @transform_2(%arg0: i32, %arg1: i32) -> (i32, i32) {
    %c0_i32 = arith.constant 0 : i32
    %c0_i32_0 = arith.constant 0 : i32
    return %c0_i32, %arg1 : i32, i32
  }
  func.func @transform_3(%arg0: i32, %arg1: i32) -> (i32, i32) {
    %c0_i32 = arith.constant 0 : i32
    %c0_i32_0 = arith.constant 0 : i32
    return %c0_i32, %arg1 : i32, i32
  }
  func.func @transform_4(%arg0: i32, %arg1: i32) -> (i32, i32) {
    %c0_i32 = arith.constant 0 : i32
    %c0_i32_0 = arith.constant 0 : i32
    return %arg0, %c0_i32 : i32, i32
  }
  func.func @transform_5(%arg0: i32, %arg1: i32) -> (i32, i32) {
    %c0_i32 = arith.constant 0 : i32
    %c0_i32_0 = arith.constant 0 : i32
    return %arg0, %c0_i32 : i32, i32
  }
  func.func @transform_6(%arg0: i32, %arg1: i32) -> (i32, i32) {
    %c0_i32 = arith.constant 0 : i32
    %c0_i32_0 = arith.constant 0 : i32
    return %arg0, %c0_i32 : i32, i32
  }
}

module attributes {stable_mosaic.version = 11 : i64} {
  func.func @_conv_gemm_kernel(%arg0: i32, %arg1: i32, %arg2: memref<8x1024xbf16, #tpu.memory_space<vmem>>, %arg3: memref<1024x128xbf16, #tpu.memory_space<vmem>>, %arg4: memref<1x1024xf32, #tpu.memory_space<vmem>>, %arg5: memref<1x1024xf32, #tpu.memory_space<vmem>>, %arg6: memref<1x128xf32, #tpu.memory_space<vmem>>, %arg7: memref<8x128xf32, #tpu.memory_space<vmem>>) attributes {dimension_semantics = [#tpu.dimension_semantics<parallel>, #tpu.dimension_semantics<arbitrary>], iteration_bounds = array<i64: 1, 1>, scalar_prefetch = 0 : i64, scratch_operands = 0 : i64, tpu.core_type = #tpu.core_type<tc>, window_params = [{transform_indices = @transform_0, window_bounds = array<i64: 8, 1024>}, {pipeline_mode = #tpu.pipeline_mode<synchronous>, transform_indices = @transform_1, window_bounds = array<i64: 1024, 128>}, {transform_indices = @transform_2, window_bounds = array<i64: 1, 1024>}, {transform_indices = @transform_3, window_bounds = array<i64: 1, 1024>}, {pipeline_mode = #tpu.pipeline_mode<synchronous>, transform_indices = @transform_4, window_bounds = array<i64: 1, 128>}, {transform_indices = @transform_5, window_bounds = array<i64: 8, 128>}]} {
    %c0 = arith.constant 0 : index
    %c0_0 = arith.constant 0 : index
    %0 = vector.load %arg2[%c0, %c0_0] : memref<8x1024xbf16, #tpu.memory_space<vmem>>, vector<8x1024xbf16>
    %c0_1 = arith.constant 0 : index
    %c0_2 = arith.constant 0 : index
    %1 = vector.load %arg4[%c0_1, %c0_2] : memref<1x1024xf32, #tpu.memory_space<vmem>>, vector<1x1024xf32>
    %2 = arith.truncf %1 : vector<1x1024xf32> to vector<1x1024xbf16>
    %3 = vector.broadcast %2 : vector<1x1024xbf16> to vector<8x1024xbf16>
    %4 = arith.mulf %0, %3 : vector<8x1024xbf16>
    %c0_3 = arith.constant 0 : index
    %c0_4 = arith.constant 0 : index
    %5 = vector.load %arg5[%c0_3, %c0_4] : memref<1x1024xf32, #tpu.memory_space<vmem>>, vector<1x1024xf32>
    %6 = arith.truncf %5 : vector<1x1024xf32> to vector<1x1024xbf16>
    %7 = vector.broadcast %6 : vector<1x1024xbf16> to vector<8x1024xbf16>
    %8 = arith.addf %4, %7 : vector<8x1024xbf16>
    %cst = arith.constant 2.001950e-01 : bf16
    %9 = vector.broadcast %cst : bf16 to vector<8x1024xbf16>
    %10 = arith.mulf %8, %9 : vector<8x1024xbf16>
    %11 = arith.maximumf %8, %10 : vector<8x1024xbf16>
    %c0_5 = arith.constant 0 : index
    %c0_6 = arith.constant 0 : index
    %12 = vector.load %arg3[%c0_5, %c0_6] : memref<1024x128xbf16, #tpu.memory_space<vmem>>, vector<1024x128xbf16>
    %cst_7 = arith.constant dense<0.000000e+00> : vector<8x128xf32>
    %13 = tpu.matmul %11, %12, %cst_7 {dimension_numbers = #tpu.dot_dimension_numbers<[1], [0], [0], [1], [0, 0, 1, 1], [], []>} : vector<8x1024xbf16>, vector<1024x128xbf16>, vector<8x128xf32> -> vector<8x128xf32>
    %c0_8 = arith.constant 0 : index
    %c0_9 = arith.constant 0 : index
    %14 = vector.load %arg6[%c0_8, %c0_9] : memref<1x128xf32, #tpu.memory_space<vmem>>, vector<1x128xf32>
    %15 = vector.broadcast %14 : vector<1x128xf32> to vector<8x128xf32>
    %16 = arith.addf %13, %15 : vector<8x128xf32>
    %c0_10 = arith.constant 0 : index
    %c0_11 = arith.constant 0 : index
    %17 = vector.load %arg7[%c0_10, %c0_11] : memref<8x128xf32, #tpu.memory_space<vmem>>, vector<8x128xf32>
    tpu.vector_store %arg7[%c0_10, %c0_11], %16 {strides = array<i32>} : memref<8x128xf32, #tpu.memory_space<vmem>>, vector<8x128xf32>,
    return
  }
  func.func @transform_0(%arg0: i32, %arg1: i32) -> (i32, i32) {
    %c0_i32 = arith.constant 0 : i32
    return %arg0, %arg1 : i32, i32
  }
  func.func @transform_1(%arg0: i32, %arg1: i32) -> (i32, i32) {
    %c0_i32 = arith.constant 0 : i32
    %c0_i32_0 = arith.constant 0 : i32
    %c0_i32_1 = arith.constant 0 : i32
    return %c0_i32, %c0_i32_0 : i32, i32
  }
  func.func @transform_2(%arg0: i32, %arg1: i32) -> (i32, i32) {
    %c0_i32 = arith.constant 0 : i32
    %c0_i32_0 = arith.constant 0 : i32
    return %c0_i32, %arg1 : i32, i32
  }
  func.func @transform_3(%arg0: i32, %arg1: i32) -> (i32, i32) {
    %c0_i32 = arith.constant 0 : i32
    %c0_i32_0 = arith.constant 0 : i32
    return %c0_i32, %arg1 : i32, i32
  }
  func.func @transform_4(%arg0: i32, %arg1: i32) -> (i32, i32) {
    %c0_i32 = arith.constant 0 : i32
    %c0_i32_0 = arith.constant 0 : i32
    %c0_i32_1 = arith.constant 0 : i32
    return %c0_i32, %c0_i32_0 : i32, i32
  }
  func.func @transform_5(%arg0: i32, %arg1: i32) -> (i32, i32) {
    %c0_i32 = arith.constant 0 : i32
    %c0_i32_0 = arith.constant 0 : i32
    return %arg0, %c0_i32 : i32, i32
  }
}

</mosaic_0001>

<llo_original>
// kernel: discriminator_forward.5
$region0: #{discriminator_forward.5}
  #allocation0 [shape = 'u32[]', space=smem, size = 0x4, offset = 0x4, fixed_abs, tag = 'smem constant byte address 0x4 - core index']
  #allocation1 [shape = 'u32[144,128]{1,0:T(1,128)}', space=vmem, size = 0x12000, scoped, tag = 'internal scratch']
  %s0 = inlined_call_operand.vmem [shape: bf16[512,128], index: 0, kind: input, shape index: {}]
  %s1 = inlined_call_operand.vmem [shape: bf16[128,8], index: 1, kind: input, shape index: {}]
  %s2 = inlined_call_operand.vmem [shape: f32[1,8], index: 2, kind: input, shape index: {}]
  %s3 = inlined_call_operand.vmem [shape: bf16[512,8], index: 3, kind: output, shape index: {}]
  %s4 = sld [smem:[#allocation0]]
  $region22: #{discriminator_forward.5} parent=0
    _
  %s6 = ssub.s32 1, %s4
  %s7 = scalar_select 0, %s6, %s4
  // Predicated region
  $region2: #{discriminator_forward.5} parent=0 // pred_check
    _
  $region3: #{discriminator_forward.5} parent=0 // pred_check_branch
    %9 = sbr.rel (0) target = $region5
  $region4: #{discriminator_forward.5} parent=0 // pred_region
    _
  $region5: #{discriminator_forward.5} parent=0 // pred_fallthru
    _
  // Predicated region
  $region6: #{discriminator_forward.5} parent=0 // pred_check
    _
  $region7: #{discriminator_forward.5} parent=0 // pred_check_branch
    %11 = sbr.rel (0) target = $region9
  $region8: #{discriminator_forward.5} parent=0 // pred_region
    _
  $region9: #{discriminator_forward.5} parent=0 // pred_fallthru
    _
  // Predicated region
  $region10: #{discriminator_forward.5} parent=0 // pred_check
    _
  $region11: #{discriminator_forward.5} parent=0 // pred_check_branch
    %13 = sbr.rel (0) target = $region13
  $region12: #{discriminator_forward.5} parent=0 // pred_region
    _
  $region13: #{discriminator_forward.5} parent=0 // pred_fallthru
    _
  %v15 = vld [vmem:[%s0] sm:$0xf]
  %v16 = vld [vmem:[%s0 + $0x4] sm:$0xf]
  %v17 = vld [vmem:[%s0 + $0x8] sm:$0xf]
  %v18 = vld [vmem:[%s0 + $0xc] sm:$0xf]
  %v19 = vld [vmem:[%s0 + $0x10] sm:$0xf]
  %v20 = vld [vmem:[%s0 + $0x14] sm:$0xf]
  %v21 = vld [vmem:[%s0 + $0x18] sm:$0xf]
  %v22 = vld [vmem:[%s0 + $0x1c] sm:$0xf]
  %v23 = vld [vmem:[%s0 + $0x20] sm:$0xf]
  %v24 = vld [vmem:[%s0 + $0x24] sm:$0xf]
  %v25 = vld [vmem:[%s0 + $0x28] sm:$0xf]
  %v26 = vld [vmem:[%s0 + $0x2c] sm:$0xf]
  %v27 = vld [vmem:[%s0 + $0x30] sm:$0xf]
  %v28 = vld [vmem:[%s0 + $0x34] sm:$0xf]
  %v29 = vld [vmem:[%s0 + $0x38] sm:$0xf]
  %v30 = vld [vmem:[%s0 + $0x3c] sm:$0xf]
  %v31 = vld [vmem:[%s0 + $0x40] sm:$0xf]
  %v32 = vld [vmem:[%s0 + $0x44] sm:$0xf]
  %v33 = vld [vmem:[%s0 + $0x48] sm:$0xf]
  %v34 = vld [vmem:[%s0 + $0x4c] sm:$0xf]
  %v35 = vld [vmem:[%s0 + $0x50] sm:$0xf]
  %v36 = vld [vmem:[%s0 + $0x54] sm:$0xf]
  %v37 = vld [vmem:[%s0 + $0x58] sm:$0xf]
  %v38 = vld [vmem:[%s0 + $0x5c] sm:$0xf]
  %v39 = vld [vmem:[%s0 + $0x60] sm:$0xf]
  %v40 = vld [vmem:[%s0 + $0x64] sm:$0xf]
  %v41 = vld [vmem:[%s0 + $0x68] sm:$0xf]
  %v42 = vld [vmem:[%s0 + $0x6c] sm:$0xf]
  %v43 = vld [vmem:[%s0 + $0x70] sm:$0xf]
  %v44 = vld [vmem:[%s0 + $0x74] sm:$0xf]
  %v45 = vld [vmem:[%s0 + $0x78] sm:$0xf]
  %v46 = vld [vmem:[%s0 + $0x7c] sm:$0xf]
  %v47 = vld [vmem:[%s0 + $0x80] sm:$0xf]
  %v48 = vld [vmem:[%s0 + $0x84] sm:$0xf]
  %v49 = vld [vmem:[%s0 + $0x88] sm:$0xf]
  %v50 = vld [vmem:[%s0 + $0x8c] sm:$0xf]
  %v51 = vld [vmem:[%s0 + $0x90] sm:$0xf]
  %v52 = vld [vmem:[%s0 + $0x94] sm:$0xf]
  %v53 = vld [vmem:[%s0 + $0x98] sm:$0xf]
  %v54 = vld [vmem:[%s0 + $0x9c] sm:$0xf]
  %v55 = vld [vmem:[%s0 + $0xa0] sm:$0xf]
  %v56 = vld [vmem:[%s0 + $0xa4] sm:$0xf]
  %v57 = vld [vmem:[%s0 + $0xa8] sm:$0xf]
  %v58 = vld [vmem:[%s0 + $0xac] sm:$0xf]
  %v59 = vld [vmem:[%s0 + $0xb0] sm:$0xf]
  %v60 = vld [vmem:[%s0 + $0xb4] sm:$0xf]
  %v61 = vld [vmem:[%s0 + $0xb8] sm:$0xf]
  %v62 = vld [vmem:[%s0 + $0xbc] sm:$0xf]
  %v63 = vld [vmem:[%s0 + $0xc0] sm:$0xf]
  %v64 = vld [vmem:[%s0 + $0xc4] sm:$0xf]
  %v65 = vld [vmem:[%s0 + $0xc8] sm:$0xf]
  %v66 = vld [vmem:[%s0 + $0xcc] sm:$0xf]
  %v67 = vld [vmem:[%s0 + $0xd0] sm:$0xf]
  %v68 = vld [vmem:[%s0 + $0xd4] sm:$0xf]
  %v69 = vld [vmem:[%s0 + $0xd8] sm:$0xf]
  %v70 = vld [vmem:[%s0 + $0xdc] sm:$0xf]
  %v71 = vld [vmem:[%s0 + $0xe0] sm:$0xf]
  %v72 = vld [vmem:[%s0 + $0xe4] sm:$0xf]
  %v73 = vld [vmem:[%s0 + $0xe8] sm:$0xf]
  %v74 = vld [vmem:[%s0 + $0xec] sm:$0xf]
  %v75 = vld [vmem:[%s0 + $0xf0] sm:$0xf]
  %v76 = vld [vmem:[%s0 + $0xf4] sm:$0xf]
  %v77 = vld [vmem:[%s0 + $0xf8] sm:$0xf]
  %v78 = vld [vmem:[%s0 + $0xfc] sm:$0xf]
  %v79 = vld [vmem:[%s1] sm:$0xf]
  %v80 = vld [vmem:[%s1 + $0x4] sm:$0xf]
  %v81 = vld [vmem:[%s1 + $0x8] sm:$0xf]
  %v82 = vld [vmem:[%s1 + $0xc] sm:$0xf]
  %v83 = vld [vmem:[%s1 + $0x10] sm:$0xf]
  %v84 = vld [vmem:[%s1 + $0x14] sm:$0xf]
  %v85 = vld [vmem:[%s1 + $0x18] sm:$0xf]
  %v86 = vld [vmem:[%s1 + $0x1c] sm:$0xf]
  %v87 = vld [vmem:[%s1 + $0x20] sm:$0xf]
  %v88 = vld [vmem:[%s1 + $0x24] sm:$0xf]
  %v89 = vld [vmem:[%s1 + $0x28] sm:$0xf]
  %v90 = vld [vmem:[%s1 + $0x2c] sm:$0xf]
  %v91 = vld [vmem:[%s1 + $0x30] sm:$0xf]
  %v92 = vld [vmem:[%s1 + $0x34] sm:$0xf]
  %v93 = vld [vmem:[%s1 + $0x38] sm:$0xf]
  %v94 = vld [vmem:[%s1 + $0x3c] sm:$0xf]
  %v95 = vld [vmem:[%s2] sm:$0x1]
  %v97 = vlaneseq
  %v98 = vshrl.u32 %v97, 7
  %v99 = vsub.s32 0, %v98
  %v100 = vrot.slane %v95, %v99
  %v166 = vunpack.c.l.b16 %v15
  %v167 = vunpack.c.l.b16 %v16
  %v168 = vunpack.c.l.b16 %v17
  %v169 = vunpack.c.l.b16 %v18
  %v170 = vunpack.c.l.b16 %v19
  %v171 = vunpack.c.l.b16 %v20
  %v172 = vunpack.c.l.b16 %v21
  %v173 = vunpack.c.l.b16 %v22
  %v174 = vunpack.c.l.b16 %v23
  %v175 = vunpack.c.l.b16 %v24
  %v176 = vunpack.c.l.b16 %v25
  %v177 = vunpack.c.l.b16 %v26
  %v178 = vunpack.c.l.b16 %v27
  %v179 = vunpack.c.l.b16 %v28
  %v180 = vunpack.c.l.b16 %v29
  %v181 = vunpack.c.l.b16 %v30
  %v182 = vunpack.c.l.b16 %v31
  %v183 = vunpack.c.l.b16 %v32
  %v184 = vunpack.c.l.b16 %v33
  %v185 = vunpack.c.l.b16 %v34
  %v186 = vunpack.c.l.b16 %v35
  %v187 = vunpack.c.l.b16 %v36
  %v188 = vunpack.c.l.b16 %v37
  %v189 = vunpack.c.l.b16 %v38
  %v190 = vunpack.c.l.b16 %v39
  %v191 = vunpack.c.l.b16 %v40
  %v192 = vunpack.c.l.b16 %v41
  %v193 = vunpack.c.l.b16 %v42
  %v194 = vunpack.c.l.b16 %v43
  %v195 = vunpack.c.l.b16 %v44
  %v196 = vunpack.c.l.b16 %v45
  %v197 = vunpack.c.l.b16 %v46
  %v198 = vunpack.c.l.b16 %v47
  %v199 = vunpack.c.l.b16 %v48
  %v200 = vunpack.c.l.b16 %v49
  %v201 = vunpack.c.l.b16 %v50
  %v202 = vunpack.c.l.b16 %v51
  %v203 = vunpack.c.l.b16 %v52
  %v204 = vunpack.c.l.b16 %v53
  %v205 = vunpack.c.l.b16 %v54
  %v206 = vunpack.c.l.b16 %v55
  %v207 = vunpack.c.l.b16 %v56
  %v208 = vunpack.c.l.b16 %v57
  %v209 = vunpack.c.l.b16 %v58
  %v210 = vunpack.c.l.b16 %v59
  %v211 = vunpack.c.l.b16 %v60
  %v212 = vunpack.c.l.b16 %v61
  %v213 = vunpack.c.l.b16 %v62
  %v214 = vunpack.c.l.b16 %v63
  %v215 = vunpack.c.l.b16 %v64
  %v216 = vunpack.c.l.b16 %v65
  %v217 = vunpack.c.l.b16 %v66
  %v218 = vunpack.c.l.b16 %v67
  %v219 = vunpack.c.l.b16 %v68
  %v220 = vunpack.c.l.b16 %v69
  %v221 = vunpack.c.l.b16 %v70
  %v222 = vunpack.c.l.b16 %v71
  %v223 = vunpack.c.l.b16 %v72
  %v224 = vunpack.c.l.b16 %v73
  %v225 = vunpack.c.l.b16 %v74
  %v226 = vunpack.c.l.b16 %v75
  %v227 = vunpack.c.l.b16 %v76
  %v228 = vunpack.c.l.b16 %v77
  %v229 = vunpack.c.l.b16 %v78
  %v230 = vpack.c.b16 %v167, %v166
  %v231 = vpack.c.b16 %v169, %v168
  %v232 = vpack.c.b16 %v171, %v170
  %v233 = vpack.c.b16 %v173, %v172
  %v234 = vpack.c.b16 %v175, %v174
  %v235 = vpack.c.b16 %v177, %v176
  %v236 = vpack.c.b16 %v179, %v178
  %v237 = vpack.c.b16 %v181, %v180
  %v238 = vpack.c.b16 %v183, %v182
  %v239 = vpack.c.b16 %v185, %v184
  %v240 = vpack.c.b16 %v187, %v186
  %v241 = vpack.c.b16 %v189, %v188
  %v242 = vpack.c.b16 %v191, %v190
  %v243 = vpack.c.b16 %v193, %v192
  %v244 = vpack.c.b16 %v195, %v194
  %v245 = vpack.c.b16 %v197, %v196
  %v246 = vpack.c.b16 %v199, %v198
  %v247 = vpack.c.b16 %v201, %v200
  %v248 = vpack.c.b16 %v203, %v202
  %v249 = vpack.c.b16 %v205, %v204
  %v250 = vpack.c.b16 %v207, %v206
  %v251 = vpack.c.b16 %v209, %v208
  %v252 = vpack.c.b16 %v211, %v210
  %v253 = vpack.c.b16 %v213, %v212
  %v254 = vpack.c.b16 %v215, %v214
  %v255 = vpack.c.b16 %v217, %v216
  %v256 = vpack.c.b16 %v219, %v218
  %v257 = vpack.c.b16 %v221, %v220
  %v258 = vpack.c.b16 %v223, %v222
  %v259 = vpack.c.b16 %v225, %v224
  %v260 = vpack.c.b16 %v227, %v226
  %v261 = vpack.c.b16 %v229, %v228
  %v310 = vunpack.c.l.b16 %v79
  %v311 = vunpack.c.l.b16 %v80
  %v312 = vunpack.c.l.b16 %v81
  %v313 = vunpack.c.l.b16 %v82
  %v314 = vunpack.c.l.b16 %v83
  %v315 = vunpack.c.l.b16 %v84
  %v316 = vunpack.c.l.b16 %v85
  %v317 = vunpack.c.l.b16 %v86
  %v318 = vunpack.c.l.b16 %v87
  %v319 = vunpack.c.l.b16 %v88
  %v320 = vunpack.c.l.b16 %v89
  %v321 = vunpack.c.l.b16 %v90
  %v322 = vunpack.c.l.b16 %v91
  %v323 = vunpack.c.l.b16 %v92
  %v324 = vunpack.c.l.b16 %v93
  %v325 = vunpack.c.l.b16 %v94
  %v326 = vpack.c.b16 %v311, %v310
  %v327 = vpack.c.b16 %v313, %v312
  %v328 = vpack.c.b16 %v315, %v314
  %v329 = vpack.c.b16 %v317, %v316
  %v330 = vpack.c.b16 %v319, %v318
  %v331 = vpack.c.b16 %v321, %v320
  %v332 = vpack.c.b16 %v323, %v322
  %v333 = vpack.c.b16 %v325, %v324
  %342 = vmatprep.subr.bf16.mxu0 0
  %343 = vmatpush1.bf16.msra.mxu0 %v333
  %344 = vmatprep.subr.bf16.mxu0 0
  %345 = vmatpush1.bf16.msra.mxu0 %v332
  %346 = vmatprep.subr.bf16.mxu0 0
  %347 = vmatpush1.bf16.msra.mxu0 %v331
  %348 = vmatprep.subr.bf16.mxu0 0
  %349 = vmatpush1.bf16.msra.mxu0 %v330
  %350 = vmatprep.subr.bf16.mxu0 0
  %351 = vmatpush1.bf16.msra.mxu0 %v329
  %352 = vmatprep.subr.bf16.mxu0 0
  %353 = vmatpush1.bf16.msra.mxu0 %v328
  %354 = vmatprep.subr.bf16.mxu0 0
  %355 = vmatpush1.bf16.msra.mxu0 %v327
  %356 = vmatprep.subr.bf16.mxu0 0
  %357 = vmatpush1.bf16.msra.mxu0 %v326
  %358 = vmatprep.subr.bf16.mxu0 0
  %359 = vmatpush2.bf16.msra.mxu0 0
  %360 = vmatprep.subr.bf16.mxu0 0
  %361 = vmatpush2.bf16.msra.mxu0 0
  %362 = vmatprep.subr.bf16.mxu0 0
  %363 = vmatpush2.bf16.msra.mxu0 0
  %364 = vmatprep.subr.bf16.mxu0 0
  %365 = vmatpush2.bf16.msra.mxu0 0
  %366 = vmatprep.subr.bf16.mxu0 0
  %367 = vmatpush2.bf16.msra.mxu0 0
  %368 = vmatprep.subr.bf16.mxu0 0
  %369 = vmatpush2.bf16.msra.mxu0 0
  %370 = vmatprep.subr.bf16.mxu0 0
  %371 = vmatpush2.bf16.msra.mxu0 0
  %372 = vmatprep.subr.bf16.mxu0 0
  %373 = vmatpush2.bf16.msra.mxu0 0
  %374 = vmatprep.mubr.bf16.mxu0 0
  %375 = vmatmul.mubr.bf16.gmra.mxu0 %v230
  %v376 = vpop.f32.mrf.mxu0
  %v377 = vadd.f32 %v100, %v376
  %v378 = vpop.f32.mrf.mxu0
  %v379 = vpop.f32.mrf.mxu0
  %v380 = vadd.f32 %v100, %v379
  %v381 = vpop.f32.mrf.mxu0
  %382 = vmatprep.mubr.bf16.mxu0 0
  %383 = vmatmul.mubr.bf16.gmra.mxu0 %v231
  %v384 = vpop.f32.mrf.mxu0
  %v385 = vadd.f32 %v100, %v384
  %v386 = vpop.f32.mrf.mxu0
  %v387 = vpop.f32.mrf.mxu0
  %v388 = vadd.f32 %v100, %v387
  %v389 = vpop.f32.mrf.mxu0
  %390 = vmatprep.mubr.bf16.mxu0 0
  %391 = vmatmul.mubr.bf16.gmra.mxu0 %v232
  %v392 = vpop.f32.mrf.mxu0
  %v393 = vadd.f32 %v100, %v392
  %v394 = vpop.f32.mrf.mxu0
  %v395 = vpop.f32.mrf.mxu0
  %v396 = vadd.f32 %v100, %v395
  %v397 = vpop.f32.mrf.mxu0
  %398 = vmatprep.mubr.bf16.mxu0 0
  %399 = vmatmul.mubr.bf16.gmra.mxu0 %v233
  %v400 = vpop.f32.mrf.mxu0
  %v401 = vadd.f32 %v100, %v400
  %v402 = vpop.f32.mrf.mxu0
  %v403 = vpop.f32.mrf.mxu0
  %v404 = vadd.f32 %v100, %v403
  %v405 = vpop.f32.mrf.mxu0
  %406 = vmatprep.mubr.bf16.mxu0 0
  %407 = vmatmul.mubr.bf16.gmra.mxu0 %v234
  %v408 = vpop.f32.mrf.mxu0
  %v409 = vadd.f32 %v100, %v408
  %v410 = vpop.f32.mrf.mxu0
  %v411 = vpop.f32.mrf.mxu0
  %v412 = vadd.f32 %v100, %v411
  %v413 = vpop.f32.mrf.mxu0
  %414 = vmatprep.mubr.bf16.mxu0 0
  %415 = vmatmul.mubr.bf16.gmra.mxu0 %v235
  %v416 = vpop.f32.mrf.mxu0
  %v417 = vadd.f32 %v100, %v416
  %v418 = vpop.f32.mrf.mxu0
  %v419 = vpop.f32.mrf.mxu0
  %v420 = vadd.f32 %v100, %v419
  %v421 = vpop.f32.mrf.mxu0
  %422 = vmatprep.mubr.bf16.mxu0 0
  %423 = vmatmul.mubr.bf16.gmra.mxu0 %v236
  %v424 = vpop.f32.mrf.mxu0
  %v425 = vadd.f32 %v100, %v424
  %v426 = vpop.f32.mrf.mxu0
  %v427 = vpop.f32.mrf.mxu0
  %v428 = vadd.f32 %v100, %v427
  %v429 = vpop.f32.mrf.mxu0
  %430 = vmatprep.mubr.bf16.mxu0 0
  %431 = vmatmul.mubr.bf16.gmra.mxu0 %v237
  %v432 = vpop.f32.mrf.mxu0
  %v433 = vadd.f32 %v100, %v432
  %v434 = vpop.f32.mrf.mxu0
  %v435 = vpop.f32.mrf.mxu0
  %v436 = vadd.f32 %v100, %v435
  %v437 = vpop.f32.mrf.mxu0
  %438 = vmatprep.mubr.bf16.mxu0 0
  %439 = vmatmul.mubr.bf16.gmra.mxu0 %v238
  %v440 = vpop.f32.mrf.mxu0
  %v441 = vadd.f32 %v100, %v440
  %v442 = vpop.f32.mrf.mxu0
  %v443 = vpop.f32.mrf.mxu0
  %v444 = vadd.f32 %v100, %v443
  %v445 = vpop.f32.mrf.mxu0
  %446 = vmatprep.mubr.bf16.mxu0 0
  %447 = vmatmul.mubr.bf16.gmra.mxu0 %v239
  %v448 = vpop.f32.mrf.mxu0
  %v449 = vadd.f32 %v100, %v448
  %v450 = vpop.f32.mrf.mxu0
  %v451 = vpop.f32.mrf.mxu0
  %v452 = vadd.f32 %v100, %v451
  %v453 = vpop.f32.mrf.mxu0
  %454 = vmatprep.mubr.bf16.mxu0 0
  %455 = vmatmul.mubr.bf16.gmra.mxu0 %v240
  %v456 = vpop.f32.mrf.mxu0
  %v457 = vadd.f32 %v100, %v456
  %v458 = vpop.f32.mrf.mxu0
  %v459 = vpop.f32.mrf.mxu0
  %v460 = vadd.f32 %v100, %v459
  %v461 = vpop.f32.mrf.mxu0
  %462 = vmatprep.mubr.bf16.mxu0 0
  %463 = vmatmul.mubr.bf16.gmra.mxu0 %v241
  %v464 = vpop.f32.mrf.mxu0
  %v465 = vadd.f32 %v100, %v464
  %v466 = vpop.f32.mrf.mxu0
  %v467 = vpop.f32.mrf.mxu0
  %v468 = vadd.f32 %v100, %v467
  %v469 = vpop.f32.mrf.mxu0
  %470 = vmatprep.mubr.bf16.mxu0 0
  %471 = vmatmul.mubr.bf16.gmra.mxu0 %v242
  %v472 = vpop.f32.mrf.mxu0
  %v473 = vadd.f32 %v100, %v472
  %v474 = vpop.f32.mrf.mxu0
  %v475 = vpop.f32.mrf.mxu0
  %v476 = vadd.f32 %v100, %v475
  %v477 = vpop.f32.mrf.mxu0
  %478 = vmatprep.mubr.bf16.mxu0 0
  %479 = vmatmul.mubr.bf16.gmra.mxu0 %v243
  %v480 = vpop.f32.mrf.mxu0
  %v481 = vadd.f32 %v100, %v480
  %v482 = vpop.f32.mrf.mxu0
  %v483 = vpop.f32.mrf.mxu0
  %v484 = vadd.f32 %v100, %v483
  %v485 = vpop.f32.mrf.mxu0
  %486 = vmatprep.mubr.bf16.mxu0 0
  %487 = vmatmul.mubr.bf16.gmra.mxu0 %v244
  %v488 = vpop.f32.mrf.mxu0
  %v489 = vadd.f32 %v100, %v488
  %v490 = vpop.f32.mrf.mxu0
  %v491 = vpop.f32.mrf.mxu0
  %v492 = vadd.f32 %v100, %v491
  %v493 = vpop.f32.mrf.mxu0
  %494 = vmatprep.mubr.bf16.mxu0 0
  %495 = vmatmul.mubr.bf16.gmra.mxu0 %v245
  %v496 = vpop.f32.mrf.mxu0
  %v497 = vadd.f32 %v100, %v496
  %v498 = vpop.f32.mrf.mxu0
  %v499 = vpop.f32.mrf.mxu0
  %v500 = vadd.f32 %v100, %v499
  %v501 = vpop.f32.mrf.mxu0
  %502 = vmatprep.mubr.bf16.mxu0 0
  %503 = vmatmul.mubr.bf16.gmra.mxu0 %v246
  %v504 = vpop.f32.mrf.mxu0
  %v505 = vadd.f32 %v100, %v504
  %v506 = vpop.f32.mrf.mxu0
  %v507 = vpop.f32.mrf.mxu0
  %v508 = vadd.f32 %v100, %v507
  %v509 = vpop.f32.mrf.mxu0
  %510 = vmatprep.mubr.bf16.mxu0 0
  %511 = vmatmul.mubr.bf16.gmra.mxu0 %v247
  %v512 = vpop.f32.mrf.mxu0
  %v513 = vadd.f32 %v100, %v512
  %v514 = vpop.f32.mrf.mxu0
  %v515 = vpop.f32.mrf.mxu0
  %v516 = vadd.f32 %v100, %v515
  %v517 = vpop.f32.mrf.mxu0
  %518 = vmatprep.mubr.bf16.mxu0 0
  %519 = vmatmul.mubr.bf16.gmra.mxu0 %v248
  %v520 = vpop.f32.mrf.mxu0
  %v521 = vadd.f32 %v100, %v520
  %v522 = vpop.f32.mrf.mxu0
  %v523 = vpop.f32.mrf.mxu0
  %v524 = vadd.f32 %v100, %v523
  %v525 = vpop.f32.mrf.mxu0
  %526 = vmatprep.mubr.bf16.mxu0 0
  %527 = vmatmul.mubr.bf16.gmra.mxu0 %v249
  %v528 = vpop.f32.mrf.mxu0
  %v529 = vadd.f32 %v100, %v528
  %v530 = vpop.f32.mrf.mxu0
  %v531 = vpop.f32.mrf.mxu0
  %v532 = vadd.f32 %v100, %v531
  %v533 = vpop.f32.mrf.mxu0
  %534 = vmatprep.mubr.bf16.mxu0 0
  %535 = vmatmul.mubr.bf16.gmra.mxu0 %v250
  %v536 = vpop.f32.mrf.mxu0
  %v537 = vadd.f32 %v100, %v536
  %v538 = vpop.f32.mrf.mxu0
  %v539 = vpop.f32.mrf.mxu0
  %v540 = vadd.f32 %v100, %v539
  %v541 = vpop.f32.mrf.mxu0
  %542 = vmatprep.mubr.bf16.mxu0 0
  %543 = vmatmul.mubr.bf16.gmra.mxu0 %v251
  %v544 = vpop.f32.mrf.mxu0
  %v545 = vadd.f32 %v100, %v544
  %v546 = vpop.f32.mrf.mxu0
  %v547 = vpop.f32.mrf.mxu0
  %v548 = vadd.f32 %v100, %v547
  %v549 = vpop.f32.mrf.mxu0
  %550 = vmatprep.mubr.bf16.mxu0 0
  %551 = vmatmul.mubr.bf16.gmra.mxu0 %v252
  %v552 = vpop.f32.mrf.mxu0
  %v553 = vadd.f32 %v100, %v552
  %v554 = vpop.f32.mrf.mxu0
  %v555 = vpop.f32.mrf.mxu0
  %v556 = vadd.f32 %v100, %v555
  %v557 = vpop.f32.mrf.mxu0
  %558 = vmatprep.mubr.bf16.mxu0 0
  %559 = vmatmul.mubr.bf16.gmra.mxu0 %v253
  %v560 = vpop.f32.mrf.mxu0
  %v561 = vadd.f32 %v100, %v560
  %v562 = vpop.f32.mrf.mxu0
  %v563 = vpop.f32.mrf.mxu0
  %v564 = vadd.f32 %v100, %v563
  %v565 = vpop.f32.mrf.mxu0
  %566 = vmatprep.mubr.bf16.mxu0 0
  %567 = vmatmul.mubr.bf16.gmra.mxu0 %v254
  %v568 = vpop.f32.mrf.mxu0
  %v569 = vadd.f32 %v100, %v568
  %v570 = vpop.f32.mrf.mxu0
  %v571 = vpop.f32.mrf.mxu0
  %v572 = vadd.f32 %v100, %v571
  %v573 = vpop.f32.mrf.mxu0
  %574 = vmatprep.mubr.bf16.mxu0 0
  %575 = vmatmul.mubr.bf16.gmra.mxu0 %v255
  %v576 = vpop.f32.mrf.mxu0
  %v577 = vadd.f32 %v100, %v576
  %v578 = vpop.f32.mrf.mxu0
  %v579 = vpop.f32.mrf.mxu0
  %v580 = vadd.f32 %v100, %v579
  %v581 = vpop.f32.mrf.mxu0
  %582 = vmatprep.mubr.bf16.mxu0 0
  %583 = vmatmul.mubr.bf16.gmra.mxu0 %v256
  %v584 = vpop.f32.mrf.mxu0
  %v585 = vadd.f32 %v100, %v584
  %v586 = vpop.f32.mrf.mxu0
  %v587 = vpop.f32.mrf.mxu0
  %v588 = vadd.f32 %v100, %v587
  %v589 = vpop.f32.mrf.mxu0
  %590 = vmatprep.mubr.bf16.mxu0 0
  %591 = vmatmul.mubr.bf16.gmra.mxu0 %v257
  %v592 = vpop.f32.mrf.mxu0
  %v593 = vadd.f32 %v100, %v592
  %v594 = vpop.f32.mrf.mxu0
  %v595 = vpop.f32.mrf.mxu0
  %v596 = vadd.f32 %v100, %v595
  %v597 = vpop.f32.mrf.mxu0
  %598 = vmatprep.mubr.bf16.mxu0 0
  %599 = vmatmul.mubr.bf16.gmra.mxu0 %v258
  %v600 = vpop.f32.mrf.mxu0
  %v601 = vadd.f32 %v100, %v600
  %v602 = vpop.f32.mrf.mxu0
  %v603 = vpop.f32.mrf.mxu0
  %v604 = vadd.f32 %v100, %v603
  %v605 = vpop.f32.mrf.mxu0
  %606 = vmatprep.mubr.bf16.mxu0 0
  %607 = vmatmul.mubr.bf16.gmra.mxu0 %v259
  %v608 = vpop.f32.mrf.mxu0
  %v609 = vadd.f32 %v100, %v608
  %v610 = vpop.f32.mrf.mxu0
  %v611 = vpop.f32.mrf.mxu0
  %v612 = vadd.f32 %v100, %v611
  %v613 = vpop.f32.mrf.mxu0
  %614 = vmatprep.mubr.bf16.mxu0 0
  %615 = vmatmul.mubr.bf16.gmra.mxu0 %v260
  %v616 = vpop.f32.mrf.mxu0
  %v617 = vadd.f32 %v100, %v616
  %v618 = vpop.f32.mrf.mxu0
  %v619 = vpop.f32.mrf.mxu0
  %v620 = vadd.f32 %v100, %v619
  %v621 = vpop.f32.mrf.mxu0
  %622 = vmatprep.mubr.bf16.mxu0 0
  %623 = vmatmul.mubr.bf16.gmra.mxu0 %v261
  %v624 = vpop.f32.mrf.mxu0
  %v625 = vadd.f32 %v100, %v624
  %v626 = vpop.f32.mrf.mxu0
  %v627 = vpop.f32.mrf.mxu0
  %v628 = vadd.f32 %v100, %v627
  %v629 = vpop.f32.mrf.mxu0
  %630 = vdwg.mxu0
  %v631 = vmul.f32 %v377, 0.2
  %v632 = vmul.f32 %v380, 0.2
  %v633 = vmul.f32 %v385, 0.2
  %v634 = vmul.f32 %v388, 0.2
  %v635 = vmul.f32 %v393, 0.2
  %v636 = vmul.f32 %v396, 0.2
  %v637 = vmul.f32 %v401, 0.2
  %v638 = vmul.f32 %v404, 0.2
  %v639 = vmul.f32 %v409, 0.2
  %v640 = vmul.f32 %v412, 0.2
  %v641 = vmul.f32 %v417, 0.2
  %v642 = vmul.f32 %v420, 0.2
  %v643 = vmul.f32 %v425, 0.2
  %v644 = vmul.f32 %v428, 0.2
  %v645 = vmul.f32 %v433, 0.2
  %v646 = vmul.f32 %v436, 0.2
  %v647 = vmul.f32 %v441, 0.2
  %v648 = vmul.f32 %v444, 0.2
  %v649 = vmul.f32 %v449, 0.2
  %v650 = vmul.f32 %v452, 0.2
  %v651 = vmul.f32 %v457, 0.2
  %v652 = vmul.f32 %v460, 0.2
  %v653 = vmul.f32 %v465, 0.2
  %v654 = vmul.f32 %v468, 0.2
  %v655 = vmul.f32 %v473, 0.2
  %v656 = vmul.f32 %v476, 0.2
  %v657 = vmul.f32 %v481, 0.2
  %v658 = vmul.f32 %v484, 0.2
  %v659 = vmul.f32 %v489, 0.2
  %v660 = vmul.f32 %v492, 0.2
  %v661 = vmul.f32 %v497, 0.2
  %v662 = vmul.f32 %v500, 0.2
  %v663 = vmul.f32 %v505, 0.2
  %v664 = vmul.f32 %v508, 0.2
  %v665 = vmul.f32 %v513, 0.2
  %v666 = vmul.f32 %v516, 0.2
  %v667 = vmul.f32 %v521, 0.2
  %v668 = vmul.f32 %v524, 0.2
  %v669 = vmul.f32 %v529, 0.2
  %v670 = vmul.f32 %v532, 0.2
  %v671 = vmul.f32 %v537, 0.2
  %v672 = vmul.f32 %v540, 0.2
  %v673 = vmul.f32 %v545, 0.2
  %v674 = vmul.f32 %v548, 0.2
  %v675 = vmul.f32 %v553, 0.2
  %v676 = vmul.f32 %v556, 0.2
  %v677 = vmul.f32 %v561, 0.2
  %v678 = vmul.f32 %v564, 0.2
  %v679 = vmul.f32 %v569, 0.2
  %v680 = vmul.f32 %v572, 0.2
  %v681 = vmul.f32 %v577, 0.2
  %v682 = vmul.f32 %v580, 0.2
  %v683 = vmul.f32 %v585, 0.2
  %v684 = vmul.f32 %v588, 0.2
  %v685 = vmul.f32 %v593, 0.2
  %v686 = vmul.f32 %v596, 0.2
  %v687 = vmul.f32 %v601, 0.2
  %v688 = vmul.f32 %v604, 0.2
  %v689 = vmul.f32 %v609, 0.2
  %v690 = vmul.f32 %v612, 0.2
  %v691 = vmul.f32 %v617, 0.2
  %v692 = vmul.f32 %v620, 0.2
  %v693 = vmul.f32 %v625, 0.2
  %v694 = vmul.f32 %v628, 0.2
  %v695 = vmax.f32 %v377, %v631
  %v696 = vmax.f32 %v380, %v632
  %v697 = vmax.f32 %v385, %v633
  %v698 = vmax.f32 %v388, %v634
  %v699 = vmax.f32 %v393, %v635
  %v700 = vmax.f32 %v396, %v636
  %v701 = vmax.f32 %v401, %v637
  %v702 = vmax.f32 %v404, %v638
  %v703 = vmax.f32 %v409, %v639
  %v704 = vmax.f32 %v412, %v640
  %v705 = vmax.f32 %v417, %v641
  %v706 = vmax.f32 %v420, %v642
  %v707 = vmax.f32 %v425, %v643
  %v708 = vmax.f32 %v428, %v644
  %v709 = vmax.f32 %v433, %v645
  %v710 = vmax.f32 %v436, %v646
  %v711 = vmax.f32 %v441, %v647
  %v712 = vmax.f32 %v444, %v648
  %v713 = vmax.f32 %v449, %v649
  %v714 = vmax.f32 %v452, %v650
  %v715 = vmax.f32 %v457, %v651
  %v716 = vmax.f32 %v460, %v652
  %v717 = vmax.f32 %v465, %v653
  %v718 = vmax.f32 %v468, %v654
  %v719 = vmax.f32 %v473, %v655
  %v720 = vmax.f32 %v476, %v656
  %v721 = vmax.f32 %v481, %v657
  %v722 = vmax.f32 %v484, %v658
  %v723 = vmax.f32 %v489, %v659
  %v724 = vmax.f32 %v492, %v660
  %v725 = vmax.f32 %v497, %v661
  %v726 = vmax.f32 %v500, %v662
  %v727 = vmax.f32 %v505, %v663
  %v728 = vmax.f32 %v508, %v664
  %v729 = vmax.f32 %v513, %v665
  %v730 = vmax.f32 %v516, %v666
  %v731 = vmax.f32 %v521, %v667
  %v732 = vmax.f32 %v524, %v668
  %v733 = vmax.f32 %v529, %v669
  %v734 = vmax.f32 %v532, %v670
  %v735 = vmax.f32 %v537, %v671
  %v736 = vmax.f32 %v540, %v672
  %v737 = vmax.f32 %v545, %v673
  %v738 = vmax.f32 %v548, %v674
  %v739 = vmax.f32 %v553, %v675
  %v740 = vmax.f32 %v556, %v676
  %v741 = vmax.f32 %v561, %v677
  %v742 = vmax.f32 %v564, %v678
  %v743 = vmax.f32 %v569, %v679
  %v744 = vmax.f32 %v572, %v680
  %v745 = vmax.f32 %v577, %v681
  %v746 = vmax.f32 %v580, %v682
  %v747 = vmax.f32 %v585, %v683
  %v748 = vmax.f32 %v588, %v684
  %v749 = vmax.f32 %v593, %v685
  %v750 = vmax.f32 %v596, %v686
  %v751 = vmax.f32 %v601, %v687
  %v752 = vmax.f32 %v604, %v688
  %v753 = vmax.f32 %v609, %v689
  %v754 = vmax.f32 %v612, %v690
  %v755 = vmax.f32 %v617, %v691
  %v756 = vmax.f32 %v620, %v692
  %v757 = vmax.f32 %v625, %v693
  %v758 = vmax.f32 %v628, %v694
  %v759 = vpack.c.bf16 %v696, %v695
  %v760 = vpack.c.bf16 %v698, %v697
  %v761 = vpack.c.bf16 %v700, %v699
  %v762 = vpack.c.bf16 %v702, %v701
  %v763 = vpack.c.bf16 %v704, %v703
  %v764 = vpack.c.bf16 %v706, %v705
  %v765 = vpack.c.bf16 %v708, %v707
  %v766 = vpack.c.bf16 %v710, %v709
  %v767 = vpack.c.bf16 %v712, %v711
  %v768 = vpack.c.bf16 %v714, %v713
  %v769 = vpack.c.bf16 %v716, %v715
  %v770 = vpack.c.bf16 %v718, %v717
  %v771 = vpack.c.bf16 %v720, %v719
  %v772 = vpack.c.bf16 %v722, %v721
  %v773 = vpack.c.bf16 %v724, %v723
  %v774 = vpack.c.bf16 %v726, %v725
  %v775 = vpack.c.bf16 %v728, %v727
  %v776 = vpack.c.bf16 %v730, %v729
  %v777 = vpack.c.bf16 %v732, %v731
  %v778 = vpack.c.bf16 %v734, %v733
  %v779 = vpack.c.bf16 %v736, %v735
  %v780 = vpack.c.bf16 %v738, %v737
  %v781 = vpack.c.bf16 %v740, %v739
  %v782 = vpack.c.bf16 %v742, %v741
  %v783 = vpack.c.bf16 %v744, %v743
  %v784 = vpack.c.bf16 %v746, %v745
  %v785 = vpack.c.bf16 %v748, %v747
  %v786 = vpack.c.bf16 %v750, %v749
  %v787 = vpack.c.bf16 %v752, %v751
  %v788 = vpack.c.bf16 %v754, %v753
  %v789 = vpack.c.bf16 %v756, %v755
  %v790 = vpack.c.bf16 %v758, %v757
  %v823 = vunpack.c.l.b16 %v759
  %v824 = vunpack.c.h.b16 %v759
  %v825 = vunpack.c.l.b16 %v760
  %v826 = vunpack.c.h.b16 %v760
  %v827 = vunpack.c.l.b16 %v761
  %v828 = vunpack.c.h.b16 %v761
  %v829 = vunpack.c.l.b16 %v762
  %v830 = vunpack.c.h.b16 %v762
  %v831 = vunpack.c.l.b16 %v763
  %v832 = vunpack.c.h.b16 %v763
  %v833 = vunpack.c.l.b16 %v764
  %v834 = vunpack.c.h.b16 %v764
  %v835 = vunpack.c.l.b16 %v765
  %v836 = vunpack.c.h.b16 %v765
  %v837 = vunpack.c.l.b16 %v766
  %v838 = vunpack.c.h.b16 %v766
  %v839 = vunpack.c.l.b16 %v767
  %v840 = vunpack.c.h.b16 %v767
  %v841 = vunpack.c.l.b16 %v768
  %v842 = vunpack.c.h.b16 %v768
  %v843 = vunpack.c.l.b16 %v769
  %v844 = vunpack.c.h.b16 %v769
  %v845 = vunpack.c.l.b16 %v770
  %v846 = vunpack.c.h.b16 %v770
  %v847 = vunpack.c.l.b16 %v771
  %v848 = vunpack.c.h.b16 %v771
  %v849 = vunpack.c.l.b16 %v772
  %v850 = vunpack.c.h.b16 %v772
  %v851 = vunpack.c.l.b16 %v773
  %v852 = vunpack.c.h.b16 %v773
  %v853 = vunpack.c.l.b16 %v774
  %v854 = vunpack.c.h.b16 %v774
  %v855 = vunpack.c.l.b16 %v775
  %v856 = vunpack.c.h.b16 %v775
  %v857 = vunpack.c.l.b16 %v776
  %v858 = vunpack.c.h.b16 %v776
  %v859 = vunpack.c.l.b16 %v777
  %v860 = vunpack.c.h.b16 %v777
  %v861 = vunpack.c.l.b16 %v778
  %v862 = vunpack.c.h.b16 %v778
  %v863 = vunpack.c.l.b16 %v779
  %v864 = vunpack.c.h.b16 %v779
  %v865 = vunpack.c.l.b16 %v780
  %v866 = vunpack.c.h.b16 %v780
  %v867 = vunpack.c.l.b16 %v781
  %v868 = vunpack.c.h.b16 %v781
  %v869 = vunpack.c.l.b16 %v782
  %v870 = vunpack.c.h.b16 %v782
  %v871 = vunpack.c.l.b16 %v783
  %v872 = vunpack.c.h.b16 %v783
  %v873 = vunpack.c.l.b16 %v784
  %v874 = vunpack.c.h.b16 %v784
  %v875 = vunpack.c.l.b16 %v785
  %v876 = vunpack.c.h.b16 %v785
  %v877 = vunpack.c.l.b16 %v786
  %v878 = vunpack.c.h.b16 %v786
  %v879 = vunpack.c.l.b16 %v787
  %v880 = vunpack.c.h.b16 %v787
  %v881 = vunpack.c.l.b16 %v788
  %v882 = vunpack.c.h.b16 %v788
  %v883 = vunpack.c.l.b16 %v789
  %v884 = vunpack.c.h.b16 %v789
  %v885 = vunpack.c.l.b16 %v790
  %v886 = vunpack.c.h.b16 %v790
  %v887 = vpack.c.b16 %v823, %v823
  %v888 = vpack.c.b16 %v824, %v824
  %v889 = vpack.c.b16 %v825, %v825
  %v890 = vpack.c.b16 %v826, %v826
  %v891 = vpack.c.b16 %v827, %v827
  %v892 = vpack.c.b16 %v828, %v828
  %v893 = vpack.c.b16 %v829, %v829
  %v894 = vpack.c.b16 %v830, %v830
  %v895 = vpack.c.b16 %v831, %v831
  %v896 = vpack.c.b16 %v832, %v832
  %v897 = vpack.c.b16 %v833, %v833
  %v898 = vpack.c.b16 %v834, %v834
  %v899 = vpack.c.b16 %v835, %v835
  %v900 = vpack.c.b16 %v836, %v836
  %v901 = vpack.c.b16 %v837, %v837
  %v902 = vpack.c.b16 %v838, %v838
  %v903 = vpack.c.b16 %v839, %v839
  %v904 = vpack.c.b16 %v840, %v840
  %v905 = vpack.c.b16 %v841, %v841
  %v906 = vpack.c.b16 %v842, %v842
  %v907 = vpack.c.b16 %v843, %v843
  %v908 = vpack.c.b16 %v844, %v844
  %v909 = vpack.c.b16 %v845, %v845
  %v910 = vpack.c.b16 %v846, %v846
  %v911 = vpack.c.b16 %v847, %v847
  %v912 = vpack.c.b16 %v848, %v848
  %v913 = vpack.c.b16 %v849, %v849
  %v914 = vpack.c.b16 %v850, %v850
  %v915 = vpack.c.b16 %v851, %v851
  %v916 = vpack.c.b16 %v852, %v852
  %v917 = vpack.c.b16 %v853, %v853
  %v918 = vpack.c.b16 %v854, %v854
  %v919 = vpack.c.b16 %v855, %v855
  %v920 = vpack.c.b16 %v856, %v856
  %v921 = vpack.c.b16 %v857, %v857
  %v922 = vpack.c.b16 %v858, %v858
  %v923 = vpack.c.b16 %v859, %v859
  %v924 = vpack.c.b16 %v860, %v860
  %v925 = vpack.c.b16 %v861, %v861
  %v926 = vpack.c.b16 %v862, %v862
  %v927 = vpack.c.b16 %v863, %v863
  %v928 = vpack.c.b16 %v864, %v864
  %v929 = vpack.c.b16 %v865, %v865
  %v930 = vpack.c.b16 %v866, %v866
  %v931 = vpack.c.b16 %v867, %v867
  %v932 = vpack.c.b16 %v868, %v868
  %v933 = vpack.c.b16 %v869, %v869
  %v934 = vpack.c.b16 %v870, %v870
  %v935 = vpack.c.b16 %v871, %v871
  %v936 = vpack.c.b16 %v872, %v872
  %v937 = vpack.c.b16 %v873, %v873
  %v938 = vpack.c.b16 %v874, %v874
  %v939 = vpack.c.b16 %v875, %v875
  %v940 = vpack.c.b16 %v876, %v876
  %v941 = vpack.c.b16 %v877, %v877
  %v942 = vpack.c.b16 %v878, %v878
  %v943 = vpack.c.b16 %v879, %v879
  %v944 = vpack.c.b16 %v880, %v880
  %v945 = vpack.c.b16 %v881, %v881
  %v946 = vpack.c.b16 %v882, %v882
  %v947 = vpack.c.b16 %v883, %v883
  %v948 = vpack.c.b16 %v884, %v884
  %v949 = vpack.c.b16 %v885, %v885
  %v950 = vpack.c.b16 %v886, %v886
  %vm1015 = vcmask 60416
  %1016 = vst.msk [vmem:[%s3] sm:$0xf] %vm1015, %v887
  %1017 = vst.msk [vmem:[%s3 + $0x4] sm:$0xf] %vm1015, %v888
  %1018 = vst.msk [vmem:[%s3 + $0x8] sm:$0xf] %vm1015, %v889
  %1019 = vst.msk [vmem:[%s3 + $0xc] sm:$0xf] %vm1015, %v890
  %1020 = vst.msk [vmem:[%s3 + $0x10] sm:$0xf] %vm1015, %v891
  %1021 = vst.msk [vmem:[%s3 + $0x14] sm:$0xf] %vm1015, %v892
  %1022 = vst.msk [vmem:[%s3 + $0x18] sm:$0xf] %vm1015, %v893
  %1023 = vst.msk [vmem:[%s3 + $0x1c] sm:$0xf] %vm1015, %v894
  %1024 = vst.msk [vmem:[%s3 + $0x20] sm:$0xf] %vm1015, %v895
  %1025 = vst.msk [vmem:[%s3 + $0x24] sm:$0xf] %vm1015, %v896
  %1026 = vst.msk [vmem:[%s3 + $0x28] sm:$0xf] %vm1015, %v897
  %1027 = vst.msk [vmem:[%s3 + $0x2c] sm:$0xf] %vm1015, %v898
  %1028 = vst.msk [vmem:[%s3 + $0x30] sm:$0xf] %vm1015, %v899
  %1029 = vst.msk [vmem:[%s3 + $0x34] sm:$0xf] %vm1015, %v900
  %1030 = vst.msk [vmem:[%s3 + $0x38] sm:$0xf] %vm1015, %v901
  %1031 = vst.msk [vmem:[%s3 + $0x3c] sm:$0xf] %vm1015, %v902
  %1032 = vst.msk [vmem:[%s3 + $0x40] sm:$0xf] %vm1015, %v903
  %1033 = vst.msk [vmem:[%s3 + $0x44] sm:$0xf] %vm1015, %v904
  %1034 = vst.msk [vmem:[%s3 + $0x48] sm:$0xf] %vm1015, %v905
  %1035 = vst.msk [vmem:[%s3 + $0x4c] sm:$0xf] %vm1015, %v906
  %1036 = vst.msk [vmem:[%s3 + $0x50] sm:$0xf] %vm1015, %v907
  %1037 = vst.msk [vmem:[%s3 + $0x54] sm:$0xf] %vm1015, %v908
  %1038 = vst.msk [vmem:[%s3 + $0x58] sm:$0xf] %vm1015, %v909
  %1039 = vst.msk [vmem:[%s3 + $0x5c] sm:$0xf] %vm1015, %v910
  %1040 = vst.msk [vmem:[%s3 + $0x60] sm:$0xf] %vm1015, %v911
  %1041 = vst.msk [vmem:[%s3 + $0x64] sm:$0xf] %vm1015, %v912
  %1042 = vst.msk [vmem:[%s3 + $0x68] sm:$0xf] %vm1015, %v913
  %1043 = vst.msk [vmem:[%s3 + $0x6c] sm:$0xf] %vm1015, %v914
  %1044 = vst.msk [vmem:[%s3 + $0x70] sm:$0xf] %vm1015, %v915
  %1045 = vst.msk [vmem:[%s3 + $0x74] sm:$0xf] %vm1015, %v916
  %1046 = vst.msk [vmem:[%s3 + $0x78] sm:$0xf] %vm1015, %v917
  %1047 = vst.msk [vmem:[%s3 + $0x7c] sm:$0xf] %vm1015, %v918
  %1048 = vst.msk [vmem:[%s3 + $0x80] sm:$0xf] %vm1015, %v919
  %1049 = vst.msk [vmem:[%s3 + $0x84] sm:$0xf] %vm1015, %v920
  %1050 = vst.msk [vmem:[%s3 + $0x88] sm:$0xf] %vm1015, %v921
  %1051 = vst.msk [vmem:[%s3 + $0x8c] sm:$0xf] %vm1015, %v922
  %1052 = vst.msk [vmem:[%s3 + $0x90] sm:$0xf] %vm1015, %v923
  %1053 = vst.msk [vmem:[%s3 + $0x94] sm:$0xf] %vm1015, %v924
  %1054 = vst.msk [vmem:[%s3 + $0x98] sm:$0xf] %vm1015, %v925
  %1055 = vst.msk [vmem:[%s3 + $0x9c] sm:$0xf] %vm1015, %v926
  %1056 = vst.msk [vmem:[%s3 + $0xa0] sm:$0xf] %vm1015, %v927
  %1057 = vst.msk [vmem:[%s3 + $0xa4] sm:$0xf] %vm1015, %v928
  %1058 = vst.msk [vmem:[%s3 + $0xa8] sm:$0xf] %vm1015, %v929
  %1059 = vst.msk [vmem:[%s3 + $0xac] sm:$0xf] %vm1015, %v930
  %1060 = vst.msk [vmem:[%s3 + $0xb0] sm:$0xf] %vm1015, %v931
  %1061 = vst.msk [vmem:[%s3 + $0xb4] sm:$0xf] %vm1015, %v932
  %1062 = vst.msk [vmem:[%s3 + $0xb8] sm:$0xf] %vm1015, %v933
  %1063 = vst.msk [vmem:[%s3 + $0xbc] sm:$0xf] %vm1015, %v934
  %1064 = vst.msk [vmem:[%s3 + $0xc0] sm:$0xf] %vm1015, %v935
  %1065 = vst.msk [vmem:[%s3 + $0xc4] sm:$0xf] %vm1015, %v936
  %1066 = vst.msk [vmem:[%s3 + $0xc8] sm:$0xf] %vm1015, %v937
  %1067 = vst.msk [vmem:[%s3 + $0xcc] sm:$0xf] %vm1015, %v938
  %1068 = vst.msk [vmem:[%s3 + $0xd0] sm:$0xf] %vm1015, %v939
  %1069 = vst.msk [vmem:[%s3 + $0xd4] sm:$0xf] %vm1015, %v940
  %1070 = vst.msk [vmem:[%s3 + $0xd8] sm:$0xf] %vm1015, %v941
  %1071 = vst.msk [vmem:[%s3 + $0xdc] sm:$0xf] %vm1015, %v942
  %1072 = vst.msk [vmem:[%s3 + $0xe0] sm:$0xf] %vm1015, %v943
  %1073 = vst.msk [vmem:[%s3 + $0xe4] sm:$0xf] %vm1015, %v944
  %1074 = vst.msk [vmem:[%s3 + $0xe8] sm:$0xf] %vm1015, %v945
  %1075 = vst.msk [vmem:[%s3 + $0xec] sm:$0xf] %vm1015, %v946
  %1076 = vst.msk [vmem:[%s3 + $0xf0] sm:$0xf] %vm1015, %v947
  %1077 = vst.msk [vmem:[%s3 + $0xf4] sm:$0xf] %vm1015, %v948
  %1078 = vst.msk [vmem:[%s3 + $0xf8] sm:$0xf] %vm1015, %v949
  %1079 = vst.msk [vmem:[%s3 + $0xfc] sm:$0xf] %vm1015, %v950
  // Predicated region
  $region14: #{discriminator_forward.5} parent=0 // pred_check
    _
  $region15: #{discriminator_forward.5} parent=0 // pred_check_branch
    %1081 = sbr.rel (0) target = $region17
  $region16: #{discriminator_forward.5} parent=0 // pred_region
    _
  $region17: #{discriminator_forward.5} parent=0 // pred_fallthru
    _
  // Predicated region
  $region18: #{discriminator_forward.5} parent=0 // pred_check
    _
  $region19: #{discriminator_forward.5} parent=0 // pred_check_branch
    %1083 = sbr.rel (0) target = $region21
  $region20: #{discriminator_forward.5} parent=0 // pred_region
    _
  $region21: #{discriminator_forward.5} parent=0 // pred_fallthru
    _

// kernel: discriminator_forward.6
$region0: #{discriminator_forward.6}
  #allocation0 [shape = 'u32[]', space=smem, size = 0x4, offset = 0x4, fixed_abs, tag = 'smem constant byte address 0x4 - core index']
  #allocation1 [shape = 'u32[144,128]{1,0:T(1,128)}', space=vmem, size = 0x12000, scoped, tag = 'internal scratch']
  %s0 = inlined_call_operand.vmem [shape: bf16[128,128], index: 0, kind: input, shape index: {}]
  %s1 = inlined_call_operand.vmem [shape: bf16[128,16], index: 1, kind: input, shape index: {}]
  %s2 = inlined_call_operand.vmem [shape: bf16[128,16], index: 2, kind: output, shape index: {0}]
  %s3 = inlined_call_operand.vmem [shape: f32[8,16], index: 3, kind: output, shape index: {1}]
  %s4 = inlined_call_operand.vmem [shape: f32[8,16], index: 4, kind: output, shape index: {2}]
  %5 = xla_tuple %s2, %s3, %s4
  %s6 = sld [smem:[#allocation0]]
  $region34: #{discriminator_forward.6} parent=0
    _
  %s8 = ssub.s32 1, %s6
  %s9 = scalar_select 0, %s8, %s6
  // Predicated region
  $region2: #{discriminator_forward.6} parent=0 // pred_check
    _
  $region3: #{discriminator_forward.6} parent=0 // pred_check_branch
    %11 = sbr.rel (0) target = $region5
  $region4: #{discriminator_forward.6} parent=0 // pred_region
    _
  $region5: #{discriminator_forward.6} parent=0 // pred_fallthru
    _
  // Predicated region
  $region6: #{discriminator_forward.6} parent=0 // pred_check
    _
  $region7: #{discriminator_forward.6} parent=0 // pred_check_branch
    %13 = sbr.rel (0) target = $region9
  $region8: #{discriminator_forward.6} parent=0 // pred_region
    _
  $region9: #{discriminator_forward.6} parent=0 // pred_fallthru
    _
  %v15 = vld [vmem:[%s0] sm:$0xf]
  %v16 = vld [vmem:[%s0 + $0x4] sm:$0xf]
  %v17 = vld [vmem:[%s0 + $0x8] sm:$0xf]
  %v18 = vld [vmem:[%s0 + $0xc] sm:$0xf]
  %v19 = vld [vmem:[%s0 + $0x10] sm:$0xf]
  %v20 = vld [vmem:[%s0 + $0x14] sm:$0xf]
  %v21 = vld [vmem:[%s0 + $0x18] sm:$0xf]
  %v22 = vld [vmem:[%s0 + $0x1c] sm:$0xf]
  %v23 = vld [vmem:[%s0 + $0x20] sm:$0xf]
  %v24 = vld [vmem:[%s0 + $0x24] sm:$0xf]
  %v25 = vld [vmem:[%s0 + $0x28] sm:$0xf]
  %v26 = vld [vmem:[%s0 + $0x2c] sm:$0xf]
  %v27 = vld [vmem:[%s0 + $0x30] sm:$0xf]
  %v28 = vld [vmem:[%s0 + $0x34] sm:$0xf]
  %v29 = vld [vmem:[%s0 + $0x38] sm:$0xf]
  %v30 = vld [vmem:[%s0 + $0x3c] sm:$0xf]
  %v31 = vld [vmem:[%s1] sm:$0xf]
  %v32 = vld [vmem:[%s1 + $0x4] sm:$0xf]
  %v33 = vld [vmem:[%s1 + $0x8] sm:$0xf]
  %v34 = vld [vmem:[%s1 + $0xc] sm:$0xf]
  %v35 = vld [vmem:[%s1 + $0x10] sm:$0xf]
  %v36 = vld [vmem:[%s1 + $0x14] sm:$0xf]
  %v37 = vld [vmem:[%s1 + $0x18] sm:$0xf]
  %v38 = vld [vmem:[%s1 + $0x1c] sm:$0xf]
  %v39 = vld [vmem:[%s1 + $0x20] sm:$0xf]
  %v40 = vld [vmem:[%s1 + $0x24] sm:$0xf]
  %v41 = vld [vmem:[%s1 + $0x28] sm:$0xf]
  %v42 = vld [vmem:[%s1 + $0x2c] sm:$0xf]
  %v43 = vld [vmem:[%s1 + $0x30] sm:$0xf]
  %v44 = vld [vmem:[%s1 + $0x34] sm:$0xf]
  %v45 = vld [vmem:[%s1 + $0x38] sm:$0xf]
  %v46 = vld [vmem:[%s1 + $0x3c] sm:$0xf]
  %v63 = vunpack.c.l.b16 %v15
  %v64 = vunpack.c.l.b16 %v16
  %v65 = vunpack.c.l.b16 %v17
  %v66 = vunpack.c.l.b16 %v18
  %v67 = vunpack.c.l.b16 %v19
  %v68 = vunpack.c.l.b16 %v20
  %v69 = vunpack.c.l.b16 %v21
  %v70 = vunpack.c.l.b16 %v22
  %v71 = vunpack.c.l.b16 %v23
  %v72 = vunpack.c.l.b16 %v24
  %v73 = vunpack.c.l.b16 %v25
  %v74 = vunpack.c.l.b16 %v26
  %v75 = vunpack.c.l.b16 %v27
  %v76 = vunpack.c.l.b16 %v28
  %v77 = vunpack.c.l.b16 %v29
  %v78 = vunpack.c.l.b16 %v30
  %v79 = vpack.c.b16 %v64, %v63
  %v80 = vpack.c.b16 %v66, %v65
  %v81 = vpack.c.b16 %v68, %v67
  %v82 = vpack.c.b16 %v70, %v69
  %v83 = vpack.c.b16 %v72, %v71
  %v84 = vpack.c.b16 %v74, %v73
  %v85 = vpack.c.b16 %v76, %v75
  %v86 = vpack.c.b16 %v78, %v77
  %v111 = vunpack.c.l.b16 %v31
  %v112 = vunpack.c.l.b16 %v32
  %v113 = vunpack.c.l.b16 %v33
  %v114 = vunpack.c.l.b16 %v34
  %v115 = vunpack.c.l.b16 %v35
  %v116 = vunpack.c.l.b16 %v36
  %v117 = vunpack.c.l.b16 %v37
  %v118 = vunpack.c.l.b16 %v38
  %v119 = vunpack.c.l.b16 %v39
  %v120 = vunpack.c.l.b16 %v40
  %v121 = vunpack.c.l.b16 %v41
  %v122 = vunpack.c.l.b16 %v42
  %v123 = vunpack.c.l.b16 %v43
  %v124 = vunpack.c.l.b16 %v44
  %v125 = vunpack.c.l.b16 %v45
  %v126 = vunpack.c.l.b16 %v46
  %v127 = vpack.c.b16 %v112, %v111
  %v128 = vpack.c.b16 %v114, %v113
  %v129 = vpack.c.b16 %v116, %v115
  %v130 = vpack.c.b16 %v118, %v117
  %v131 = vpack.c.b16 %v120, %v119
  %v132 = vpack.c.b16 %v122, %v121
  %v133 = vpack.c.b16 %v124, %v123
  %v134 = vpack.c.b16 %v126, %v125
  %143 = vmatprep.subr.bf16.mxu0 0
  %144 = vmatpush1.bf16.msra.mxu0 %v134
  %145 = vmatprep.subr.bf16.mxu0 0
  %146 = vmatpush1.bf16.msra.mxu0 %v133
  %147 = vmatprep.subr.bf16.mxu0 0
  %148 = vmatpush1.bf16.msra.mxu0 %v132
  %149 = vmatprep.subr.bf16.mxu0 0
  %150 = vmatpush1.bf16.msra.mxu0 %v131
  %151 = vmatprep.subr.bf16.mxu0 0
  %152 = vmatpush1.bf16.msra.mxu0 %v130
  %153 = vmatprep.subr.bf16.mxu0 0
  %154 = vmatpush1.bf16.msra.mxu0 %v129
  %155 = vmatprep.subr.bf16.mxu0 0
  %156 = vmatpush1.bf16.msra.mxu0 %v128
  %157 = vmatprep.subr.bf16.mxu0 0
  %158 = vmatpush1.bf16.msra.mxu0 %v127
  %159 = vmatprep.subr.bf16.mxu0 0
  %160 = vmatpush2.bf16.msra.mxu0 0
  %161 = vmatprep.subr.bf16.mxu0 0
  %162 = vmatpush2.bf16.msra.mxu0 0
  %163 = vmatprep.subr.bf16.mxu0 0
  %164 = vmatpush2.bf16.msra.mxu0 0
  %165 = vmatprep.subr.bf16.mxu0 0
  %166 = vmatpush2.bf16.msra.mxu0 0
  %167 = vmatprep.subr.bf16.mxu0 0
  %168 = vmatpush2.bf16.msra.mxu0 0
  %169 = vmatprep.subr.bf16.mxu0 0
  %170 = vmatpush2.bf16.msra.mxu0 0
  %171 = vmatprep.subr.bf16.mxu0 0
  %172 = vmatpush2.bf16.msra.mxu0 0
  %173 = vmatprep.subr.bf16.mxu0 0
  %174 = vmatpush2.bf16.msra.mxu0 0
  %175 = vmatprep.mubr.bf16.mxu0 0
  %176 = vmatmul.mubr.bf16.gmra.mxu0 %v79
  %v177 = vpop.f32.mrf.mxu0
  %v178 = vadd.f32 0.0, %v177
  %v179 = vpop.f32.mrf.mxu0
  %v180 = vpop.f32.mrf.mxu0
  %v181 = vadd.f32 0.0, %v180
  %v182 = vpop.f32.mrf.mxu0
  %183 = vmatprep.mubr.bf16.mxu0 0
  %184 = vmatmul.mubr.bf16.gmra.mxu0 %v80
  %v185 = vpop.f32.mrf.mxu0
  %v186 = vadd.f32 0.0, %v185
  %v187 = vpop.f32.mrf.mxu0
  %v188 = vpop.f32.mrf.mxu0
  %v189 = vadd.f32 0.0, %v188
  %v190 = vpop.f32.mrf.mxu0
  %191 = vmatprep.mubr.bf16.mxu0 0
  %192 = vmatmul.mubr.bf16.gmra.mxu0 %v81
  %v193 = vpop.f32.mrf.mxu0
  %v194 = vadd.f32 0.0, %v193
  %v195 = vpop.f32.mrf.mxu0
  %v196 = vpop.f32.mrf.mxu0
  %v197 = vadd.f32 0.0, %v196
  %v198 = vpop.f32.mrf.mxu0
  %199 = vmatprep.mubr.bf16.mxu0 0
  %200 = vmatmul.mubr.bf16.gmra.mxu0 %v82
  %v201 = vpop.f32.mrf.mxu0
  %v202 = vadd.f32 0.0, %v201
  %v203 = vpop.f32.mrf.mxu0
  %v204 = vpop.f32.mrf.mxu0
  %v205 = vadd.f32 0.0, %v204
  %v206 = vpop.f32.mrf.mxu0
  %207 = vmatprep.mubr.bf16.mxu0 0
  %208 = vmatmul.mubr.bf16.gmra.mxu0 %v83
  %v209 = vpop.f32.mrf.mxu0
  %v210 = vadd.f32 0.0, %v209
  %v211 = vpop.f32.mrf.mxu0
  %v212 = vpop.f32.mrf.mxu0
  %v213 = vadd.f32 0.0, %v212
  %v214 = vpop.f32.mrf.mxu0
  %215 = vmatprep.mubr.bf16.mxu0 0
  %216 = vmatmul.mubr.bf16.gmra.mxu0 %v84
  %v217 = vpop.f32.mrf.mxu0
  %v218 = vadd.f32 0.0, %v217
  %v219 = vpop.f32.mrf.mxu0
  %v220 = vpop.f32.mrf.mxu0
  %v221 = vadd.f32 0.0, %v220
  %v222 = vpop.f32.mrf.mxu0
  %223 = vmatprep.mubr.bf16.mxu0 0
  %224 = vmatmul.mubr.bf16.gmra.mxu0 %v85
  %v225 = vpop.f32.mrf.mxu0
  %v226 = vadd.f32 0.0, %v225
  %v227 = vpop.f32.mrf.mxu0
  %v228 = vpop.f32.mrf.mxu0
  %v229 = vadd.f32 0.0, %v228
  %v230 = vpop.f32.mrf.mxu0
  %231 = vmatprep.mubr.bf16.mxu0 0
  %232 = vmatmul.mubr.bf16.gmra.mxu0 %v86
  %v233 = vpop.f32.mrf.mxu0
  %v234 = vadd.f32 0.0, %v233
  %v235 = vpop.f32.mrf.mxu0
  %v236 = vpop.f32.mrf.mxu0
  %v237 = vadd.f32 0.0, %v236
  %v238 = vpop.f32.mrf.mxu0
  %239 = vdwg.mxu0
  %v240 = vlaneseq
  %v241 = vshrl.u32 %v240, 7
  %v242 = vadd.s32 %v241, 8
  %v243 = vadd.s32 %v241, 16
  %v244 = vadd.s32 %v241, 24
  %v245 = vadd.s32 %v241, 32
  %v246 = vadd.s32 %v241, 40
  %v247 = vadd.s32 %v241, 48
  %v248 = vadd.s32 %v241, 56
  %v249 = vadd.s32 %v241, 64
  %v250 = vadd.s32 %v241, 72
  %v251 = vadd.s32 %v241, 80
  %v252 = vadd.s32 %v241, 88
  %v253 = vadd.s32 %v241, 96
  %v254 = vadd.s32 %v241, 104
  %v255 = vadd.s32 %v241, 112
  %v256 = vadd.s32 %v241, 120
  %s257 = smul.u32 0, 128
  %v258 = vstv %s257
  %v259 = vadd.s32 %v241, %v258
  %v260 = vadd.s32 %v242, %v258
  %v261 = vadd.s32 %v243, %v258
  %v262 = vadd.s32 %v244, %v258
  %v263 = vadd.s32 %v245, %v258
  %v264 = vadd.s32 %v246, %v258
  %v265 = vadd.s32 %v247, %v258
  %v266 = vadd.s32 %v248, %v258
  %v267 = vadd.s32 %v249, %v258
  %v268 = vadd.s32 %v250, %v258
  %v269 = vadd.s32 %v251, %v258
  %v270 = vadd.s32 %v252, %v258
  %v271 = vadd.s32 %v253, %v258
  %v272 = vadd.s32 %v254, %v258
  %v273 = vadd.s32 %v255, %v258
  %v274 = vadd.s32 %v256, %v258
  %vm275 = vcmp.lt.s32.totalorder %v259, 128
  %vm276 = vcmp.lt.s32.totalorder %v260, 128
  %vm277 = vcmp.lt.s32.totalorder %v261, 128
  %vm278 = vcmp.lt.s32.totalorder %v262, 128
  %vm279 = vcmp.lt.s32.totalorder %v263, 128
  %vm280 = vcmp.lt.s32.totalorder %v264, 128
  %vm281 = vcmp.lt.s32.totalorder %v265, 128
  %vm282 = vcmp.lt.s32.totalorder %v266, 128
  %vm283 = vcmp.lt.s32.totalorder %v267, 128
  %vm284 = vcmp.lt.s32.totalorder %v268, 128
  %vm285 = vcmp.lt.s32.totalorder %v269, 128
  %vm286 = vcmp.lt.s32.totalorder %v270, 128
  %vm287 = vcmp.lt.s32.totalorder %v271, 128
  %vm288 = vcmp.lt.s32.totalorder %v272, 128
  %vm289 = vcmp.lt.s32.totalorder %v273, 128
  %vm290 = vcmp.lt.s32.totalorder %v274, 128
  %v291 = vsel %vm275, 1, 0
  %v292 = vsel %vm276, 1, 0
  %v293 = vsel %vm277, 1, 0
  %v294 = vsel %vm278, 1, 0
  %v295 = vsel %vm279, 1, 0
  %v296 = vsel %vm280, 1, 0
  %v297 = vsel %vm281, 1, 0
  %v298 = vsel %vm282, 1, 0
  %v299 = vsel %vm283, 1, 0
  %v300 = vsel %vm284, 1, 0
  %v301 = vsel %vm285, 1, 0
  %v302 = vsel %vm286, 1, 0
  %v303 = vsel %vm287, 1, 0
  %v304 = vsel %vm288, 1, 0
  %v305 = vsel %vm289, 1, 0
  %v306 = vsel %vm290, 1, 0
  %v307 = vcvt.s32.f32 %v291
  %v308 = vcvt.s32.f32 %v292
  %v309 = vcvt.s32.f32 %v293
  %v310 = vcvt.s32.f32 %v294
  %v311 = vcvt.s32.f32 %v295
  %v312 = vcvt.s32.f32 %v296
  %v313 = vcvt.s32.f32 %v297
  %v314 = vcvt.s32.f32 %v298
  %v315 = vcvt.s32.f32 %v299
  %v316 = vcvt.s32.f32 %v300
  %v317 = vcvt.s32.f32 %v301
  %v318 = vcvt.s32.f32 %v302
  %v319 = vcvt.s32.f32 %v303
  %v320 = vcvt.s32.f32 %v304
  %v321 = vcvt.s32.f32 %v305
  %v322 = vcvt.s32.f32 %v306
  %v323 = vmul.f32 %v178, %v307
  %v324 = vmul.f32 %v181, %v308
  %v325 = vmul.f32 %v186, %v309
  %v326 = vmul.f32 %v189, %v310
  %v327 = vmul.f32 %v194, %v311
  %v328 = vmul.f32 %v197, %v312
  %v329 = vmul.f32 %v202, %v313
  %v330 = vmul.f32 %v205, %v314
  %v331 = vmul.f32 %v210, %v315
  %v332 = vmul.f32 %v213, %v316
  %v333 = vmul.f32 %v218, %v317
  %v334 = vmul.f32 %v221, %v318
  %v335 = vmul.f32 %v226, %v319
  %v336 = vmul.f32 %v229, %v320
  %v337 = vmul.f32 %v234, %v321
  %v338 = vmul.f32 %v237, %v322
  %vm339 = vcmask 130048
  %v340 = vsel %vm339, %v323, 0.0
  %v341 = vsel %vm339, %v324, 0.0
  %v342 = vadd.f32 %v340, %v341
  %v343 = vrot.slane %v342, 4
  %v344 = vadd.f32 %v342, %v343
  %v345 = vrot.slane %v344, 2
  %v346 = vadd.f32 %v344, %v345
  %v347 = vrot.slane %v346, 1
  %v348 = vadd.f32 %v346, %v347
  %v349 = vsel %vm339, %v325, 0.0
  %v350 = vsel %vm339, %v326, 0.0
  %v351 = vadd.f32 %v349, %v350
  %v352 = vrot.slane %v351, 4
  %v353 = vadd.f32 %v351, %v352
  %v354 = vrot.slane %v353, 2
  %v355 = vadd.f32 %v353, %v354
  %v356 = vrot.slane %v355, 1
  %v357 = vadd.f32 %v355, %v356
  %v358 = vsel %vm339, %v327, 0.0
  %v359 = vsel %vm339, %v328, 0.0
  %v360 = vadd.f32 %v358, %v359
  %v361 = vrot.slane %v360, 4
  %v362 = vadd.f32 %v360, %v361
  %v363 = vrot.slane %v362, 2
  %v364 = vadd.f32 %v362, %v363
  %v365 = vrot.slane %v364, 1
  %v366 = vadd.f32 %v364, %v365
  %v367 = vsel %vm339, %v329, 0.0
  %v368 = vsel %vm339, %v330, 0.0
  %v369 = vadd.f32 %v367, %v368
  %v370 = vrot.slane %v369, 4
  %v371 = vadd.f32 %v369, %v370
  %v372 = vrot.slane %v371, 2
  %v373 = vadd.f32 %v371, %v372
  %v374 = vrot.slane %v373, 1
  %v375 = vadd.f32 %v373, %v374
  %v376 = vsel %vm339, %v331, 0.0
  %v377 = vsel %vm339, %v332, 0.0
  %v378 = vadd.f32 %v376, %v377
  %v379 = vrot.slane %v378, 4
  %v380 = vadd.f32 %v378, %v379
  %v381 = vrot.slane %v380, 2
  %v382 = vadd.f32 %v380, %v381
  %v383 = vrot.slane %v382, 1
  %v384 = vadd.f32 %v382, %v383
  %v385 = vsel %vm339, %v333, 0.0
  %v386 = vsel %vm339, %v334, 0.0
  %v387 = vadd.f32 %v385, %v386
  %v388 = vrot.slane %v387, 4
  %v389 = vadd.f32 %v387, %v388
  %v390 = vrot.slane %v389, 2
  %v391 = vadd.f32 %v389, %v390
  %v392 = vrot.slane %v391, 1
  %v393 = vadd.f32 %v391, %v392
  %v394 = vsel %vm339, %v335, 0.0
  %v395 = vsel %vm339, %v336, 0.0
  %v396 = vadd.f32 %v394, %v395
  %v397 = vrot.slane %v396, 4
  %v398 = vadd.f32 %v396, %v397
  %v399 = vrot.slane %v398, 2
  %v400 = vadd.f32 %v398, %v399
  %v401 = vrot.slane %v400, 1
  %v402 = vadd.f32 %v400, %v401
  %v403 = vsel %vm339, %v337, 0.0
  %v404 = vsel %vm339, %v338, 0.0
  %v405 = vadd.f32 %v403, %v404
  %v406 = vrot.slane %v405, 4
  %v407 = vadd.f32 %v405, %v406
  %v408 = vrot.slane %v407, 2
  %v409 = vadd.f32 %v407, %v408
  %v410 = vrot.slane %v409, 1
  %v411 = vadd.f32 %v409, %v410
  %vm420 = vcmask 1041409
  %v421 = vsel %vm420, %v357, %v348
  %vm422 = vcmask 1042434
  %v423 = vsel %vm422, %v366, %v421
  %vm424 = vcmask 1043459
  %v425 = vsel %vm424, %v375, %v423
  %vm426 = vcmask 1044484
  %v427 = vsel %vm426, %v384, %v425
  %vm428 = vcmask 1045509
  %v429 = vsel %vm428, %v393, %v427
  %vm430 = vcmask 1046534
  %v431 = vsel %vm430, %v402, %v429
  %vm432 = vcmask 1047559
  %v433 = vsel %vm432, %v411, %v431
  %435 = vst.msk [vmem:[%s3] sm:$0xff] %vm339, %v433
  %v436 = vmul.f32 %v323, %v323
  %v437 = vmul.f32 %v324, %v324
  %v438 = vmul.f32 %v325, %v325
  %v439 = vmul.f32 %v326, %v326
  %v440 = vmul.f32 %v327, %v327
  %v441 = vmul.f32 %v328, %v328
  %v442 = vmul.f32 %v329, %v329
  %v443 = vmul.f32 %v330, %v330
  %v444 = vmul.f32 %v331, %v331
  %v445 = vmul.f32 %v332, %v332
  %v446 = vmul.f32 %v333, %v333
  %v447 = vmul.f32 %v334, %v334
  %v448 = vmul.f32 %v335, %v335
  %v449 = vmul.f32 %v336, %v336
  %v450 = vmul.f32 %v337, %v337
  %v451 = vmul.f32 %v338, %v338
  %v452 = vsel %vm339, %v436, 0.0
  %v453 = vsel %vm339, %v437, 0.0
  %v454 = vadd.f32 %v452, %v453
  %v455 = vrot.slane %v454, 4
  %v456 = vadd.f32 %v454, %v455
  %v457 = vrot.slane %v456, 2
  %v458 = vadd.f32 %v456, %v457
  %v459 = vrot.slane %v458, 1
  %v460 = vadd.f32 %v458, %v459
  %v461 = vsel %vm339, %v438, 0.0
  %v462 = vsel %vm339, %v439, 0.0
  %v463 = vadd.f32 %v461, %v462
  %v464 = vrot.slane %v463, 4
  %v465 = vadd.f32 %v463, %v464
  %v466 = vrot.slane %v465, 2
  %v467 = vadd.f32 %v465, %v466
  %v468 = vrot.slane %v467, 1
  %v469 = vadd.f32 %v467, %v468
  %v470 = vsel %vm339, %v440, 0.0
  %v471 = vsel %vm339, %v441, 0.0
  %v472 = vadd.f32 %v470, %v471
  %v473 = vrot.slane %v472, 4
  %v474 = vadd.f32 %v472, %v473
  %v475 = vrot.slane %v474, 2
  %v476 = vadd.f32 %v474, %v475
  %v477 = vrot.slane %v476, 1
  %v478 = vadd.f32 %v476, %v477
  %v479 = vsel %vm339, %v442, 0.0
  %v480 = vsel %vm339, %v443, 0.0
  %v481 = vadd.f32 %v479, %v480
  %v482 = vrot.slane %v481, 4
  %v483 = vadd.f32 %v481, %v482
  %v484 = vrot.slane %v483, 2
  %v485 = vadd.f32 %v483, %v484
  %v486 = vrot.slane %v485, 1
  %v487 = vadd.f32 %v485, %v486
  %v488 = vsel %vm339, %v444, 0.0
  %v489 = vsel %vm339, %v445, 0.0
  %v490 = vadd.f32 %v488, %v489
  %v491 = vrot.slane %v490, 4
  %v492 = vadd.f32 %v490, %v491
  %v493 = vrot.slane %v492, 2
  %v494 = vadd.f32 %v492, %v493
  %v495 = vrot.slane %v494, 1
  %v496 = vadd.f32 %v494, %v495
  %v497 = vsel %vm339, %v446, 0.0
  %v498 = vsel %vm339, %v447, 0.0
  %v499 = vadd.f32 %v497, %v498
  %v500 = vrot.slane %v499, 4
  %v501 = vadd.f32 %v499, %v500
  %v502 = vrot.slane %v501, 2
  %v503 = vadd.f32 %v501, %v502
  %v504 = vrot.slane %v503, 1
  %v505 = vadd.f32 %v503, %v504
  %v506 = vsel %vm339, %v448, 0.0
  %v507 = vsel %vm339, %v449, 0.0
  %v508 = vadd.f32 %v506, %v507
  %v509 = vrot.slane %v508, 4
  %v510 = vadd.f32 %v508, %v509
  %v511 = vrot.slane %v510, 2
  %v512 = vadd.f32 %v510, %v511
  %v513 = vrot.slane %v512, 1
  %v514 = vadd.f32 %v512, %v513
  %v515 = vsel %vm339, %v450, 0.0
  %v516 = vsel %vm339, %v451, 0.0
  %v517 = vadd.f32 %v515, %v516
  %v518 = vrot.slane %v517, 4
  %v519 = vadd.f32 %v517, %v518
  %v520 = vrot.slane %v519, 2
  %v521 = vadd.f32 %v519, %v520
  %v522 = vrot.slane %v521, 1
  %v523 = vadd.f32 %v521, %v522
  %v532 = vsel %vm420, %v469, %v460
  %v533 = vsel %vm422, %v478, %v532
  %v534 = vsel %vm424, %v487, %v533
  %v535 = vsel %vm426, %v496, %v534
  %v536 = vsel %vm428, %v505, %v535
  %v537 = vsel %vm430, %v514, %v536
  %v538 = vsel %vm432, %v523, %v537
  %540 = vst.msk [vmem:[%s4] sm:$0xff] %vm339, %v538
  %v541 = vpack.c.bf16 %v181, %v178
  %v542 = vpack.c.bf16 %v189, %v186
  %v543 = vpack.c.bf16 %v197, %v194
  %v544 = vpack.c.bf16 %v205, %v202
  %v545 = vpack.c.bf16 %v213, %v210
  %v546 = vpack.c.bf16 %v221, %v218
  %v547 = vpack.c.bf16 %v229, %v226
  %v548 = vpack.c.bf16 %v237, %v234
  %v557 = vunpack.c.l.b16 %v541
  %v558 = vunpack.c.h.b16 %v541
  %v559 = vunpack.c.l.b16 %v542
  %v560 = vunpack.c.h.b16 %v542
  %v561 = vunpack.c.l.b16 %v543
  %v562 = vunpack.c.h.b16 %v543
  %v563 = vunpack.c.l.b16 %v544
  %v564 = vunpack.c.h.b16 %v544
  %v565 = vunpack.c.l.b16 %v545
  %v566 = vunpack.c.h.b16 %v545
  %v567 = vunpack.c.l.b16 %v546
  %v568 = vunpack.c.h.b16 %v546
  %v569 = vunpack.c.l.b16 %v547
  %v570 = vunpack.c.h.b16 %v547
  %v571 = vunpack.c.l.b16 %v548
  %v572 = vunpack.c.h.b16 %v548
  %v573 = vpack.c.b16 %v557, %v557
  %v574 = vpack.c.b16 %v558, %v558
  %v575 = vpack.c.b16 %v559, %v559
  %v576 = vpack.c.b16 %v560, %v560
  %v577 = vpack.c.b16 %v561, %v561
  %v578 = vpack.c.b16 %v562, %v562
  %v579 = vpack.c.b16 %v563, %v563
  %v580 = vpack.c.b16 %v564, %v564
  %v581 = vpack.c.b16 %v565, %v565
  %v582 = vpack.c.b16 %v566, %v566
  %v583 = vpack.c.b16 %v567, %v567
  %v584 = vpack.c.b16 %v568, %v568
  %v585 = vpack.c.b16 %v569, %v569
  %v586 = vpack.c.b16 %v570, %v570
  %v587 = vpack.c.b16 %v571, %v571
  %v588 = vpack.c.b16 %v572, %v572
  %vm605 = vcmask 125952
  %606 = vst.msk [vmem:[%s2] sm:$0xf] %vm605, %v573
  %607 = vst.msk [vmem:[%s2 + $0x4] sm:$0xf] %vm605, %v574
  %608 = vst.msk [vmem:[%s2 + $0x8] sm:$0xf] %vm605, %v575
  %609 = vst.msk [vmem:[%s2 + $0xc] sm:$0xf] %vm605, %v576
  %610 = vst.msk [vmem:[%s2 + $0x10] sm:$0xf] %vm605, %v577
  %611 = vst.msk [vmem:[%s2 + $0x14] sm:$0xf] %vm605, %v578
  %612 = vst.msk [vmem:[%s2 + $0x18] sm:$0xf] %vm605, %v579
  %613 = vst.msk [vmem:[%s2 + $0x1c] sm:$0xf] %vm605, %v580
  %614 = vst.msk [vmem:[%s2 + $0x20] sm:$0xf] %vm605, %v581
  %615 = vst.msk [vmem:[%s2 + $0x24] sm:$0xf] %vm605, %v582
  %616 = vst.msk [vmem:[%s2 + $0x28] sm:$0xf] %vm605, %v583
  %617 = vst.msk [vmem:[%s2 + $0x2c] sm:$0xf] %vm605, %v584
  %618 = vst.msk [vmem:[%s2 + $0x30] sm:$0xf] %vm605, %v585
  %619 = vst.msk [vmem:[%s2 + $0x34] sm:$0xf] %vm605, %v586
  %620 = vst.msk [vmem:[%s2 + $0x38] sm:$0xf] %vm605, %v587
  %621 = vst.msk [vmem:[%s2 + $0x3c] sm:$0xf] %vm605, %v588
  // Predicated region
  $region10: #{discriminator_forward.6} parent=0 // pred_check
    _
  $region11: #{discriminator_forward.6} parent=0 // pred_check_branch
    %623 = sbr.rel (0) target = $region13
  $region12: #{discriminator_forward.6} parent=0 // pred_region
    _
  $region13: #{discriminator_forward.6} parent=0 // pred_fallthru
    _
  // Predicated region
  $region14: #{discriminator_forward.6} parent=0 // pred_check
    _
  $region15: #{discriminator_forward.6} parent=0 // pred_check_branch
    %625 = sbr.rel (0) target = $region17
  $region16: #{discriminator_forward.6} parent=0 // pred_region
    _
  $region17: #{discriminator_forward.6} parent=0 // pred_fallthru
    _
  // Predicated region
  $region18: #{discriminator_forward.6} parent=0 // pred_check
    _
  $region19: #{discriminator_forward.6} parent=0 // pred_check_branch
    %627 = sbr.rel (0) target = $region21
  $region20: #{discriminator_forward.6} parent=0 // pred_region
    _
  $region21: #{discriminator_forward.6} parent=0 // pred_fallthru
    _
  // Predicated region
  $region22: #{discriminator_forward.6} parent=0 // pred_check
    _
  $region23: #{discriminator_forward.6} parent=0 // pred_check_branch
    %629 = sbr.rel (0) target = $region25
  $region24: #{discriminator_forward.6} parent=0 // pred_region
    _
  $region25: #{discriminator_forward.6} parent=0 // pred_fallthru
    _
  // Predicated region
  $region26: #{discriminator_forward.6} parent=0 // pred_check
    _
  $region27: #{discriminator_forward.6} parent=0 // pred_check_branch
    %631 = sbr.rel (0) target = $region29
  $region28: #{discriminator_forward.6} parent=0 // pred_region
    _
  $region29: #{discriminator_forward.6} parent=0 // pred_fallthru
    _
  // Predicated region
  $region30: #{discriminator_forward.6} parent=0 // pred_check
    _
  $region31: #{discriminator_forward.6} parent=0 // pred_check_branch
    %633 = sbr.rel (0) target = $region33
  $region32: #{discriminator_forward.6} parent=0 // pred_region
    _
  $region33: #{discriminator_forward.6} parent=0 // pred_fallthru
    _

// kernel: tile.33
$region0: #{tile.33}
  #allocation0 [shape = 's32[1]{0}', space=sflag, size = 0x4, scoped, tag = 'scoped memory for tile.33']
  %s0 = inlined_call_operand.vmem [shape: f32[16], index: 0, kind: input, shape index: {}]
  %s1 = inlined_call_operand.vmem [shape: f32[16,16], index: 1, kind: output, shape index: {}]
  // Predicated region
  $region2: #{tile.33} parent=0 // pred_check
    _
  $region3: #{tile.33} parent=0 // pred_check_branch
    %3 = sbr.rel (0) target = $region5
  $region4: #{tile.33} parent=0 // pred_region
    _
  $region5: #{tile.33} parent=0 // pred_fallthru
    _
  %v4 = vld [vmem:[%s0] ss:$0 sm:$0xff]
  %5 = vst [vmem:[%s1] sm:$0xff] %v4
  %s6 = scalar_lea.vmem %s1, 8
  %7 = vst [vmem:[%s6] sm:$0xff] %v4

// kernel: tile.38
$region0: #{tile.38}
  %s0 = inlined_call_operand.vmem [shape: f32[16,16], index: 0, kind: input, shape index: {}]
  %s1 = inlined_call_operand.vmem [shape: f32[1,256], index: 1, kind: output, shape index: {}]
  $region1: #{tile.38} parent=0
    #allocation0 [shape = 'u8[8192]{0}', space=vmem, size = 0x2000, scoped, tag = 'scoped mem for output reshape']
    %s2 = smov 3
    %v3 = vld [vmem:[%s0] ss:$8 sm:%s2]
    %vm4 = vcmask 130048
    %5 = vst.msk [vmem:[#allocation0] ss:$8 sm:$0x3] %vm4, %v3
    %s6 = scalar_lea.vmem %s0, 7
    %s7 = smov 3
    %v8 = vld [vmem:[%s6] ss:$8 sm:%s7]
    %9 = vrot.lane.b32.xlu0 %v8, 112
    %v10 = vpop.permute.xlu0 %9
    %vm11 = vcmask 1048448
    %12 = vst.msk [vmem:[#allocation0] ss:$8 sm:$0x3] %vm11, %v10
    %s13 = scalar_lea.vmem %s0, 6
    %s14 = smov 3
    %v15 = vld [vmem:[%s13] ss:$8 sm:%s14]
    %16 = vrot.lane.b32.xlu0 %v15, 96
    %v17 = vpop.permute.xlu0 %16
    %vm18 = vcmask 917248
    %19 = vst.msk [vmem:[#allocation0] ss:$8 sm:$0x3] %vm18, %v17
    %s20 = scalar_lea.vmem %s0, 5
    %s21 = smov 3
    %v22 = vld [vmem:[%s20] ss:$8 sm:%s21]
    %23 = vrot.lane.b32.xlu0 %v22, 80
    %v24 = vpop.permute.xlu0 %23
    %vm25 = vcmask 786048
    %26 = vst.msk [vmem:[#allocation0] ss:$8 sm:$0x3] %vm25, %v24
    %s27 = scalar_lea.vmem %s0, 4
    %s28 = smov 3
    %v29 = vld [vmem:[%s27] ss:$8 sm:%s28]
    %30 = vrot.lane.b32.xlu0 %v29, 64
    %v31 = vpop.permute.xlu0 %30
    %vm32 = vcmask 654848
    %33 = vst.msk [vmem:[#allocation0] ss:$8 sm:$0x3] %vm32, %v31
    %s34 = scalar_lea.vmem %s0, 3
    %s35 = smov 3
    %v36 = vld [vmem:[%s34] ss:$8 sm:%s35]
    %37 = vrot.lane.b32.xlu0 %v36, 48
    %v38 = vpop.permute.xlu0 %37
    %vm39 = vcmask 523648
    %40 = vst.msk [vmem:[#allocation0] ss:$8 sm:$0x3] %vm39, %v38
    %s41 = scalar_lea.vmem %s0, 2
    %s42 = smov 3
    %v43 = vld [vmem:[%s41] ss:$8 sm:%s42]
    %44 = vrot.lane.b32.xlu0 %v43, 32
    %v45 = vpop.permute.xlu0 %44
    %vm46 = vcmask 392448
    %47 = vst.msk [vmem:[#allocation0] ss:$8 sm:$0x3] %vm46, %v45
    %s48 = scalar_lea.vmem %s0, 1
    %s49 = smov 3
    %v50 = vld [vmem:[%s48] ss:$8 sm:%s49]
    %51 = vrot.lane.b32.xlu0 %v50, 16
    %v52 = vpop.permute.xlu0 %51
    %vm53 = vcmask 261248
    %54 = vst.msk [vmem:[#allocation0] ss:$8 sm:$0x3] %vm53, %v52
    %s56 = sshll.u32 1, 1
    %s57 = ssub.s32 %s56, 1
    %v59 = vld [vmem:[#allocation0] sm:%s57]
    %s60 = sshll.u32 1, 1
    %s61 = ssub.s32 %s60, 1
    %62 = vst [vmem:[%s1] sm:%s61] %v59
    %s63 = scalar_lea.vmem [#allocation0], 8
    %v64 = vld [vmem:[%s63] sm:%s57]
    %s65 = sshll.u32 1, 1
    %s66 = ssub.s32 %s65, 1
    %s67 = scalar_lea.vmem %s1, 1
    %68 = vst [vmem:[%s67] sm:%s66] %v64

// kernel: tile.43
$region0: #{tile.43}
  #allocation0 [shape = 's32[1]{0}', space=sflag, size = 0x4, scoped, tag = 'scoped memory for tile.43']
  %s0 = inlined_call_operand.vmem [shape: f32[32], index: 0, kind: input, shape index: {}]
  %s1 = inlined_call_operand.vmem [shape: f32[16,32], index: 1, kind: output, shape index: {}]
  // Predicated region
  $region2: #{tile.43} parent=0 // pred_check
    _
  $region3: #{tile.43} parent=0 // pred_check_branch
    %3 = sbr.rel (0) target = $region5
  $region4: #{tile.43} parent=0 // pred_region
    _
  $region5: #{tile.43} parent=0 // pred_fallthru
    _
  %v4 = vld [vmem:[%s0] ss:$0 sm:$0xff]
  %5 = vst [vmem:[%s1] sm:$0xff] %v4
  %s6 = scalar_lea.vmem %s1, 8
  %7 = vst [vmem:[%s6] sm:$0xff] %v4

// kernel: tile.48
$region0: #{tile.48}
  %s0 = inlined_call_operand.vmem [shape: f32[16,32], index: 0, kind: input, shape index: {}]
  %s1 = inlined_call_operand.vmem [shape: f32[1,512], index: 1, kind: output, shape index: {}]
  $region1: #{tile.48} parent=0
    #allocation0 [shape = 'u8[16384]{0}', space=vmem, size = 0x4000, scoped, tag = 'scoped mem for output reshape']
    %v2 = vld [vmem:[%s0] ss:$4 sm:$0xf]
    %vm3 = vcmask 261120
    %4 = vst.msk [vmem:[#allocation0] ss:$8 sm:$0xf] %vm3, %v2
    %s5 = scalar_lea.vmem %s0, 3
    %v6 = vld [vmem:[%s5] ss:$4 sm:$0xf]
    %7 = vrot.lane.b32.xlu0 %v6, 96
    %v8 = vpop.permute.xlu0 %7
    %vm9 = vcmask 1048320
    %10 = vst.msk [vmem:[#allocation0] ss:$8 sm:$0xf] %vm9, %v8
    %s11 = scalar_lea.vmem %s0, 2
    %v12 = vld [vmem:[%s11] ss:$4 sm:$0xf]
    %13 = vrot.lane.b32.xlu0 %v12, 64
    %v14 = vpop.permute.xlu0 %13
    %vm15 = vcmask 785920
    %16 = vst.msk [vmem:[#allocation0] ss:$8 sm:$0xf] %vm15, %v14
    %s17 = scalar_lea.vmem %s0, 1
    %v18 = vld [vmem:[%s17] ss:$4 sm:$0xf]
    %19 = vrot.lane.b32.xlu0 %v18, 32
    %v20 = vpop.permute.xlu0 %19
    %vm21 = vcmask 523520
    %22 = vst.msk [vmem:[#allocation0] ss:$8 sm:$0xf] %vm21, %v20
    %s24 = sshll.u32 1, 1
    %s25 = ssub.s32 %s24, 1
    %v27 = vld [vmem:[#allocation0] sm:%s25]
    %s28 = sshll.u32 1, 1
    %s29 = ssub.s32 %s28, 1
    %30 = vst [vmem:[%s1] sm:%s29] %v27
    %s31 = scalar_lea.vmem [#allocation0], 8
    %v32 = vld [vmem:[%s31] sm:%s25]
    %s33 = sshll.u32 1, 1
    %s34 = ssub.s32 %s33, 1
    %s35 = scalar_lea.vmem %s1, 1
    %36 = vst [vmem:[%s35] sm:%s34] %v32
    %s37 = scalar_lea.vmem [#allocation0], 16
    %v38 = vld [vmem:[%s37] sm:%s25]
    %s39 = sshll.u32 1, 1
    %s40 = ssub.s32 %s39, 1
    %s41 = smul.addr 1, 2
    %s42 = scalar_lea.vmem %s1, %s41
    %43 = vst [vmem:[%s42] sm:%s40] %v38
    %s44 = scalar_lea.vmem [#allocation0], 24
    %v45 = vld [vmem:[%s44] sm:%s25]
    %s46 = sshll.u32 1, 1
    %s47 = ssub.s32 %s46, 1
    %s48 = smul.addr 1, 3
    %s49 = scalar_lea.vmem %s1, %s48
    %50 = vst [vmem:[%s49] sm:%s47] %v45

// kernel: discriminator_forward.7
$region0: #{discriminator_forward.7}
  #allocation0 [shape = 'u32[]', space=smem, size = 0x4, offset = 0x4, fixed_abs, tag = 'smem constant byte address 0x4 - core index']
  #allocation1 [shape = 'u32[144,128]{1,0:T(1,128)}', space=vmem, size = 0x12000, scoped, tag = 'internal scratch']
  %s0 = inlined_call_operand.vmem [shape: bf16[32,256], index: 0, kind: input, shape index: {}]
  %s1 = inlined_call_operand.vmem [shape: bf16[256,32], index: 1, kind: input, shape index: {}]
  %s2 = inlined_call_operand.vmem [shape: f32[1,256], index: 2, kind: input, shape index: {}]
  %s3 = inlined_call_operand.vmem [shape: f32[1,256], index: 3, kind: input, shape index: {}]
  %s4 = inlined_call_operand.vmem [shape: bf16[32,32], index: 4, kind: output, shape index: {0}]
  %s5 = inlined_call_operand.vmem [shape: f32[8,32], index: 5, kind: output, shape index: {1}]
  %s6 = inlined_call_operand.vmem [shape: f32[8,32], index: 6, kind: output, shape index: {2}]
  %7 = xla_tuple %s4, %s5, %s6
  %s8 = sld [smem:[#allocation0]]
  $region42: #{discriminator_forward.7} parent=0
    _
  %s10 = ssub.s32 1, %s8
  %s11 = scalar_select 0, %s10, %s8
  // Predicated region
  $region2: #{discriminator_forward.7} parent=0 // pred_check
    _
  $region3: #{discriminator_forward.7} parent=0 // pred_check_branch
    %13 = sbr.rel (0) target = $region5
  $region4: #{discriminator_forward.7} parent=0 // pred_region
    _
  $region5: #{discriminator_forward.7} parent=0 // pred_fallthru
    _
  // Predicated region
  $region6: #{discriminator_forward.7} parent=0 // pred_check
    _
  $region7: #{discriminator_forward.7} parent=0 // pred_check_branch
    %15 = sbr.rel (0) target = $region9
  $region8: #{discriminator_forward.7} parent=0 // pred_region
    _
  $region9: #{discriminator_forward.7} parent=0 // pred_fallthru
    _
  // Predicated region
  $region10: #{discriminator_forward.7} parent=0 // pred_check
    _
  $region11: #{discriminator_forward.7} parent=0 // pred_check_branch
    %17 = sbr.rel (0) target = $region13
  $region12: #{discriminator_forward.7} parent=0 // pred_region
    _
  $region13: #{discriminator_forward.7} parent=0 // pred_fallthru
    _
  // Predicated region
  $region14: #{discriminator_forward.7} parent=0 // pred_check
    _
  $region15: #{discriminator_forward.7} parent=0 // pred_check_branch
    %19 = sbr.rel (0) target = $region17
  $region16: #{discriminator_forward.7} parent=0 // pred_region
    _
  $region17: #{discriminator_forward.7} parent=0 // pred_fallthru
    _
  %v22 = vld [vmem:[%s0] sm:$0xff]
  %v23 = vld [vmem:[%s0 + $0x8] sm:$0xff]
  %v24 = vld [vmem:[%s0 + $0x10] sm:$0xff]
  %v25 = vld [vmem:[%s0 + $0x18] sm:$0xff]
  %v26 = vld [vmem:[%s2] sm:$0x3]
  %v28 = vlaneseq
  %v29 = vshrl.u32 %v28, 7
  %v30 = vsub.s32 0, %v29
  %v31 = vrot.slane %v26, %v30
  %v32 = vlaneseq
  %v33 = vshrl.u32 %v32, 7
  %v34 = vsub.s32 1, %v33
  %v35 = vrot.slane %v26, %v34
  %v38 = vpack.c.bf16 %v31, %v31
  %v39 = vpack.c.bf16 %v35, %v35
  %v41 = vpack.i.b16 %v38, %v38
  %v43 = vlaneseq
  %v44 = vshrl.u32 %v43, 7
  %v45 = vsub.s32 0, %v44
  %v46 = vrot.slane %v41, %v45
  %v48 = vpack.i.b16 %v39, %v39
  %v50 = vlaneseq
  %v51 = vshrl.u32 %v50, 7
  %v52 = vsub.s32 0, %v51
  %v53 = vrot.slane %v48, %v52
  %v56 = vunpack.c.l.b16 %v46
  %v57 = vunpack.c.l.b16 %v53
  %v58 = vpack.c.b16 %v57, %v56
  %v60 = vmul.bf16 %v22, %v58
  %v61 = vmul.bf16 %v23, %v58
  %v62 = vmul.bf16 %v24, %v58
  %v63 = vmul.bf16 %v25, %v58
  %v64 = vld [vmem:[%s3] sm:$0x3]
  %v66 = vlaneseq
  %v67 = vshrl.u32 %v66, 7
  %v68 = vsub.s32 0, %v67
  %v69 = vrot.slane %v64, %v68
  %v70 = vlaneseq
  %v71 = vshrl.u32 %v70, 7
  %v72 = vsub.s32 1, %v71
  %v73 = vrot.slane %v64, %v72
  %v76 = vpack.c.bf16 %v69, %v69
  %v77 = vpack.c.bf16 %v73, %v73
  %v79 = vpack.i.b16 %v76, %v76
  %v81 = vlaneseq
  %v82 = vshrl.u32 %v81, 7
  %v83 = vsub.s32 0, %v82
  %v84 = vrot.slane %v79, %v83
  %v86 = vpack.i.b16 %v77, %v77
  %v88 = vlaneseq
  %v89 = vshrl.u32 %v88, 7
  %v90 = vsub.s32 0, %v89
  %v91 = vrot.slane %v86, %v90
  %v94 = vunpack.c.l.b16 %v84
  %v95 = vunpack.c.l.b16 %v91
  %v96 = vpack.c.b16 %v95, %v94
  %v98 = vadd.bf16 %v60, %v96
  %v99 = vadd.bf16 %v61, %v96
  %v100 = vadd.bf16 %v62, %v96
  %v101 = vadd.bf16 %v63, %v96
  %v102 = vmul.bf16 %v98, 1045249613
  %v103 = vmul.bf16 %v99, 1045249613
  %v104 = vmul.bf16 %v100, 1045249613
  %v105 = vmul.bf16 %v101, 1045249613
  %v106 = vmax.bf16 %v98, %v102
  %v107 = vmax.bf16 %v99, %v103
  %v108 = vmax.bf16 %v100, %v104
  %v109 = vmax.bf16 %v101, %v105
  %v110 = vld [vmem:[%s1] sm:$0xf]
  %v111 = vld [vmem:[%s1 + $0x4] sm:$0xf]
  %v112 = vld [vmem:[%s1 + $0x8] sm:$0xf]
  %v113 = vld [vmem:[%s1 + $0xc] sm:$0xf]
  %v114 = vld [vmem:[%s1 + $0x10] sm:$0xf]
  %v115 = vld [vmem:[%s1 + $0x14] sm:$0xf]
  %v116 = vld [vmem:[%s1 + $0x18] sm:$0xf]
  %v117 = vld [vmem:[%s1 + $0x1c] sm:$0xf]
  %v118 = vld [vmem:[%s1 + $0x20] sm:$0xf]
  %v119 = vld [vmem:[%s1 + $0x24] sm:$0xf]
  %v120 = vld [vmem:[%s1 + $0x28] sm:$0xf]
  %v121 = vld [vmem:[%s1 + $0x2c] sm:$0xf]
  %v122 = vld [vmem:[%s1 + $0x30] sm:$0xf]
  %v123 = vld [vmem:[%s1 + $0x34] sm:$0xf]
  %v124 = vld [vmem:[%s1 + $0x38] sm:$0xf]
  %v125 = vld [vmem:[%s1 + $0x3c] sm:$0xf]
  %v126 = vld [vmem:[%s1 + $0x40] sm:$0xf]
  %v127 = vld [vmem:[%s1 + $0x44] sm:$0xf]
  %v128 = vld [vmem:[%s1 + $0x48] sm:$0xf]
  %v129 = vld [vmem:[%s1 + $0x4c] sm:$0xf]
  %v130 = vld [vmem:[%s1 + $0x50] sm:$0xf]
  %v131 = vld [vmem:[%s1 + $0x54] sm:$0xf]
  %v132 = vld [vmem:[%s1 + $0x58] sm:$0xf]
  %v133 = vld [vmem:[%s1 + $0x5c] sm:$0xf]
  %v134 = vld [vmem:[%s1 + $0x60] sm:$0xf]
  %v135 = vld [vmem:[%s1 + $0x64] sm:$0xf]
  %v136 = vld [vmem:[%s1 + $0x68] sm:$0xf]
  %v137 = vld [vmem:[%s1 + $0x6c] sm:$0xf]
  %v138 = vld [vmem:[%s1 + $0x70] sm:$0xf]
  %v139 = vld [vmem:[%s1 + $0x74] sm:$0xf]
  %v140 = vld [vmem:[%s1 + $0x78] sm:$0xf]
  %v141 = vld [vmem:[%s1 + $0x7c] sm:$0xf]
  %v146 = vunpack.c.l.b16 %v106
  %v147 = vunpack.c.h.b16 %v106
  %v148 = vunpack.c.l.b16 %v107
  %v149 = vunpack.c.h.b16 %v107
  %v150 = vunpack.c.l.b16 %v108
  %v151 = vunpack.c.h.b16 %v108
  %v152 = vunpack.c.l.b16 %v109
  %v153 = vunpack.c.h.b16 %v109
  %v154 = vpack.c.b16 %v148, %v146
  %v155 = vpack.c.b16 %v149, %v147
  %v156 = vpack.c.b16 %v152, %v150
  %v157 = vpack.c.b16 %v153, %v151
  %v194 = vunpack.c.l.b16 %v110
  %v195 = vunpack.c.l.b16 %v111
  %v196 = vunpack.c.l.b16 %v112
  %v197 = vunpack.c.l.b16 %v113
  %v198 = vunpack.c.l.b16 %v114
  %v199 = vunpack.c.l.b16 %v115
  %v200 = vunpack.c.l.b16 %v116
  %v201 = vunpack.c.l.b16 %v117
  %v202 = vunpack.c.l.b16 %v118
  %v203 = vunpack.c.l.b16 %v119
  %v204 = vunpack.c.l.b16 %v120
  %v205 = vunpack.c.l.b16 %v121
  %v206 = vunpack.c.l.b16 %v122
  %v207 = vunpack.c.l.b16 %v123
  %v208 = vunpack.c.l.b16 %v124
  %v209 = vunpack.c.l.b16 %v125
  %v210 = vunpack.c.l.b16 %v126
  %v211 = vunpack.c.l.b16 %v127
  %v212 = vunpack.c.l.b16 %v128
  %v213 = vunpack.c.l.b16 %v129
  %v214 = vunpack.c.l.b16 %v130
  %v215 = vunpack.c.l.b16 %v131
  %v216 = vunpack.c.l.b16 %v132
  %v217 = vunpack.c.l.b16 %v133
  %v218 = vunpack.c.l.b16 %v134
  %v219 = vunpack.c.l.b16 %v135
  %v220 = vunpack.c.l.b16 %v136
  %v221 = vunpack.c.l.b16 %v137
  %v222 = vunpack.c.l.b16 %v138
  %v223 = vunpack.c.l.b16 %v139
  %v224 = vunpack.c.l.b16 %v140
  %v225 = vunpack.c.l.b16 %v141
  %v226 = vpack.c.b16 %v195, %v194
  %v227 = vpack.c.b16 %v197, %v196
  %v228 = vpack.c.b16 %v199, %v198
  %v229 = vpack.c.b16 %v201, %v200
  %v230 = vpack.c.b16 %v203, %v202
  %v231 = vpack.c.b16 %v205, %v204
  %v232 = vpack.c.b16 %v207, %v206
  %v233 = vpack.c.b16 %v209, %v208
  %v234 = vpack.c.b16 %v211, %v210
  %v235 = vpack.c.b16 %v213, %v212
  %v236 = vpack.c.b16 %v215, %v214
  %v237 = vpack.c.b16 %v217, %v216
  %v238 = vpack.c.b16 %v219, %v218
  %v239 = vpack.c.b16 %v221, %v220
  %v240 = vpack.c.b16 %v223, %v222
  %v241 = vpack.c.b16 %v225, %v224
  %258 = vmatprep.subr.bf16.mxu0 0
  %259 = vmatpush1.bf16.msra.mxu0 %v233
  %260 = vmatprep.subr.bf16.mxu0 0
  %261 = vmatpush1.bf16.msra.mxu0 %v232
  %262 = vmatprep.subr.bf16.mxu0 0
  %263 = vmatpush1.bf16.msra.mxu0 %v231
  %264 = vmatprep.subr.bf16.mxu0 0
  %265 = vmatpush1.bf16.msra.mxu0 %v230
  %266 = vmatprep.subr.bf16.mxu0 0
  %267 = vmatpush1.bf16.msra.mxu0 %v229
  %268 = vmatprep.subr.bf16.mxu0 0
  %269 = vmatpush1.bf16.msra.mxu0 %v228
  %270 = vmatprep.subr.bf16.mxu0 0
  %271 = vmatpush1.bf16.msra.mxu0 %v227
  %272 = vmatprep.subr.bf16.mxu0 0
  %273 = vmatpush1.bf16.msra.mxu0 %v226
  %274 = vmatprep.subr.bf16.mxu0 0
  %275 = vmatpush2.bf16.msra.mxu0 %v241
  %276 = vmatprep.subr.bf16.mxu0 0
  %277 = vmatpush2.bf16.msra.mxu0 %v240
  %278 = vmatprep.subr.bf16.mxu0 0
  %279 = vmatpush2.bf16.msra.mxu0 %v239
  %280 = vmatprep.subr.bf16.mxu0 0
  %281 = vmatpush2.bf16.msra.mxu0 %v238
  %282 = vmatprep.subr.bf16.mxu0 0
  %283 = vmatpush2.bf16.msra.mxu0 %v237
  %284 = vmatprep.subr.bf16.mxu0 0
  %285 = vmatpush2.bf16.msra.mxu0 %v236
  %286 = vmatprep.subr.bf16.mxu0 0
  %287 = vmatpush2.bf16.msra.mxu0 %v235
  %288 = vmatprep.subr.bf16.mxu0 0
  %289 = vmatpush2.bf16.msra.mxu0 %v234
  %290 = vmatprep.mubr.bf16.mxu0 %v155
  %291 = vmatmul.mubr.bf16.gmra.mxu0 %v154
  %v292 = vpop.f32.mrf.mxu0
  %v293 = vadd.f32 0.0, %v292
  %v294 = vpop.f32.mrf.mxu0
  %v295 = vpop.f32.mrf.mxu0
  %v296 = vadd.f32 0.0, %v295
  %v297 = vpop.f32.mrf.mxu0
  %298 = vmatprep.mubr.bf16.mxu0 %v157
  %299 = vmatmul.mubr.bf16.gmra.mxu0 %v156
  %v300 = vpop.f32.mrf.mxu0
  %v301 = vadd.f32 0.0, %v300
  %v302 = vpop.f32.mrf.mxu0
  %v303 = vpop.f32.mrf.mxu0
  %v304 = vadd.f32 0.0, %v303
  %v305 = vpop.f32.mrf.mxu0
  %306 = vdwg.mxu0
  %v307 = vlaneseq
  %v308 = vshrl.u32 %v307, 7
  %v309 = vadd.s32 %v308, 8
  %v310 = vadd.s32 %v308, 16
  %v311 = vadd.s32 %v308, 24
  %s312 = smul.u32 0, 32
  %v313 = vstv %s312
  %v314 = vadd.s32 %v308, %v313
  %v315 = vadd.s32 %v309, %v313
  %v316 = vadd.s32 %v310, %v313
  %v317 = vadd.s32 %v311, %v313
  %vm318 = vcmp.lt.s32.totalorder %v314, 32
  %vm319 = vcmp.lt.s32.totalorder %v315, 32
  %vm320 = vcmp.lt.s32.totalorder %v316, 32
  %vm321 = vcmp.lt.s32.totalorder %v317, 32
  %v322 = vsel %vm318, 1, 0
  %v323 = vsel %vm319, 1, 0
  %v324 = vsel %vm320, 1, 0
  %v325 = vsel %vm321, 1, 0
  %v326 = vcvt.s32.f32 %v322
  %v327 = vcvt.s32.f32 %v323
  %v328 = vcvt.s32.f32 %v324
  %v329 = vcvt.s32.f32 %v325
  %v330 = vmul.f32 %v293, %v326
  %v331 = vmul.f32 %v296, %v327
  %v332 = vmul.f32 %v301, %v328
  %v333 = vmul.f32 %v304, %v329
  %v338 = vcombine.high %v330, %v330
  %v339 = vcombine.high %v331, %v331
  %v340 = vcombine.high %v332, %v332
  %v341 = vcombine.high %v333, %v333
  %vm346 = vcmask 257024
  %v347 = vsel %vm346, %v330, 0.0
  %v348 = vrot.slane %v347, 4
  %v349 = vadd.f32 %v347, %v348
  %v350 = vrot.slane %v349, 2
  %v351 = vadd.f32 %v349, %v350
  %v352 = vrot.slane %v351, 1
  %v353 = vadd.f32 %v351, %v352
  %v354 = vsel %vm346, %v338, 0.0
  %v355 = vrot.slane %v354, 4
  %v356 = vadd.f32 %v354, %v355
  %v357 = vrot.slane %v356, 2
  %v358 = vadd.f32 %v356, %v357
  %v359 = vrot.slane %v358, 1
  %v360 = vadd.f32 %v358, %v359
  %v361 = vsel %vm346, %v331, 0.0
  %v362 = vrot.slane %v361, 4
  %v363 = vadd.f32 %v361, %v362
  %v364 = vrot.slane %v363, 2
  %v365 = vadd.f32 %v363, %v364
  %v366 = vrot.slane %v365, 1
  %v367 = vadd.f32 %v365, %v366
  %v368 = vsel %vm346, %v339, 0.0
  %v369 = vrot.slane %v368, 4
  %v370 = vadd.f32 %v368, %v369
  %v371 = vrot.slane %v370, 2
  %v372 = vadd.f32 %v370, %v371
  %v373 = vrot.slane %v372, 1
  %v374 = vadd.f32 %v372, %v373
  %v375 = vsel %vm346, %v332, 0.0
  %v376 = vrot.slane %v375, 4
  %v377 = vadd.f32 %v375, %v376
  %v378 = vrot.slane %v377, 2
  %v379 = vadd.f32 %v377, %v378
  %v380 = vrot.slane %v379, 1
  %v381 = vadd.f32 %v379, %v380
  %v382 = vsel %vm346, %v340, 0.0
  %v383 = vrot.slane %v382, 4
  %v384 = vadd.f32 %v382, %v383
  %v385 = vrot.slane %v384, 2
  %v386 = vadd.f32 %v384, %v385
  %v387 = vrot.slane %v386, 1
  %v388 = vadd.f32 %v386, %v387
  %v389 = vsel %vm346, %v333, 0.0
  %v390 = vrot.slane %v389, 4
  %v391 = vadd.f32 %v389, %v390
  %v392 = vrot.slane %v391, 2
  %v393 = vadd.f32 %v391, %v392
  %v394 = vrot.slane %v393, 1
  %v395 = vadd.f32 %v393, %v394
  %v396 = vsel %vm346, %v341, 0.0
  %v397 = vrot.slane %v396, 4
  %v398 = vadd.f32 %v396, %v397
  %v399 = vrot.slane %v398, 2
  %v400 = vadd.f32 %v398, %v399
  %v401 = vrot.slane %v400, 1
  %v402 = vadd.f32 %v400, %v401
  %vm411 = vcmask 1041409
  %v412 = vsel %vm411, %v360, %v353
  %vm413 = vcmask 1042434
  %v414 = vsel %vm413, %v367, %v412
  %vm415 = vcmask 1043459
  %v416 = vsel %vm415, %v374, %v414
  %vm417 = vcmask 1044484
  %v418 = vsel %vm417, %v381, %v416
  %vm419 = vcmask 1045509
  %v420 = vsel %vm419, %v388, %v418
  %vm421 = vcmask 1046534
  %v422 = vsel %vm421, %v395, %v420
  %vm423 = vcmask 1047559
  %v424 = vsel %vm423, %v402, %v422
  %vm426 = vcmask 261120
  %427 = vst.msk [vmem:[%s5] sm:$0xff] %vm426, %v424
  %v428 = vmul.f32 %v330, %v330
  %v429 = vmul.f32 %v338, %v338
  %v430 = vmul.f32 %v331, %v331
  %v431 = vmul.f32 %v339, %v339
  %v432 = vmul.f32 %v332, %v332
  %v433 = vmul.f32 %v340, %v340
  %v434 = vmul.f32 %v333, %v333
  %v435 = vmul.f32 %v341, %v341
  %v436 = vsel %vm346, %v428, 0.0
  %v437 = vrot.slane %v436, 4
  %v438 = vadd.f32 %v436, %v437
  %v439 = vrot.slane %v438, 2
  %v440 = vadd.f32 %v438, %v439
  %v441 = vrot.slane %v440, 1
  %v442 = vadd.f32 %v440, %v441
  %v443 = vsel %vm346, %v429, 0.0
  %v444 = vrot.slane %v443, 4
  %v445 = vadd.f32 %v443, %v444
  %v446 = vrot.slane %v445, 2
  %v447 = vadd.f32 %v445, %v446
  %v448 = vrot.slane %v447, 1
  %v449 = vadd.f32 %v447, %v448
  %v450 = vsel %vm346, %v430, 0.0
  %v451 = vrot.slane %v450, 4
  %v452 = vadd.f32 %v450, %v451
  %v453 = vrot.slane %v452, 2
  %v454 = vadd.f32 %v452, %v453
  %v455 = vrot.slane %v454, 1
  %v456 = vadd.f32 %v454, %v455
  %v457 = vsel %vm346, %v431, 0.0
  %v458 = vrot.slane %v457, 4
  %v459 = vadd.f32 %v457, %v458
  %v460 = vrot.slane %v459, 2
  %v461 = vadd.f32 %v459, %v460
  %v462 = vrot.slane %v461, 1
  %v463 = vadd.f32 %v461, %v462
  %v464 = vsel %vm346, %v432, 0.0
  %v465 = vrot.slane %v464, 4
  %v466 = vadd.f32 %v464, %v465
  %v467 = vrot.slane %v466, 2
  %v468 = vadd.f32 %v466, %v467
  %v469 = vrot.slane %v468, 1
  %v470 = vadd.f32 %v468, %v469
  %v471 = vsel %vm346, %v433, 0.0
  %v472 = vrot.slane %v471, 4
  %v473 = vadd.f32 %v471, %v472
  %v474 = vrot.slane %v473, 2
  %v475 = vadd.f32 %v473, %v474
  %v476 = vrot.slane %v475, 1
  %v477 = vadd.f32 %v475, %v476
  %v478 = vsel %vm346, %v434, 0.0
  %v479 = vrot.slane %v478, 4
  %v480 = vadd.f32 %v478, %v479
  %v481 = vrot.slane %v480, 2
  %v482 = vadd.f32 %v480, %v481
  %v483 = vrot.slane %v482, 1
  %v484 = vadd.f32 %v482, %v483
  %v485 = vsel %vm346, %v435, 0.0
  %v486 = vrot.slane %v485, 4
  %v487 = vadd.f32 %v485, %v486
  %v488 = vrot.slane %v487, 2
  %v489 = vadd.f32 %v487, %v488
  %v490 = vrot.slane %v489, 1
  %v491 = vadd.f32 %v489, %v490
  %v500 = vsel %vm411, %v449, %v442
  %v501 = vsel %vm413, %v456, %v500
  %v502 = vsel %vm415, %v463, %v501
  %v503 = vsel %vm417, %v470, %v502
  %v504 = vsel %vm419, %v477, %v503
  %v505 = vsel %vm421, %v484, %v504
  %v506 = vsel %vm423, %v491, %v505
  %508 = vst.msk [vmem:[%s6] sm:$0xff] %vm426, %v506
  %v509 = vpack.c.bf16 %v296, %v293
  %v510 = vpack.c.bf16 %v304, %v301
  %v513 = vunpack.c.l.b16 %v509
  %v514 = vunpack.c.h.b16 %v509
  %v515 = vunpack.c.l.b16 %v510
  %v516 = vunpack.c.h.b16 %v510
  %v517 = vpack.c.b16 %v513, %v513
  %v518 = vpack.c.b16 %v514, %v514
  %v519 = vpack.c.b16 %v515, %v515
  %v520 = vpack.c.b16 %v516, %v516
  %525 = vst.msk [vmem:[%s4] sm:$0xf] %vm346, %v517
  %526 = vst.msk [vmem:[%s4 + $0x4] sm:$0xf] %vm346, %v518
  %527 = vst.msk [vmem:[%s4 + $0x8] sm:$0xf] %vm346, %v519
  %528 = vst.msk [vmem:[%s4 + $0xc] sm:$0xf] %vm346, %v520
  // Predicated region
  $region18: #{discriminator_forward.7} parent=0 // pred_check
    _
  $region19: #{discriminator_forward.7} parent=0 // pred_check_branch
    %530 = sbr.rel (0) target = $region21
  $region20: #{discriminator_forward.7} parent=0 // pred_region
    _
  $region21: #{discriminator_forward.7} parent=0 // pred_fallthru
    _
  // Predicated region
  $region22: #{discriminator_forward.7} parent=0 // pred_check
    _
  $region23: #{discriminator_forward.7} parent=0 // pred_check_branch
    %532 = sbr.rel (0) target = $region25
  $region24: #{discriminator_forward.7} parent=0 // pred_region
    _
  $region25: #{discriminator_forward.7} parent=0 // pred_fallthru
    _
  // Predicated region
  $region26: #{discriminator_forward.7} parent=0 // pred_check
    _
  $region27: #{discriminator_forward.7} parent=0 // pred_check_branch
    %534 = sbr.rel (0) target = $region29
  $region28: #{discriminator_forward.7} parent=0 // pred_region
    _
  $region29: #{discriminator_forward.7} parent=0 // pred_fallthru
    _
  // Predicated region
  $region30: #{discriminator_forward.7} parent=0 // pred_check
    _
  $region31: #{discriminator_forward.7} parent=0 // pred_check_branch
    %536 = sbr.rel (0) target = $region33
  $region32: #{discriminator_forward.7} parent=0 // pred_region
    _
  $region33: #{discriminator_forward.7} parent=0 // pred_fallthru
    _
  // Predicated region
  $region34: #{discriminator_forward.7} parent=0 // pred_check
    _
  $region35: #{discriminator_forward.7} parent=0 // pred_check_branch
    %538 = sbr.rel (0) target = $region37
  $region36: #{discriminator_forward.7} parent=0 // pred_region
    _
  $region37: #{discriminator_forward.7} parent=0 // pred_fallthru
    _
  // Predicated region
  $region38: #{discriminator_forward.7} parent=0 // pred_check
    _
  $region39: #{discriminator_forward.7} parent=0 // pred_check_branch
    %540 = sbr.rel (0) target = $region41
  $region40: #{discriminator_forward.7} parent=0 // pred_region
    _
  $region41: #{discriminator_forward.7} parent=0 // pred_fallthru
    _

// kernel: tile.53
$region0: #{tile.53}
  #allocation0 [shape = 's32[1]{0}', space=sflag, size = 0x4, scoped, tag = 'scoped memory for tile.53']
  %s0 = inlined_call_operand.vmem [shape: f32[64], index: 0, kind: input, shape index: {}]
  %s1 = inlined_call_operand.vmem [shape: f32[16,64], index: 1, kind: output, shape index: {}]
  // Predicated region
  $region2: #{tile.53} parent=0 // pred_check
    _
  $region3: #{tile.53} parent=0 // pred_check_branch
    %3 = sbr.rel (0) target = $region5
  $region4: #{tile.53} parent=0 // pred_region
    _
  $region5: #{tile.53} parent=0 // pred_fallthru
    _
  %v4 = vld [vmem:[%s0] ss:$0 sm:$0xff]
  %5 = vst [vmem:[%s1] sm:$0xff] %v4
  %s6 = scalar_lea.vmem %s1, 8
  %7 = vst [vmem:[%s6] sm:$0xff] %v4

// kernel: tile.58
$region0: #{tile.58}
  %s0 = inlined_call_operand.vmem [shape: f32[16,64], index: 0, kind: input, shape index: {}]
  %s1 = inlined_call_operand.vmem [shape: f32[1,1024], index: 1, kind: output, shape index: {}]
  $region1: #{tile.58} parent=0
    #allocation0 [shape = 'u8[32768]{0}', space=vmem, size = 0x8000, scoped, tag = 'scoped mem for output reshape']
    %v2 = vld [vmem:[%s0] ss:$2 sm:$0xff]
    %vm3 = vcmask 523264
    %4 = vst.msk [vmem:[#allocation0] ss:$8 sm:$0xf] %vm3, %v2
    %5 = vst.msk [vmem:[#allocation0] ss:$8 sm:$0xf0] %vm3, %v2
    %s6 = scalar_lea.vmem %s0, 1
    %v7 = vld [vmem:[%s6] ss:$2 sm:$0xff]
    %8 = vrot.lane.b32.xlu0 %v7, 64
    %v9 = vpop.permute.xlu0 %8
    %vm10 = vcmask 1048064
    %11 = vst.msk [vmem:[#allocation0] ss:$8 sm:$0xf] %vm10, %v9
    %12 = vst.msk [vmem:[#allocation0] ss:$8 sm:$0xf0] %vm10, %v9
    %s14 = sshll.u32 1, 1
    %s15 = ssub.s32 %s14, 1
    %v17 = vld [vmem:[#allocation0] sm:%s15]
    %s18 = sshll.u32 1, 1
    %s19 = ssub.s32 %s18, 1
    %20 = vst [vmem:[%s1] sm:%s19] %v17
    %s21 = scalar_lea.vmem [#allocation0], 8
    %v22 = vld [vmem:[%s21] sm:%s15]
    %s23 = sshll.u32 1, 1
    %s24 = ssub.s32 %s23, 1
    %s25 = scalar_lea.vmem %s1, 1
    %26 = vst [vmem:[%s25] sm:%s24] %v22
    %s27 = scalar_lea.vmem [#allocation0], 16
    %v28 = vld [vmem:[%s27] sm:%s15]
    %s29 = sshll.u32 1, 1
    %s30 = ssub.s32 %s29, 1
    %s31 = smul.addr 1, 2
    %s32 = scalar_lea.vmem %s1, %s31
    %33 = vst [vmem:[%s32] sm:%s30] %v28
    %s34 = scalar_lea.vmem [#allocation0], 24
    %v35 = vld [vmem:[%s34] sm:%s15]
    %s36 = sshll.u32 1, 1
    %s37 = ssub.s32 %s36, 1
    %s38 = smul.addr 1, 3
    %s39 = scalar_lea.vmem %s1, %s38
    %40 = vst [vmem:[%s39] sm:%s37] %v35
    %s41 = scalar_lea.vmem [#allocation0], 32
    %v42 = vld [vmem:[%s41] sm:%s15]
    %s43 = sshll.u32 1, 1
    %s44 = ssub.s32 %s43, 1
    %s45 = smul.addr 1, 4
    %s46 = scalar_lea.vmem %s1, %s45
    %47 = vst [vmem:[%s46] sm:%s44] %v42
    %s48 = scalar_lea.vmem [#allocation0], 40
    %v49 = vld [vmem:[%s48] sm:%s15]
    %s50 = sshll.u32 1, 1
    %s51 = ssub.s32 %s50, 1
    %s52 = smul.addr 1, 5
    %s53 = scalar_lea.vmem %s1, %s52
    %54 = vst [vmem:[%s53] sm:%s51] %v49
    %s55 = scalar_lea.vmem [#allocation0], 48
    %v56 = vld [vmem:[%s55] sm:%s15]
    %s57 = sshll.u32 1, 1
    %s58 = ssub.s32 %s57, 1
    %s59 = smul.addr 1, 6
    %s60 = scalar_lea.vmem %s1, %s59
    %61 = vst [vmem:[%s60] sm:%s58] %v56
    %s62 = scalar_lea.vmem [#allocation0], 56
    %v63 = vld [vmem:[%s62] sm:%s15]
    %s64 = sshll.u32 1, 1
    %s65 = ssub.s32 %s64, 1
    %s66 = smul.addr 1, 7
    %s67 = scalar_lea.vmem %s1, %s66
    %68 = vst [vmem:[%s67] sm:%s65] %v63

// kernel: discriminator_forward.8
$region0: #{discriminator_forward.8}
  #allocation0 [shape = 'u32[]', space=smem, size = 0x4, offset = 0x4, fixed_abs, tag = 'smem constant byte address 0x4 - core index']
  #allocation1 [shape = 'u32[144,128]{1,0:T(1,128)}', space=vmem, size = 0x12000, scoped, tag = 'internal scratch']
  %s0 = inlined_call_operand.vmem [shape: bf16[24,512], index: 0, kind: input, shape index: {}]
  %s1 = inlined_call_operand.vmem [shape: bf16[512,64], index: 1, kind: input, shape index: {}]
  %s2 = inlined_call_operand.vmem [shape: f32[1,512], index: 2, kind: input, shape index: {}]
  %s3 = inlined_call_operand.vmem [shape: f32[1,512], index: 3, kind: input, shape index: {}]
  %s4 = inlined_call_operand.vmem [shape: bf16[24,64], index: 4, kind: output, shape index: {0}]
  %s5 = inlined_call_operand.vmem [shape: f32[8,64], index: 5, kind: output, shape index: {1}]
  %s6 = inlined_call_operand.vmem [shape: f32[8,64], index: 6, kind: output, shape index: {2}]
  %7 = xla_tuple %s4, %s5, %s6
  %s8 = sld [smem:[#allocation0]]
  $region42: #{discriminator_forward.8} parent=0
    _
  %s10 = ssub.s32 1, %s8
  %s11 = scalar_select 0, %s10, %s8
  // Predicated region
  $region2: #{discriminator_forward.8} parent=0 // pred_check
    _
  $region3: #{discriminator_forward.8} parent=0 // pred_check_branch
    %13 = sbr.rel (0) target = $region5
  $region4: #{discriminator_forward.8} parent=0 // pred_region
    _
  $region5: #{discriminator_forward.8} parent=0 // pred_fallthru
    _
  // Predicated region
  $region6: #{discriminator_forward.8} parent=0 // pred_check
    _
  $region7: #{discriminator_forward.8} parent=0 // pred_check_branch
    %15 = sbr.rel (0) target = $region9
  $region8: #{discriminator_forward.8} parent=0 // pred_region
    _
  $region9: #{discriminator_forward.8} parent=0 // pred_fallthru
    _
  // Predicated region
  $region10: #{discriminator_forward.8} parent=0 // pred_check
    _
  $region11: #{discriminator_forward.8} parent=0 // pred_check_branch
    %17 = sbr.rel (0) target = $region13
  $region12: #{discriminator_forward.8} parent=0 // pred_region
    _
  $region13: #{discriminator_forward.8} parent=0 // pred_fallthru
    _
  // Predicated region
  $region14: #{discriminator_forward.8} parent=0 // pred_check
    _
  $region15: #{discriminator_forward.8} parent=0 // pred_check_branch
    %19 = sbr.rel (0) target = $region17
  $region16: #{discriminator_forward.8} parent=0 // pred_region
    _
  $region17: #{discriminator_forward.8} parent=0 // pred_fallthru
    _
  %v22 = vld [vmem:[%s0] sm:$0xff]
  %v23 = vld [vmem:[%s0 + $0x8] sm:$0xff]
  %v24 = vld [vmem:[%s0 + $0x10] sm:$0xff]
  %v25 = vld [vmem:[%s0 + $0x18] sm:$0xff]
  %v26 = vld [vmem:[%s0 + $0x20] sm:$0xff]
  %v27 = vld [vmem:[%s0 + $0x28] sm:$0xff]
  %v28 = vld [vmem:[%s2] sm:$0xf]
  %v30 = vlaneseq
  %v31 = vshrl.u32 %v30, 7
  %v32 = vsub.s32 0, %v31
  %v33 = vrot.slane %v28, %v32
  %v34 = vlaneseq
  %v35 = vshrl.u32 %v34, 7
  %v36 = vsub.s32 1, %v35
  %v37 = vrot.slane %v28, %v36
  %v38 = vlaneseq
  %v39 = vshrl.u32 %v38, 7
  %v40 = vsub.s32 2, %v39
  %v41 = vrot.slane %v28, %v40
  %v42 = vlaneseq
  %v43 = vshrl.u32 %v42, 7
  %v44 = vsub.s32 3, %v43
  %v45 = vrot.slane %v28, %v44
  %v50 = vpack.c.bf16 %v33, %v33
  %v51 = vpack.c.bf16 %v37, %v37
  %v52 = vpack.c.bf16 %v41, %v41
  %v53 = vpack.c.bf16 %v45, %v45
  %v55 = vpack.i.b16 %v50, %v50
  %v57 = vlaneseq
  %v58 = vshrl.u32 %v57, 7
  %v59 = vsub.s32 0, %v58
  %v60 = vrot.slane %v55, %v59
  %v62 = vpack.i.b16 %v51, %v51
  %v64 = vlaneseq
  %v65 = vshrl.u32 %v64, 7
  %v66 = vsub.s32 0, %v65
  %v67 = vrot.slane %v62, %v66
  %v69 = vpack.i.b16 %v52, %v52
  %v71 = vlaneseq
  %v72 = vshrl.u32 %v71, 7
  %v73 = vsub.s32 0, %v72
  %v74 = vrot.slane %v69, %v73
  %v76 = vpack.i.b16 %v53, %v53
  %v78 = vlaneseq
  %v79 = vshrl.u32 %v78, 7
  %v80 = vsub.s32 0, %v79
  %v81 = vrot.slane %v76, %v80
  %v86 = vunpack.c.l.b16 %v60
  %v87 = vunpack.c.l.b16 %v67
  %v88 = vunpack.c.l.b16 %v74
  %v89 = vunpack.c.l.b16 %v81
  %v90 = vpack.c.b16 %v87, %v86
  %v91 = vpack.c.b16 %v89, %v88
  %v94 = vmul.bf16 %v22, %v90
  %v95 = vmul.bf16 %v23, %v91
  %v96 = vmul.bf16 %v24, %v90
  %v97 = vmul.bf16 %v25, %v91
  %v98 = vmul.bf16 %v26, %v90
  %v99 = vmul.bf16 %v27, %v91
  %v100 = vld [vmem:[%s3] sm:$0xf]
  %v102 = vlaneseq
  %v103 = vshrl.u32 %v102, 7
  %v104 = vsub.s32 0, %v103
  %v105 = vrot.slane %v100, %v104
  %v106 = vlaneseq
  %v107 = vshrl.u32 %v106, 7
  %v108 = vsub.s32 1, %v107
  %v109 = vrot.slane %v100, %v108
  %v110 = vlaneseq
  %v111 = vshrl.u32 %v110, 7
  %v112 = vsub.s32 2, %v111
  %v113 = vrot.slane %v100, %v112
  %v114 = vlaneseq
  %v115 = vshrl.u32 %v114, 7
  %v116 = vsub.s32 3, %v115
  %v117 = vrot.slane %v100, %v116
  %v122 = vpack.c.bf16 %v105, %v105
  %v123 = vpack.c.bf16 %v109, %v109
  %v124 = vpack.c.bf16 %v113, %v113
  %v125 = vpack.c.bf16 %v117, %v117
  %v127 = vpack.i.b16 %v122, %v122
  %v129 = vlaneseq
  %v130 = vshrl.u32 %v129, 7
  %v131 = vsub.s32 0, %v130
  %v132 = vrot.slane %v127, %v131
  %v134 = vpack.i.b16 %v123, %v123
  %v136 = vlaneseq
  %v137 = vshrl.u32 %v136, 7
  %v138 = vsub.s32 0, %v137
  %v139 = vrot.slane %v134, %v138
  %v141 = vpack.i.b16 %v124, %v124
  %v143 = vlaneseq
  %v144 = vshrl.u32 %v143, 7
  %v145 = vsub.s32 0, %v144
  %v146 = vrot.slane %v141, %v145
  %v148 = vpack.i.b16 %v125, %v125
  %v150 = vlaneseq
  %v151 = vshrl.u32 %v150, 7
  %v152 = vsub.s32 0, %v151
  %v153 = vrot.slane %v148, %v152
  %v158 = vunpack.c.l.b16 %v132
  %v159 = vunpack.c.l.b16 %v139
  %v160 = vunpack.c.l.b16 %v146
  %v161 = vunpack.c.l.b16 %v153
  %v162 = vpack.c.b16 %v159, %v158
  %v163 = vpack.c.b16 %v161, %v160
  %v166 = vadd.bf16 %v94, %v162
  %v167 = vadd.bf16 %v95, %v163
  %v168 = vadd.bf16 %v96, %v162
  %v169 = vadd.bf16 %v97, %v163
  %v170 = vadd.bf16 %v98, %v162
  %v171 = vadd.bf16 %v99, %v163
  %v172 = vmul.bf16 %v166, 1045249613
  %v173 = vmul.bf16 %v167, 1045249613
  %v174 = vmul.bf16 %v168, 1045249613
  %v175 = vmul.bf16 %v169, 1045249613
  %v176 = vmul.bf16 %v170, 1045249613
  %v177 = vmul.bf16 %v171, 1045249613
  %v178 = vmax.bf16 %v166, %v172
  %v179 = vmax.bf16 %v167, %v173
  %v180 = vmax.bf16 %v168, %v174
  %v181 = vmax.bf16 %v169, %v175
  %v182 = vmax.bf16 %v170, %v176
  %v183 = vmax.bf16 %v171, %v177
  %v184 = vld [vmem:[%s1] sm:$0xf]
  %v185 = vld [vmem:[%s1 + $0x4] sm:$0xf]
  %v186 = vld [vmem:[%s1 + $0x8] sm:$0xf]
  %v187 = vld [vmem:[%s1 + $0xc] sm:$0xf]
  %v188 = vld [vmem:[%s1 + $0x10] sm:$0xf]
  %v189 = vld [vmem:[%s1 + $0x14] sm:$0xf]
  %v190 = vld [vmem:[%s1 + $0x18] sm:$0xf]
  %v191 = vld [vmem:[%s1 + $0x1c] sm:$0xf]
  %v192 = vld [vmem:[%s1 + $0x20] sm:$0xf]
  %v193 = vld [vmem:[%s1 + $0x24] sm:$0xf]
  %v194 = vld [vmem:[%s1 + $0x28] sm:$0xf]
  %v195 = vld [vmem:[%s1 + $0x2c] sm:$0xf]
  %v196 = vld [vmem:[%s1 + $0x30] sm:$0xf]
  %v197 = vld [vmem:[%s1 + $0x34] sm:$0xf]
  %v198 = vld [vmem:[%s1 + $0x38] sm:$0xf]
  %v199 = vld [vmem:[%s1 + $0x3c] sm:$0xf]
  %v200 = vld [vmem:[%s1 + $0x40] sm:$0xf]
  %v201 = vld [vmem:[%s1 + $0x44] sm:$0xf]
  %v202 = vld [vmem:[%s1 + $0x48] sm:$0xf]
  %v203 = vld [vmem:[%s1 + $0x4c] sm:$0xf]
  %v204 = vld [vmem:[%s1 + $0x50] sm:$0xf]
  %v205 = vld [vmem:[%s1 + $0x54] sm:$0xf]
  %v206 = vld [vmem:[%s1 + $0x58] sm:$0xf]
  %v207 = vld [vmem:[%s1 + $0x5c] sm:$0xf]
  %v208 = vld [vmem:[%s1 + $0x60] sm:$0xf]
  %v209 = vld [vmem:[%s1 + $0x64] sm:$0xf]
  %v210 = vld [vmem:[%s1 + $0x68] sm:$0xf]
  %v211 = vld [vmem:[%s1 + $0x6c] sm:$0xf]
  %v212 = vld [vmem:[%s1 + $0x70] sm:$0xf]
  %v213 = vld [vmem:[%s1 + $0x74] sm:$0xf]
  %v214 = vld [vmem:[%s1 + $0x78] sm:$0xf]
  %v215 = vld [vmem:[%s1 + $0x7c] sm:$0xf]
  %v216 = vld [vmem:[%s1 + $0x80] sm:$0xf]
  %v217 = vld [vmem:[%s1 + $0x84] sm:$0xf]
  %v218 = vld [vmem:[%s1 + $0x88] sm:$0xf]
  %v219 = vld [vmem:[%s1 + $0x8c] sm:$0xf]
  %v220 = vld [vmem:[%s1 + $0x90] sm:$0xf]
  %v221 = vld [vmem:[%s1 + $0x94] sm:$0xf]
  %v222 = vld [vmem:[%s1 + $0x98] sm:$0xf]
  %v223 = vld [vmem:[%s1 + $0x9c] sm:$0xf]
  %v224 = vld [vmem:[%s1 + $0xa0] sm:$0xf]
  %v225 = vld [vmem:[%s1 + $0xa4] sm:$0xf]
  %v226 = vld [vmem:[%s1 + $0xa8] sm:$0xf]
  %v227 = vld [vmem:[%s1 + $0xac] sm:$0xf]
  %v228 = vld [vmem:[%s1 + $0xb0] sm:$0xf]
  %v229 = vld [vmem:[%s1 + $0xb4] sm:$0xf]
  %v230 = vld [vmem:[%s1 + $0xb8] sm:$0xf]
  %v231 = vld [vmem:[%s1 + $0xbc] sm:$0xf]
  %v232 = vld [vmem:[%s1 + $0xc0] sm:$0xf]
  %v233 = vld [vmem:[%s1 + $0xc4] sm:$0xf]
  %v234 = vld [vmem:[%s1 + $0xc8] sm:$0xf]
  %v235 = vld [vmem:[%s1 + $0xcc] sm:$0xf]
  %v236 = vld [vmem:[%s1 + $0xd0] sm:$0xf]
  %v237 = vld [vmem:[%s1 + $0xd4] sm:$0xf]
  %v238 = vld [vmem:[%s1 + $0xd8] sm:$0xf]
  %v239 = vld [vmem:[%s1 + $0xdc] sm:$0xf]
  %v240 = vld [vmem:[%s1 + $0xe0] sm:$0xf]
  %v241 = vld [vmem:[%s1 + $0xe4] sm:$0xf]
  %v242 = vld [vmem:[%s1 + $0xe8] sm:$0xf]
  %v243 = vld [vmem:[%s1 + $0xec] sm:$0xf]
  %v244 = vld [vmem:[%s1 + $0xf0] sm:$0xf]
  %v245 = vld [vmem:[%s1 + $0xf4] sm:$0xf]
  %v246 = vld [vmem:[%s1 + $0xf8] sm:$0xf]
  %v247 = vld [vmem:[%s1 + $0xfc] sm:$0xf]
  %v254 = vunpack.c.l.b16 %v178
  %v255 = vunpack.c.h.b16 %v178
  %v256 = vunpack.c.l.b16 %v179
  %v257 = vunpack.c.h.b16 %v179
  %v258 = vunpack.c.l.b16 %v180
  %v259 = vunpack.c.h.b16 %v180
  %v260 = vunpack.c.l.b16 %v181
  %v261 = vunpack.c.h.b16 %v181
  %v262 = vunpack.c.l.b16 %v182
  %v263 = vunpack.c.h.b16 %v182
  %v264 = vunpack.c.l.b16 %v183
  %v265 = vunpack.c.h.b16 %v183
  %v266 = vpack.c.b16 %v258, %v254
  %v267 = vpack.c.b16 %v259, %v255
  %v268 = vpack.c.b16 %v260, %v256
  %v269 = vpack.c.b16 %v261, %v257
  %v270 = vpack.c.b16 %v262, %v262
  %v271 = vpack.c.b16 %v263, %v263
  %v272 = vpack.c.b16 %v264, %v264
  %v273 = vpack.c.b16 %v265, %v265
  %v346 = vunpack.c.l.b16 %v184
  %v347 = vunpack.c.l.b16 %v185
  %v348 = vunpack.c.l.b16 %v186
  %v349 = vunpack.c.l.b16 %v187
  %v350 = vunpack.c.l.b16 %v188
  %v351 = vunpack.c.l.b16 %v189
  %v352 = vunpack.c.l.b16 %v190
  %v353 = vunpack.c.l.b16 %v191
  %v354 = vunpack.c.l.b16 %v192
  %v355 = vunpack.c.l.b16 %v193
  %v356 = vunpack.c.l.b16 %v194
  %v357 = vunpack.c.l.b16 %v195
  %v358 = vunpack.c.l.b16 %v196
  %v359 = vunpack.c.l.b16 %v197
  %v360 = vunpack.c.l.b16 %v198
  %v361 = vunpack.c.l.b16 %v199
  %v362 = vunpack.c.l.b16 %v200
  %v363 = vunpack.c.l.b16 %v201
  %v364 = vunpack.c.l.b16 %v202
  %v365 = vunpack.c.l.b16 %v203
  %v366 = vunpack.c.l.b16 %v204
  %v367 = vunpack.c.l.b16 %v205
  %v368 = vunpack.c.l.b16 %v206
  %v369 = vunpack.c.l.b16 %v207
  %v370 = vunpack.c.l.b16 %v208
  %v371 = vunpack.c.l.b16 %v209
  %v372 = vunpack.c.l.b16 %v210
  %v373 = vunpack.c.l.b16 %v211
  %v374 = vunpack.c.l.b16 %v212
  %v375 = vunpack.c.l.b16 %v213
  %v376 = vunpack.c.l.b16 %v214
  %v377 = vunpack.c.l.b16 %v215
  %v378 = vunpack.c.l.b16 %v216
  %v379 = vunpack.c.l.b16 %v217
  %v380 = vunpack.c.l.b16 %v218
  %v381 = vunpack.c.l.b16 %v219
  %v382 = vunpack.c.l.b16 %v220
  %v383 = vunpack.c.l.b16 %v221
  %v384 = vunpack.c.l.b16 %v222
  %v385 = vunpack.c.l.b16 %v223
  %v386 = vunpack.c.l.b16 %v224
  %v387 = vunpack.c.l.b16 %v225
  %v388 = vunpack.c.l.b16 %v226
  %v389 = vunpack.c.l.b16 %v227
  %v390 = vunpack.c.l.b16 %v228
  %v391 = vunpack.c.l.b16 %v229
  %v392 = vunpack.c.l.b16 %v230
  %v393 = vunpack.c.l.b16 %v231
  %v394 = vunpack.c.l.b16 %v232
  %v395 = vunpack.c.l.b16 %v233
  %v396 = vunpack.c.l.b16 %v234
  %v397 = vunpack.c.l.b16 %v235
  %v398 = vunpack.c.l.b16 %v236
  %v399 = vunpack.c.l.b16 %v237
  %v400 = vunpack.c.l.b16 %v238
  %v401 = vunpack.c.l.b16 %v239
  %v402 = vunpack.c.l.b16 %v240
  %v403 = vunpack.c.l.b16 %v241
  %v404 = vunpack.c.l.b16 %v242
  %v405 = vunpack.c.l.b16 %v243
  %v406 = vunpack.c.l.b16 %v244
  %v407 = vunpack.c.l.b16 %v245
  %v408 = vunpack.c.l.b16 %v246
  %v409 = vunpack.c.l.b16 %v247
  %v410 = vpack.c.b16 %v347, %v346
  %v411 = vpack.c.b16 %v349, %v348
  %v412 = vpack.c.b16 %v351, %v350
  %v413 = vpack.c.b16 %v353, %v352
  %v414 = vpack.c.b16 %v355, %v354
  %v415 = vpack.c.b16 %v357, %v356
  %v416 = vpack.c.b16 %v359, %v358
  %v417 = vpack.c.b16 %v361, %v360
  %v418 = vpack.c.b16 %v363, %v362
  %v419 = vpack.c.b16 %v365, %v364
  %v420 = vpack.c.b16 %v367, %v366
  %v421 = vpack.c.b16 %v369, %v368
  %v422 = vpack.c.b16 %v371, %v370
  %v423 = vpack.c.b16 %v373, %v372
  %v424 = vpack.c.b16 %v375, %v374
  %v425 = vpack.c.b16 %v377, %v376
  %v426 = vpack.c.b16 %v379, %v378
  %v427 = vpack.c.b16 %v381, %v380
  %v428 = vpack.c.b16 %v383, %v382
  %v429 = vpack.c.b16 %v385, %v384
  %v430 = vpack.c.b16 %v387, %v386
  %v431 = vpack.c.b16 %v389, %v388
  %v432 = vpack.c.b16 %v391, %v390
  %v433 = vpack.c.b16 %v393, %v392
  %v434 = vpack.c.b16 %v395, %v394
  %v435 = vpack.c.b16 %v397, %v396
  %v436 = vpack.c.b16 %v399, %v398
  %v437 = vpack.c.b16 %v401, %v400
  %v438 = vpack.c.b16 %v403, %v402
  %v439 = vpack.c.b16 %v405, %v404
  %v440 = vpack.c.b16 %v407, %v406
  %v441 = vpack.c.b16 %v409, %v408
  %474 = vmatprep.subr.bf16.mxu0 0
  %475 = vmatpush1.bf16.msra.mxu0 %v417
  %476 = vmatprep.subr.bf16.mxu0 0
  %477 = vmatpush1.bf16.msra.mxu0 %v416
  %478 = vmatprep.subr.bf16.mxu0 0
  %479 = vmatpush1.bf16.msra.mxu0 %v415
  %480 = vmatprep.subr.bf16.mxu0 0
  %481 = vmatpush1.bf16.msra.mxu0 %v414
  %482 = vmatprep.subr.bf16.mxu0 0
  %483 = vmatpush1.bf16.msra.mxu0 %v413
  %484 = vmatprep.subr.bf16.mxu0 0
  %485 = vmatpush1.bf16.msra.mxu0 %v412
  %486 = vmatprep.subr.bf16.mxu0 0
  %487 = vmatpush1.bf16.msra.mxu0 %v411
  %488 = vmatprep.subr.bf16.mxu0 0
  %489 = vmatpush1.bf16.msra.mxu0 %v410
  %490 = vmatprep.subr.bf16.mxu0 0
  %491 = vmatpush2.bf16.msra.mxu0 %v425
  %492 = vmatprep.subr.bf16.mxu0 0
  %493 = vmatpush2.bf16.msra.mxu0 %v424
  %494 = vmatprep.subr.bf16.mxu0 0
  %495 = vmatpush2.bf16.msra.mxu0 %v423
  %496 = vmatprep.subr.bf16.mxu0 0
  %497 = vmatpush2.bf16.msra.mxu0 %v422
  %498 = vmatprep.subr.bf16.mxu0 0
  %499 = vmatpush2.bf16.msra.mxu0 %v421
  %500 = vmatprep.subr.bf16.mxu0 0
  %501 = vmatpush2.bf16.msra.mxu0 %v420
  %502 = vmatprep.subr.bf16.mxu0 0
  %503 = vmatpush2.bf16.msra.mxu0 %v419
  %504 = vmatprep.subr.bf16.mxu0 0
  %505 = vmatpush2.bf16.msra.mxu0 %v418
  %506 = vmatprep.mubr.bf16.mxu0 %v267
  %507 = vmatmul.mubr.bf16.gmra.mxu0 %v266
  %v508 = vpop.f32.mrf.mxu0
  %v509 = vadd.f32 0.0, %v508
  %v510 = vpop.f32.mrf.mxu0
  %v511 = vpop.f32.mrf.mxu0
  %v512 = vadd.f32 0.0, %v511
  %v513 = vpop.f32.mrf.mxu0
  %514 = vmatprep.mubr.bf16.mxu0 %v271
  %515 = vmatmul.mubr.bf16.gmra.mxu0 %v270
  %v516 = vpop.f32.mrf.mxu0
  %v517 = vadd.f32 0.0, %v516
  %v518 = vpop.f32.mrf.mxu0
  %v519 = vpop.f32.mrf.mxu0
  %v520 = vpop.f32.mrf.mxu0
  %521 = vdwg.mxu0
  %522 = vmatprep.subr.bf16.mxu0 0
  %523 = vmatpush1.bf16.msra.mxu0 %v433
  %524 = vmatprep.subr.bf16.mxu0 0
  %525 = vmatpush1.bf16.msra.mxu0 %v432
  %526 = vmatprep.subr.bf16.mxu0 0
  %527 = vmatpush1.bf16.msra.mxu0 %v431
  %528 = vmatprep.subr.bf16.mxu0 0
  %529 = vmatpush1.bf16.msra.mxu0 %v430
  %530 = vmatprep.subr.bf16.mxu0 0
  %531 = vmatpush1.bf16.msra.mxu0 %v429
  %532 = vmatprep.subr.bf16.mxu0 0
  %533 = vmatpush1.bf16.msra.mxu0 %v428
  %534 = vmatprep.subr.bf16.mxu0 0
  %535 = vmatpush1.bf16.msra.mxu0 %v427
  %536 = vmatprep.subr.bf16.mxu0 0
  %537 = vmatpush1.bf16.msra.mxu0 %v426
  %538 = vmatprep.subr.bf16.mxu0 0
  %539 = vmatpush2.bf16.msra.mxu0 %v441
  %540 = vmatprep.subr.bf16.mxu0 0
  %541 = vmatpush2.bf16.msra.mxu0 %v440
  %542 = vmatprep.subr.bf16.mxu0 0
  %543 = vmatpush2.bf16.msra.mxu0 %v439
  %544 = vmatprep.subr.bf16.mxu0 0
  %545 = vmatpush2.bf16.msra.mxu0 %v438
  %546 = vmatprep.subr.bf16.mxu0 0
  %547 = vmatpush2.bf16.msra.mxu0 %v437
  %548 = vmatprep.subr.bf16.mxu0 0
  %549 = vmatpush2.bf16.msra.mxu0 %v436
  %550 = vmatprep.subr.bf16.mxu0 0
  %551 = vmatpush2.bf16.msra.mxu0 %v435
  %552 = vmatprep.subr.bf16.mxu0 0
  %553 = vmatpush2.bf16.msra.mxu0 %v434
  %554 = vmatprep.mubr.bf16.mxu0 %v269
  %555 = vmatmul.mubr.bf16.gmra.mxu0 %v268
  %v556 = vpop.f32.mrf.mxu0
  %v557 = vadd.f32 %v509, %v556
  %v558 = vpop.f32.mrf.mxu0
  %v559 = vpop.f32.mrf.mxu0
  %v560 = vadd.f32 %v512, %v559
  %v561 = vpop.f32.mrf.mxu0
  %562 = vmatprep.mubr.bf16.mxu0 %v273
  %563 = vmatmul.mubr.bf16.gmra.mxu0 %v272
  %v564 = vpop.f32.mrf.mxu0
  %v565 = vadd.f32 %v517, %v564
  %v566 = vpop.f32.mrf.mxu0
  %v567 = vpop.f32.mrf.mxu0
  %v568 = vpop.f32.mrf.mxu0
  %569 = vdwg.mxu0
  %v570 = vlaneseq
  %v571 = vshrl.u32 %v570, 7
  %v572 = vadd.s32 %v571, 8
  %v573 = vadd.s32 %v571, 16
  %s574 = smul.u32 0, 24
  %v575 = vstv %s574
  %v576 = vadd.s32 %v571, %v575
  %v577 = vadd.s32 %v572, %v575
  %v578 = vadd.s32 %v573, %v575
  %vm579 = vcmp.lt.s32.totalorder %v576, 18
  %vm580 = vcmp.lt.s32.totalorder %v577, 18
  %vm581 = vcmp.lt.s32.totalorder %v578, 18
  %v582 = vsel %vm579, 1, 0
  %v583 = vsel %vm580, 1, 0
  %v584 = vsel %vm581, 1, 0
  %v585 = vcvt.s32.f32 %v582
  %v586 = vcvt.s32.f32 %v583
  %v587 = vcvt.s32.f32 %v584
  %v588 = vmul.f32 %v557, %v585
  %v589 = vmul.f32 %v560, %v586
  %v590 = vmul.f32 %v565, %v587
  %v594 = vcombine.high %v588, %v588
  %v596 = vunpack.c.l.s4 1966171168
  %v597 = vunpack.c.0.s8 %v596
  %v598 = vlaneseq
  %v599 = vshrl.u32 %v598, 7
  %v600 = vsub.s32 %v597, %v599
  %v601 = vrot.slane %v588, %v600
  %v603 = vunpack.c.l.s4 1966171168
  %v604 = vunpack.c.0.s8 %v603
  %v605 = vlaneseq
  %v606 = vshrl.u32 %v605, 7
  %v607 = vsub.s32 %v604, %v606
  %v608 = vrot.slane %v594, %v607
  %v609 = vcombine.high %v601, %v601
  %v610 = vcombine.high %v608, %v608
  %v612 = vunpack.c.l.s4 1966171168
  %v613 = vunpack.c.0.s8 %v612
  %v614 = vlaneseq
  %v615 = vshrl.u32 %v614, 7
  %v616 = vsub.s32 %v613, %v615
  %v617 = vrot.slane %v601, %v616
  %v619 = vunpack.c.l.s4 1966171168
  %v620 = vunpack.c.0.s8 %v619
  %v621 = vlaneseq
  %v622 = vshrl.u32 %v621, 7
  %v623 = vsub.s32 %v620, %v622
  %v624 = vrot.slane %v608, %v623
  %v626 = vunpack.c.l.s4 1966171168
  %v627 = vunpack.c.0.s8 %v626
  %v628 = vlaneseq
  %v629 = vshrl.u32 %v628, 7
  %v630 = vsub.s32 %v627, %v629
  %v631 = vrot.slane %v609, %v630
  %v633 = vunpack.c.l.s4 1966171168
  %v634 = vunpack.c.0.s8 %v633
  %v635 = vlaneseq
  %v636 = vshrl.u32 %v635, 7
  %v637 = vsub.s32 %v634, %v636
  %v638 = vrot.slane %v610, %v637
  %v639 = vcombine.high %v617, %v617
  %v640 = vcombine.high %v624, %v624
  %v641 = vcombine.high %v631, %v631
  %v642 = vcombine.high %v638, %v638
  %v643 = vcombine.high %v589, %v589
  %v645 = vunpack.c.l.s4 1966171168
  %v646 = vunpack.c.0.s8 %v645
  %v647 = vlaneseq
  %v648 = vshrl.u32 %v647, 7
  %v649 = vsub.s32 %v646, %v648
  %v650 = vrot.slane %v589, %v649
  %v652 = vunpack.c.l.s4 1966171168
  %v653 = vunpack.c.0.s8 %v652
  %v654 = vlaneseq
  %v655 = vshrl.u32 %v654, 7
  %v656 = vsub.s32 %v653, %v655
  %v657 = vrot.slane %v643, %v656
  %v658 = vcombine.high %v650, %v650
  %v659 = vcombine.high %v657, %v657
  %v661 = vunpack.c.l.s4 1966171168
  %v662 = vunpack.c.0.s8 %v661
  %v663 = vlaneseq
  %v664 = vshrl.u32 %v663, 7
  %v665 = vsub.s32 %v662, %v664
  %v666 = vrot.slane %v650, %v665
  %v668 = vunpack.c.l.s4 1966171168
  %v669 = vunpack.c.0.s8 %v668
  %v670 = vlaneseq
  %v671 = vshrl.u32 %v670, 7
  %v672 = vsub.s32 %v669, %v671
  %v673 = vrot.slane %v657, %v672
  %v675 = vunpack.c.l.s4 1966171168
  %v676 = vunpack.c.0.s8 %v675
  %v677 = vlaneseq
  %v678 = vshrl.u32 %v677, 7
  %v679 = vsub.s32 %v676, %v678
  %v680 = vrot.slane %v658, %v679
  %v682 = vunpack.c.l.s4 1966171168
  %v683 = vunpack.c.0.s8 %v682
  %v684 = vlaneseq
  %v685 = vshrl.u32 %v684, 7
  %v686 = vsub.s32 %v683, %v685
  %v687 = vrot.slane %v659, %v686
  %v688 = vcombine.high %v666, %v666
  %v689 = vcombine.high %v673, %v673
  %v690 = vcombine.high %v680, %v680
  %v691 = vcombine.high %v687, %v687
  %v692 = vcombine.high %v590, %v590
  %v694 = vunpack.c.l.s4 1966171168
  %v695 = vunpack.c.0.s8 %v694
  %v696 = vlaneseq
  %v697 = vshrl.u32 %v696, 7
  %v698 = vsub.s32 %v695, %v697
  %v699 = vrot.slane %v590, %v698
  %v701 = vunpack.c.l.s4 1966171168
  %v702 = vunpack.c.0.s8 %v701
  %v703 = vlaneseq
  %v704 = vshrl.u32 %v703, 7
  %v705 = vsub.s32 %v702, %v704
  %v706 = vrot.slane %v692, %v705
  %v707 = vcombine.high %v699, %v699
  %v708 = vcombine.high %v706, %v706
  %v710 = vunpack.c.l.s4 1966171168
  %v711 = vunpack.c.0.s8 %v710
  %v712 = vlaneseq
  %v713 = vshrl.u32 %v712, 7
  %v714 = vsub.s32 %v711, %v713
  %v715 = vrot.slane %v699, %v714
  %v717 = vunpack.c.l.s4 1966171168
  %v718 = vunpack.c.0.s8 %v717
  %v719 = vlaneseq
  %v720 = vshrl.u32 %v719, 7
  %v721 = vsub.s32 %v718, %v720
  %v722 = vrot.slane %v706, %v721
  %v724 = vunpack.c.l.s4 1966171168
  %v725 = vunpack.c.0.s8 %v724
  %v726 = vlaneseq
  %v727 = vshrl.u32 %v726, 7
  %v728 = vsub.s32 %v725, %v727
  %v729 = vrot.slane %v707, %v728
  %v731 = vunpack.c.l.s4 1966171168
  %v732 = vunpack.c.0.s8 %v731
  %v733 = vlaneseq
  %v734 = vshrl.u32 %v733, 7
  %v735 = vsub.s32 %v732, %v734
  %v736 = vrot.slane %v708, %v735
  %v737 = vcombine.high %v715, %v715
  %v738 = vcombine.high %v722, %v722
  %v739 = vcombine.high %v729, %v729
  %v740 = vcombine.high %v736, %v736
  %v765 = vcombine.low %v617, %v631
  %v767 = vunpack.c.l.s4 1966171168
  %v768 = vunpack.c.0.s8 %v767
  %v769 = vlaneseq
  %v770 = vshrl.u32 %v769, 7
  %v771 = vsub.s32 %v768, %v770
  %v772 = vrot.slane %v765, %v771
  %v774 = vunpack.c.l.s4 1966171168
  %v775 = vunpack.c.0.s8 %v774
  %v776 = vlaneseq
  %v777 = vshrl.u32 %v776, 7
  %v778 = vsub.s32 %v775, %v777
  %v779 = vrot.slane %v639, %v778
  %v780 = vcombine.low %v772, %v779
  %v782 = vunpack.c.l.s4 1966171168
  %v783 = vunpack.c.0.s8 %v782
  %v784 = vlaneseq
  %v785 = vshrl.u32 %v784, 7
  %v786 = vsub.s32 %v783, %v785
  %v787 = vrot.slane %v780, %v786
  %v788 = vcombine.low %v641, %v624
  %v790 = vunpack.c.l.s4 1966171168
  %v791 = vunpack.c.0.s8 %v790
  %v792 = vlaneseq
  %v793 = vshrl.u32 %v792, 7
  %v794 = vsub.s32 %v791, %v793
  %v795 = vrot.slane %v788, %v794
  %v797 = vunpack.c.l.s4 1966171168
  %v798 = vunpack.c.0.s8 %v797
  %v799 = vlaneseq
  %v800 = vshrl.u32 %v799, 7
  %v801 = vsub.s32 %v798, %v800
  %v802 = vrot.slane %v638, %v801
  %v803 = vcombine.low %v795, %v802
  %v805 = vunpack.c.l.s4 1966171168
  %v806 = vunpack.c.0.s8 %v805
  %v807 = vlaneseq
  %v808 = vshrl.u32 %v807, 7
  %v809 = vsub.s32 %v806, %v808
  %v810 = vrot.slane %v803, %v809
  %v811 = vcombine.low %v640, %v642
  %v813 = vunpack.c.l.s4 1966171168
  %v814 = vunpack.c.0.s8 %v813
  %v815 = vlaneseq
  %v816 = vshrl.u32 %v815, 7
  %v817 = vsub.s32 %v814, %v816
  %v818 = vrot.slane %v811, %v817
  %v820 = vunpack.c.l.s4 1966171168
  %v821 = vunpack.c.0.s8 %v820
  %v822 = vlaneseq
  %v823 = vshrl.u32 %v822, 7
  %v824 = vsub.s32 %v821, %v823
  %v825 = vrot.slane %v666, %v824
  %v826 = vcombine.low %v818, %v825
  %v828 = vunpack.c.l.s4 1966171168
  %v829 = vunpack.c.0.s8 %v828
  %v830 = vlaneseq
  %v831 = vshrl.u32 %v830, 7
  %v832 = vsub.s32 %v829, %v831
  %v833 = vrot.slane %v826, %v832
  %v834 = vcombine.low %v680, %v688
  %v836 = vunpack.c.l.s4 1966171168
  %v837 = vunpack.c.0.s8 %v836
  %v838 = vlaneseq
  %v839 = vshrl.u32 %v838, 7
  %v840 = vsub.s32 %v837, %v839
  %v841 = vrot.slane %v834, %v840
  %v843 = vunpack.c.l.s4 1966171168
  %v844 = vunpack.c.0.s8 %v843
  %v845 = vlaneseq
  %v846 = vshrl.u32 %v845, 7
  %v847 = vsub.s32 %v844, %v846
  %v848 = vrot.slane %v690, %v847
  %v849 = vcombine.low %v841, %v848
  %v851 = vunpack.c.l.s4 1966171168
  %v852 = vunpack.c.0.s8 %v851
  %v853 = vlaneseq
  %v854 = vshrl.u32 %v853, 7
  %v855 = vsub.s32 %v852, %v854
  %v856 = vrot.slane %v849, %v855
  %v857 = vcombine.low %v673, %v687
  %v859 = vunpack.c.l.s4 1966171168
  %v860 = vunpack.c.0.s8 %v859
  %v861 = vlaneseq
  %v862 = vshrl.u32 %v861, 7
  %v863 = vsub.s32 %v860, %v862
  %v864 = vrot.slane %v857, %v863
  %v866 = vunpack.c.l.s4 1966171168
  %v867 = vunpack.c.0.s8 %v866
  %v868 = vlaneseq
  %v869 = vshrl.u32 %v868, 7
  %v870 = vsub.s32 %v867, %v869
  %v871 = vrot.slane %v689, %v870
  %v872 = vcombine.low %v864, %v871
  %v874 = vunpack.c.l.s4 1966171168
  %v875 = vunpack.c.0.s8 %v874
  %v876 = vlaneseq
  %v877 = vshrl.u32 %v876, 7
  %v878 = vsub.s32 %v875, %v877
  %v879 = vrot.slane %v872, %v878
  %v880 = vcombine.low %v691, %v715
  %v882 = vunpack.c.l.s4 1966171168
  %v883 = vunpack.c.0.s8 %v882
  %v884 = vlaneseq
  %v885 = vshrl.u32 %v884, 7
  %v886 = vsub.s32 %v883, %v885
  %v887 = vrot.slane %v880, %v886
  %v889 = vunpack.c.l.s4 1966171168
  %v890 = vunpack.c.0.s8 %v889
  %v891 = vlaneseq
  %v892 = vshrl.u32 %v891, 7
  %v893 = vsub.s32 %v890, %v892
  %v894 = vrot.slane %v729, %v893
  %v895 = vcombine.low %v887, %v894
  %v897 = vunpack.c.l.s4 1966171168
  %v898 = vunpack.c.0.s8 %v897
  %v899 = vlaneseq
  %v900 = vshrl.u32 %v899, 7
  %v901 = vsub.s32 %v898, %v900
  %v902 = vrot.slane %v895, %v901
  %v903 = vcombine.low %v737, %v739
  %v905 = vunpack.c.l.s4 1966171168
  %v906 = vunpack.c.0.s8 %v905
  %v907 = vlaneseq
  %v908 = vshrl.u32 %v907, 7
  %v909 = vsub.s32 %v906, %v908
  %v910 = vrot.slane %v903, %v909
  %v912 = vunpack.c.l.s4 1966171168
  %v913 = vunpack.c.0.s8 %v912
  %v914 = vlaneseq
  %v915 = vshrl.u32 %v914, 7
  %v916 = vsub.s32 %v913, %v915
  %v917 = vrot.slane %v722, %v916
  %v918 = vcombine.low %v910, %v917
  %v920 = vunpack.c.l.s4 1966171168
  %v921 = vunpack.c.0.s8 %v920
  %v922 = vlaneseq
  %v923 = vshrl.u32 %v922, 7
  %v924 = vsub.s32 %v921, %v923
  %v925 = vrot.slane %v918, %v924
  %v926 = vcombine.low %v736, %v738
  %v928 = vunpack.c.l.s4 1966171168
  %v929 = vunpack.c.0.s8 %v928
  %v930 = vlaneseq
  %v931 = vshrl.u32 %v930, 7
  %v932 = vsub.s32 %v929, %v931
  %v933 = vrot.slane %v926, %v932
  %v935 = vunpack.c.l.s4 1966171168
  %v936 = vunpack.c.0.s8 %v935
  %v937 = vlaneseq
  %v938 = vshrl.u32 %v937, 7
  %v939 = vsub.s32 %v936, %v938
  %v940 = vrot.slane %v740, %v939
  %v941 = vcombine.low %v933, %v940
  %v943 = vunpack.c.l.s4 1966171168
  %v944 = vunpack.c.0.s8 %v943
  %v945 = vlaneseq
  %v946 = vshrl.u32 %v945, 7
  %v947 = vsub.s32 %v944, %v946
  %v948 = vrot.slane %v941, %v947
  %vm957 = vcmask 518144
  %v958 = vsel %vm957, %v787, 0.0
  %v959 = vrot.slane %v958, 4
  %v960 = vadd.f32 %v958, %v959
  %v961 = vrot.slane %v960, 2
  %v962 = vadd.f32 %v960, %v961
  %v963 = vrot.slane %v962, 1
  %v964 = vadd.f32 %v962, %v963
  %v965 = vsel %vm957, %v810, 0.0
  %v966 = vrot.slane %v965, 4
  %v967 = vadd.f32 %v965, %v966
  %v968 = vrot.slane %v967, 2
  %v969 = vadd.f32 %v967, %v968
  %v970 = vrot.slane %v969, 1
  %v971 = vadd.f32 %v969, %v970
  %v972 = vsel %vm957, %v833, 0.0
  %v973 = vrot.slane %v972, 4
  %v974 = vadd.f32 %v972, %v973
  %v975 = vrot.slane %v974, 2
  %v976 = vadd.f32 %v974, %v975
  %v977 = vrot.slane %v976, 1
  %v978 = vadd.f32 %v976, %v977
  %v979 = vsel %vm957, %v856, 0.0
  %v980 = vrot.slane %v979, 4
  %v981 = vadd.f32 %v979, %v980
  %v982 = vrot.slane %v981, 2
  %v983 = vadd.f32 %v981, %v982
  %v984 = vrot.slane %v983, 1
  %v985 = vadd.f32 %v983, %v984
  %v986 = vsel %vm957, %v879, 0.0
  %v987 = vrot.slane %v986, 4
  %v988 = vadd.f32 %v986, %v987
  %v989 = vrot.slane %v988, 2
  %v990 = vadd.f32 %v988, %v989
  %v991 = vrot.slane %v990, 1
  %v992 = vadd.f32 %v990, %v991
  %v993 = vsel %vm957, %v902, 0.0
  %v994 = vrot.slane %v993, 4
  %v995 = vadd.f32 %v993, %v994
  %v996 = vrot.slane %v995, 2
  %v997 = vadd.f32 %v995, %v996
  %v998 = vrot.slane %v997, 1
  %v999 = vadd.f32 %v997, %v998
  %v1000 = vsel %vm957, %v925, 0.0
  %v1001 = vrot.slane %v1000, 4
  %v1002 = vadd.f32 %v1000, %v1001
  %v1003 = vrot.slane %v1002, 2
  %v1004 = vadd.f32 %v1002, %v1003
  %v1005 = vrot.slane %v1004, 1
  %v1006 = vadd.f32 %v1004, %v1005
  %v1007 = vsel %vm957, %v948, 0.0
  %v1008 = vrot.slane %v1007, 4
  %v1009 = vadd.f32 %v1007, %v1008
  %v1010 = vrot.slane %v1009, 2
  %v1011 = vadd.f32 %v1009, %v1010
  %v1012 = vrot.slane %v1011, 1
  %v1013 = vadd.f32 %v1011, %v1012
  %vm1022 = vcmask 1041409
  %v1023 = vsel %vm1022, %v971, %v964
  %vm1024 = vcmask 1042434
  %v1025 = vsel %vm1024, %v978, %v1023
  %vm1026 = vcmask 1043459
  %v1027 = vsel %vm1026, %v985, %v1025
  %vm1028 = vcmask 1044484
  %v1029 = vsel %vm1028, %v992, %v1027
  %vm1030 = vcmask 1045509
  %v1031 = vsel %vm1030, %v999, %v1029
  %vm1032 = vcmask 1046534
  %v1033 = vsel %vm1032, %v1006, %v1031
  %vm1034 = vcmask 1047559
  %v1035 = vsel %vm1034, %v1013, %v1033
  %vm1037 = vcmask 523264
  %1038 = vst.msk [vmem:[%s5] sm:$0xff] %vm1037, %v1035
  %v1039 = vmul.f32 %v617, %v617
  %v1040 = vmul.f32 %v631, %v631
  %v1041 = vmul.f32 %v639, %v639
  %v1042 = vmul.f32 %v641, %v641
  %v1043 = vmul.f32 %v624, %v624
  %v1044 = vmul.f32 %v638, %v638
  %v1045 = vmul.f32 %v640, %v640
  %v1046 = vmul.f32 %v642, %v642
  %v1047 = vmul.f32 %v666, %v666
  %v1048 = vmul.f32 %v680, %v680
  %v1049 = vmul.f32 %v688, %v688
  %v1050 = vmul.f32 %v690, %v690
  %v1051 = vmul.f32 %v673, %v673
  %v1052 = vmul.f32 %v687, %v687
  %v1053 = vmul.f32 %v689, %v689
  %v1054 = vmul.f32 %v691, %v691
  %v1055 = vmul.f32 %v715, %v715
  %v1056 = vmul.f32 %v729, %v729
  %v1057 = vmul.f32 %v737, %v737
  %v1058 = vmul.f32 %v739, %v739
  %v1059 = vmul.f32 %v722, %v722
  %v1060 = vmul.f32 %v736, %v736
  %v1061 = vmul.f32 %v738, %v738
  %v1062 = vmul.f32 %v740, %v740
  %v1087 = vcombine.low %v1039, %v1040
  %v1089 = vunpack.c.l.s4 1966171168
  %v1090 = vunpack.c.0.s8 %v1089
  %v1091 = vlaneseq
  %v1092 = vshrl.u32 %v1091, 7
  %v1093 = vsub.s32 %v1090, %v1092
  %v1094 = vrot.slane %v1087, %v1093
  %v1096 = vunpack.c.l.s4 1966171168
  %v1097 = vunpack.c.0.s8 %v1096
  %v1098 = vlaneseq
  %v1099 = vshrl.u32 %v1098, 7
  %v1100 = vsub.s32 %v1097, %v1099
  %v1101 = vrot.slane %v1041, %v1100
  %v1102 = vcombine.low %v1094, %v1101
  %v1104 = vunpack.c.l.s4 1966171168
  %v1105 = vunpack.c.0.s8 %v1104
  %v1106 = vlaneseq
  %v1107 = vshrl.u32 %v1106, 7
  %v1108 = vsub.s32 %v1105, %v1107
  %v1109 = vrot.slane %v1102, %v1108
  %v1110 = vcombine.low %v1042, %v1043
  %v1112 = vunpack.c.l.s4 1966171168
  %v1113 = vunpack.c.0.s8 %v1112
  %v1114 = vlaneseq
  %v1115 = vshrl.u32 %v1114, 7
  %v1116 = vsub.s32 %v1113, %v1115
  %v1117 = vrot.slane %v1110, %v1116
  %v1119 = vunpack.c.l.s4 1966171168
  %v1120 = vunpack.c.0.s8 %v1119
  %v1121 = vlaneseq
  %v1122 = vshrl.u32 %v1121, 7
  %v1123 = vsub.s32 %v1120, %v1122
  %v1124 = vrot.slane %v1044, %v1123
  %v1125 = vcombine.low %v1117, %v1124
  %v1127 = vunpack.c.l.s4 1966171168
  %v1128 = vunpack.c.0.s8 %v1127
  %v1129 = vlaneseq
  %v1130 = vshrl.u32 %v1129, 7
  %v1131 = vsub.s32 %v1128, %v1130
  %v1132 = vrot.slane %v1125, %v1131
  %v1133 = vcombine.low %v1045, %v1046
  %v1135 = vunpack.c.l.s4 1966171168
  %v1136 = vunpack.c.0.s8 %v1135
  %v1137 = vlaneseq
  %v1138 = vshrl.u32 %v1137, 7
  %v1139 = vsub.s32 %v1136, %v1138
  %v1140 = vrot.slane %v1133, %v1139
  %v1142 = vunpack.c.l.s4 1966171168
  %v1143 = vunpack.c.0.s8 %v1142
  %v1144 = vlaneseq
  %v1145 = vshrl.u32 %v1144, 7
  %v1146 = vsub.s32 %v1143, %v1145
  %v1147 = vrot.slane %v1047, %v1146
  %v1148 = vcombine.low %v1140, %v1147
  %v1150 = vunpack.c.l.s4 1966171168
  %v1151 = vunpack.c.0.s8 %v1150
  %v1152 = vlaneseq
  %v1153 = vshrl.u32 %v1152, 7
  %v1154 = vsub.s32 %v1151, %v1153
  %v1155 = vrot.slane %v1148, %v1154
  %v1156 = vcombine.low %v1048, %v1049
  %v1158 = vunpack.c.l.s4 1966171168
  %v1159 = vunpack.c.0.s8 %v1158
  %v1160 = vlaneseq
  %v1161 = vshrl.u32 %v1160, 7
  %v1162 = vsub.s32 %v1159, %v1161
  %v1163 = vrot.slane %v1156, %v1162
  %v1165 = vunpack.c.l.s4 1966171168
  %v1166 = vunpack.c.0.s8 %v1165
  %v1167 = vlaneseq
  %v1168 = vshrl.u32 %v1167, 7
  %v1169 = vsub.s32 %v1166, %v1168
  %v1170 = vrot.slane %v1050, %v1169
  %v1171 = vcombine.low %v1163, %v1170
  %v1173 = vunpack.c.l.s4 1966171168
  %v1174 = vunpack.c.0.s8 %v1173
  %v1175 = vlaneseq
  %v1176 = vshrl.u32 %v1175, 7
  %v1177 = vsub.s32 %v1174, %v1176
  %v1178 = vrot.slane %v1171, %v1177
  %v1179 = vcombine.low %v1051, %v1052
  %v1181 = vunpack.c.l.s4 1966171168
  %v1182 = vunpack.c.0.s8 %v1181
  %v1183 = vlaneseq
  %v1184 = vshrl.u32 %v1183, 7
  %v1185 = vsub.s32 %v1182, %v1184
  %v1186 = vrot.slane %v1179, %v1185
  %v1188 = vunpack.c.l.s4 1966171168
  %v1189 = vunpack.c.0.s8 %v1188
  %v1190 = vlaneseq
  %v1191 = vshrl.u32 %v1190, 7
  %v1192 = vsub.s32 %v1189, %v1191
  %v1193 = vrot.slane %v1053, %v1192
  %v1194 = vcombine.low %v1186, %v1193
  %v1196 = vunpack.c.l.s4 1966171168
  %v1197 = vunpack.c.0.s8 %v1196
  %v1198 = vlaneseq
  %v1199 = vshrl.u32 %v1198, 7
  %v1200 = vsub.s32 %v1197, %v1199
  %v1201 = vrot.slane %v1194, %v1200
  %v1202 = vcombine.low %v1054, %v1055
  %v1204 = vunpack.c.l.s4 1966171168
  %v1205 = vunpack.c.0.s8 %v1204
  %v1206 = vlaneseq
  %v1207 = vshrl.u32 %v1206, 7
  %v1208 = vsub.s32 %v1205, %v1207
  %v1209 = vrot.slane %v1202, %v1208
  %v1211 = vunpack.c.l.s4 1966171168
  %v1212 = vunpack.c.0.s8 %v1211
  %v1213 = vlaneseq
  %v1214 = vshrl.u32 %v1213, 7
  %v1215 = vsub.s32 %v1212, %v1214
  %v1216 = vrot.slane %v1056, %v1215
  %v1217 = vcombine.low %v1209, %v1216
  %v1219 = vunpack.c.l.s4 1966171168
  %v1220 = vunpack.c.0.s8 %v1219
  %v1221 = vlaneseq
  %v1222 = vshrl.u32 %v1221, 7
  %v1223 = vsub.s32 %v1220, %v1222
  %v1224 = vrot.slane %v1217, %v1223
  %v1225 = vcombine.low %v1057, %v1058
  %v1227 = vunpack.c.l.s4 1966171168
  %v1228 = vunpack.c.0.s8 %v1227
  %v1229 = vlaneseq
  %v1230 = vshrl.u32 %v1229, 7
  %v1231 = vsub.s32 %v1228, %v1230
  %v1232 = vrot.slane %v1225, %v1231
  %v1234 = vunpack.c.l.s4 1966171168
  %v1235 = vunpack.c.0.s8 %v1234
  %v1236 = vlaneseq
  %v1237 = vshrl.u32 %v1236, 7
  %v1238 = vsub.s32 %v1235, %v1237
  %v1239 = vrot.slane %v1059, %v1238
  %v1240 = vcombine.low %v1232, %v1239
  %v1242 = vunpack.c.l.s4 1966171168
  %v1243 = vunpack.c.0.s8 %v1242
  %v1244 = vlaneseq
  %v1245 = vshrl.u32 %v1244, 7
  %v1246 = vsub.s32 %v1243, %v1245
  %v1247 = vrot.slane %v1240, %v1246
  %v1248 = vcombine.low %v1060, %v1061
  %v1250 = vunpack.c.l.s4 1966171168
  %v1251 = vunpack.c.0.s8 %v1250
  %v1252 = vlaneseq
  %v1253 = vshrl.u32 %v1252, 7
  %v1254 = vsub.s32 %v1251, %v1253
  %v1255 = vrot.slane %v1248, %v1254
  %v1257 = vunpack.c.l.s4 1966171168
  %v1258 = vunpack.c.0.s8 %v1257
  %v1259 = vlaneseq
  %v1260 = vshrl.u32 %v1259, 7
  %v1261 = vsub.s32 %v1258, %v1260
  %v1262 = vrot.slane %v1062, %v1261
  %v1263 = vcombine.low %v1255, %v1262
  %v1265 = vunpack.c.l.s4 1966171168
  %v1266 = vunpack.c.0.s8 %v1265
  %v1267 = vlaneseq
  %v1268 = vshrl.u32 %v1267, 7
  %v1269 = vsub.s32 %v1266, %v1268
  %v1270 = vrot.slane %v1263, %v1269
  %v1279 = vsel %vm957, %v1109, 0.0
  %v1280 = vrot.slane %v1279, 4
  %v1281 = vadd.f32 %v1279, %v1280
  %v1282 = vrot.slane %v1281, 2
  %v1283 = vadd.f32 %v1281, %v1282
  %v1284 = vrot.slane %v1283, 1
  %v1285 = vadd.f32 %v1283, %v1284
  %v1286 = vsel %vm957, %v1132, 0.0
  %v1287 = vrot.slane %v1286, 4
  %v1288 = vadd.f32 %v1286, %v1287
  %v1289 = vrot.slane %v1288, 2
  %v1290 = vadd.f32 %v1288, %v1289
  %v1291 = vrot.slane %v1290, 1
  %v1292 = vadd.f32 %v1290, %v1291
  %v1293 = vsel %vm957, %v1155, 0.0
  %v1294 = vrot.slane %v1293, 4
  %v1295 = vadd.f32 %v1293, %v1294
  %v1296 = vrot.slane %v1295, 2
  %v1297 = vadd.f32 %v1295, %v1296
  %v1298 = vrot.slane %v1297, 1
  %v1299 = vadd.f32 %v1297, %v1298
  %v1300 = vsel %vm957, %v1178, 0.0
  %v1301 = vrot.slane %v1300, 4
  %v1302 = vadd.f32 %v1300, %v1301
  %v1303 = vrot.slane %v1302, 2
  %v1304 = vadd.f32 %v1302, %v1303
  %v1305 = vrot.slane %v1304, 1
  %v1306 = vadd.f32 %v1304, %v1305
  %v1307 = vsel %vm957, %v1201, 0.0
  %v1308 = vrot.slane %v1307, 4
  %v1309 = vadd.f32 %v1307, %v1308
  %v1310 = vrot.slane %v1309, 2
  %v1311 = vadd.f32 %v1309, %v1310
  %v1312 = vrot.slane %v1311, 1
  %v1313 = vadd.f32 %v1311, %v1312
  %v1314 = vsel %vm957, %v1224, 0.0
  %v1315 = vrot.slane %v1314, 4
  %v1316 = vadd.f32 %v1314, %v1315
  %v1317 = vrot.slane %v1316, 2
  %v1318 = vadd.f32 %v1316, %v1317
  %v1319 = vrot.slane %v1318, 1
  %v1320 = vadd.f32 %v1318, %v1319
  %v1321 = vsel %vm957, %v1247, 0.0
  %v1322 = vrot.slane %v1321, 4
  %v1323 = vadd.f32 %v1321, %v1322
  %v1324 = vrot.slane %v1323, 2
  %v1325 = vadd.f32 %v1323, %v1324
  %v1326 = vrot.slane %v1325, 1
  %v1327 = vadd.f32 %v1325, %v1326
  %v1328 = vsel %vm957, %v1270, 0.0
  %v1329 = vrot.slane %v1328, 4
  %v1330 = vadd.f32 %v1328, %v1329
  %v1331 = vrot.slane %v1330, 2
  %v1332 = vadd.f32 %v1330, %v1331
  %v1333 = vrot.slane %v1332, 1
  %v1334 = vadd.f32 %v1332, %v1333
  %v1343 = vsel %vm1022, %v1292, %v1285
  %v1344 = vsel %vm1024, %v1299, %v1343
  %v1345 = vsel %vm1026, %v1306, %v1344
  %v1346 = vsel %vm1028, %v1313, %v1345
  %v1347 = vsel %vm1030, %v1320, %v1346
  %v1348 = vsel %vm1032, %v1327, %v1347
  %v1349 = vsel %vm1034, %v1334, %v1348
  %1351 = vst.msk [vmem:[%s6] sm:$0xff] %vm1037, %v1349
  %v1352 = vpack.c.bf16 %v560, %v557
  %v1353 = vpack.c.bf16 %v565, %v565
  %v1356 = vunpack.c.l.b16 %v1352
  %v1357 = vunpack.c.h.b16 %v1352
  %v1358 = vunpack.c.l.b16 %v1353
  %v1359 = vpack.c.b16 %v1356, %v1356
  %v1360 = vpack.c.b16 %v1357, %v1357
  %v1361 = vpack.c.b16 %v1358, %v1358
  %vm1365 = vcmask 519168
  %1366 = vst.msk [vmem:[%s4] sm:$0xf] %vm1365, %v1359
  %1367 = vst.msk [vmem:[%s4 + $0x4] sm:$0xf] %vm1365, %v1360
  %1368 = vst.msk [vmem:[%s4 + $0x8] sm:$0xf] %vm1365, %v1361
  // Predicated region
  $region18: #{discriminator_forward.8} parent=0 // pred_check
    _
  $region19: #{discriminator_forward.8} parent=0 // pred_check_branch
    %1370 = sbr.rel (0) target = $region21
  $region20: #{discriminator_forward.8} parent=0 // pred_region
    _
  $region21: #{discriminator_forward.8} parent=0 // pred_fallthru
    _
  // Predicated region
  $region22: #{discriminator_forward.8} parent=0 // pred_check
    _
  $region23: #{discriminator_forward.8} parent=0 // pred_check_branch
    %1372 = sbr.rel (0) target = $region25
  $region24: #{discriminator_forward.8} parent=0 // pred_region
    _
  $region25: #{discriminator_forward.8} parent=0 // pred_fallthru
    _
  // Predicated region
  $region26: #{discriminator_forward.8} parent=0 // pred_check
    _
  $region27: #{discriminator_forward.8} parent=0 // pred_check_branch
    %1374 = sbr.rel (0) target = $region29
  $region28: #{discriminator_forward.8} parent=0 // pred_region
    _
  $region29: #{discriminator_forward.8} parent=0 // pred_fallthru
    _
  // Predicated region
  $region30: #{discriminator_forward.8} parent=0 // pred_check
    _
  $region31: #{discriminator_forward.8} parent=0 // pred_check_branch
    %1376 = sbr.rel (0) target = $region33
  $region32: #{discriminator_forward.8} parent=0 // pred_region
    _
  $region33: #{discriminator_forward.8} parent=0 // pred_fallthru
    _
  // Predicated region
  $region34: #{discriminator_forward.8} parent=0 // pred_check
    _
  $region35: #{discriminator_forward.8} parent=0 // pred_check_branch
    %1378 = sbr.rel (0) target = $region37
  $region36: #{discriminator_forward.8} parent=0 // pred_region
    _
  $region37: #{discriminator_forward.8} parent=0 // pred_fallthru
    _
  // Predicated region
  $region38: #{discriminator_forward.8} parent=0 // pred_check
    _
  $region39: #{discriminator_forward.8} parent=0 // pred_check_branch
    %1380 = sbr.rel (0) target = $region41
  $region40: #{discriminator_forward.8} parent=0 // pred_region
    _
  $region41: #{discriminator_forward.8} parent=0 // pred_fallthru
    _

// kernel: discriminator_forward.9
$region0: #{discriminator_forward.9}
  #allocation0 [shape = 'u32[]', space=smem, size = 0x4, offset = 0x4, fixed_abs, tag = 'smem constant byte address 0x4 - core index']
  #allocation1 [shape = 'u32[144,128]{1,0:T(1,128)}', space=vmem, size = 0x12000, scoped, tag = 'internal scratch']
  %s0 = inlined_call_operand.vmem [shape: bf16[8,1024], index: 0, kind: input, shape index: {}]
  %s1 = inlined_call_operand.vmem [shape: bf16[1024,128], index: 1, kind: input, shape index: {}]
  %s2 = inlined_call_operand.vmem [shape: f32[1,1024], index: 2, kind: input, shape index: {}]
  %s3 = inlined_call_operand.vmem [shape: f32[1,1024], index: 3, kind: input, shape index: {}]
  %s4 = inlined_call_operand.vmem [shape: f32[1,128], index: 4, kind: input, shape index: {}]
  %s5 = inlined_call_operand.vmem [shape: f32[8,128], index: 5, kind: output, shape index: {}]
  %s6 = sld [smem:[#allocation0]]
  $region30: #{discriminator_forward.9} parent=0
    _
  %s8 = ssub.s32 1, %s6
  %s9 = scalar_select 0, %s8, %s6
  // Predicated region
  $region2: #{discriminator_forward.9} parent=0 // pred_check
    _
  $region3: #{discriminator_forward.9} parent=0 // pred_check_branch
    %11 = sbr.rel (0) target = $region5
  $region4: #{discriminator_forward.9} parent=0 // pred_region
    _
  $region5: #{discriminator_forward.9} parent=0 // pred_fallthru
    _
  // Predicated region
  $region6: #{discriminator_forward.9} parent=0 // pred_check
    _
  $region7: #{discriminator_forward.9} parent=0 // pred_check_branch
    %13 = sbr.rel (0) target = $region9
  $region8: #{discriminator_forward.9} parent=0 // pred_region
    _
  $region9: #{discriminator_forward.9} parent=0 // pred_fallthru
    _
  // Predicated region
  $region10: #{discriminator_forward.9} parent=0 // pred_check
    _
  $region11: #{discriminator_forward.9} parent=0 // pred_check_branch
    %15 = sbr.rel (0) target = $region13
  $region12: #{discriminator_forward.9} parent=0 // pred_region
    _
  $region13: #{discriminator_forward.9} parent=0 // pred_fallthru
    _
  // Predicated region
  $region14: #{discriminator_forward.9} parent=0 // pred_check
    _
  $region15: #{discriminator_forward.9} parent=0 // pred_check_branch
    %17 = sbr.rel (0) target = $region17
  $region16: #{discriminator_forward.9} parent=0 // pred_region
    _
  $region17: #{discriminator_forward.9} parent=0 // pred_fallthru
    _
  // Predicated region
  $region18: #{discriminator_forward.9} parent=0 // pred_check
    _
  $region19: #{discriminator_forward.9} parent=0 // pred_check_branch
    %19 = sbr.rel (0) target = $region21
  $region20: #{discriminator_forward.9} parent=0 // pred_region
    _
  $region21: #{discriminator_forward.9} parent=0 // pred_fallthru
    _
  %v22 = vld [vmem:[%s0] sm:$0xff]
  %v23 = vld [vmem:[%s0 + $0x8] sm:$0xff]
  %v24 = vld [vmem:[%s0 + $0x10] sm:$0xff]
  %v25 = vld [vmem:[%s0 + $0x18] sm:$0xff]
  %v26 = vld [vmem:[%s2] sm:$0xff]
  %v28 = vlaneseq
  %v29 = vshrl.u32 %v28, 7
  %v30 = vsub.s32 0, %v29
  %v31 = vrot.slane %v26, %v30
  %v32 = vlaneseq
  %v33 = vshrl.u32 %v32, 7
  %v34 = vsub.s32 1, %v33
  %v35 = vrot.slane %v26, %v34
  %v36 = vlaneseq
  %v37 = vshrl.u32 %v36, 7
  %v38 = vsub.s32 2, %v37
  %v39 = vrot.slane %v26, %v38
  %v40 = vlaneseq
  %v41 = vshrl.u32 %v40, 7
  %v42 = vsub.s32 3, %v41
  %v43 = vrot.slane %v26, %v42
  %v44 = vlaneseq
  %v45 = vshrl.u32 %v44, 7
  %v46 = vsub.s32 4, %v45
  %v47 = vrot.slane %v26, %v46
  %v48 = vlaneseq
  %v49 = vshrl.u32 %v48, 7
  %v50 = vsub.s32 5, %v49
  %v51 = vrot.slane %v26, %v50
  %v52 = vlaneseq
  %v53 = vshrl.u32 %v52, 7
  %v54 = vsub.s32 6, %v53
  %v55 = vrot.slane %v26, %v54
  %v56 = vlaneseq
  %v57 = vshrl.u32 %v56, 7
  %v58 = vsub.s32 7, %v57
  %v59 = vrot.slane %v26, %v58
  %v68 = vpack.c.bf16 %v31, %v31
  %v69 = vpack.c.bf16 %v35, %v35
  %v70 = vpack.c.bf16 %v39, %v39
  %v71 = vpack.c.bf16 %v43, %v43
  %v72 = vpack.c.bf16 %v47, %v47
  %v73 = vpack.c.bf16 %v51, %v51
  %v74 = vpack.c.bf16 %v55, %v55
  %v75 = vpack.c.bf16 %v59, %v59
  %v77 = vpack.i.b16 %v68, %v68
  %v79 = vlaneseq
  %v80 = vshrl.u32 %v79, 7
  %v81 = vsub.s32 0, %v80
  %v82 = vrot.slane %v77, %v81
  %v84 = vpack.i.b16 %v69, %v69
  %v86 = vlaneseq
  %v87 = vshrl.u32 %v86, 7
  %v88 = vsub.s32 0, %v87
  %v89 = vrot.slane %v84, %v88
  %v91 = vpack.i.b16 %v70, %v70
  %v93 = vlaneseq
  %v94 = vshrl.u32 %v93, 7
  %v95 = vsub.s32 0, %v94
  %v96 = vrot.slane %v91, %v95
  %v98 = vpack.i.b16 %v71, %v71
  %v100 = vlaneseq
  %v101 = vshrl.u32 %v100, 7
  %v102 = vsub.s32 0, %v101
  %v103 = vrot.slane %v98, %v102
  %v105 = vpack.i.b16 %v72, %v72
  %v107 = vlaneseq
  %v108 = vshrl.u32 %v107, 7
  %v109 = vsub.s32 0, %v108
  %v110 = vrot.slane %v105, %v109
  %v112 = vpack.i.b16 %v73, %v73
  %v114 = vlaneseq
  %v115 = vshrl.u32 %v114, 7
  %v116 = vsub.s32 0, %v115
  %v117 = vrot.slane %v112, %v116
  %v119 = vpack.i.b16 %v74, %v74
  %v121 = vlaneseq
  %v122 = vshrl.u32 %v121, 7
  %v123 = vsub.s32 0, %v122
  %v124 = vrot.slane %v119, %v123
  %v126 = vpack.i.b16 %v75, %v75
  %v128 = vlaneseq
  %v129 = vshrl.u32 %v128, 7
  %v130 = vsub.s32 0, %v129
  %v131 = vrot.slane %v126, %v130
  %v140 = vunpack.c.l.b16 %v82
  %v141 = vunpack.c.l.b16 %v89
  %v142 = vunpack.c.l.b16 %v96
  %v143 = vunpack.c.l.b16 %v103
  %v144 = vunpack.c.l.b16 %v110
  %v145 = vunpack.c.l.b16 %v117
  %v146 = vunpack.c.l.b16 %v124
  %v147 = vunpack.c.l.b16 %v131
  %v148 = vpack.c.b16 %v141, %v140
  %v149 = vpack.c.b16 %v143, %v142
  %v150 = vpack.c.b16 %v145, %v144
  %v151 = vpack.c.b16 %v147, %v146
  %v156 = vmul.bf16 %v22, %v148
  %v157 = vmul.bf16 %v23, %v149
  %v158 = vmul.bf16 %v24, %v150
  %v159 = vmul.bf16 %v25, %v151
  %v160 = vld [vmem:[%s3] sm:$0xff]
  %v162 = vlaneseq
  %v163 = vshrl.u32 %v162, 7
  %v164 = vsub.s32 0, %v163
  %v165 = vrot.slane %v160, %v164
  %v166 = vlaneseq
  %v167 = vshrl.u32 %v166, 7
  %v168 = vsub.s32 1, %v167
  %v169 = vrot.slane %v160, %v168
  %v170 = vlaneseq
  %v171 = vshrl.u32 %v170, 7
  %v172 = vsub.s32 2, %v171
  %v173 = vrot.slane %v160, %v172
  %v174 = vlaneseq
  %v175 = vshrl.u32 %v174, 7
  %v176 = vsub.s32 3, %v175
  %v177 = vrot.slane %v160, %v176
  %v178 = vlaneseq
  %v179 = vshrl.u32 %v178, 7
  %v180 = vsub.s32 4, %v179
  %v181 = vrot.slane %v160, %v180
  %v182 = vlaneseq
  %v183 = vshrl.u32 %v182, 7
  %v184 = vsub.s32 5, %v183
  %v185 = vrot.slane %v160, %v184
  %v186 = vlaneseq
  %v187 = vshrl.u32 %v186, 7
  %v188 = vsub.s32 6, %v187
  %v189 = vrot.slane %v160, %v188
  %v190 = vlaneseq
  %v191 = vshrl.u32 %v190, 7
  %v192 = vsub.s32 7, %v191
  %v193 = vrot.slane %v160, %v192
  %v202 = vpack.c.bf16 %v165, %v165
  %v203 = vpack.c.bf16 %v169, %v169
  %v204 = vpack.c.bf16 %v173, %v173
  %v205 = vpack.c.bf16 %v177, %v177
  %v206 = vpack.c.bf16 %v181, %v181
  %v207 = vpack.c.bf16 %v185, %v185
  %v208 = vpack.c.bf16 %v189, %v189
  %v209 = vpack.c.bf16 %v193, %v193
  %v211 = vpack.i.b16 %v202, %v202
  %v213 = vlaneseq
  %v214 = vshrl.u32 %v213, 7
  %v215 = vsub.s32 0, %v214
  %v216 = vrot.slane %v211, %v215
  %v218 = vpack.i.b16 %v203, %v203
  %v220 = vlaneseq
  %v221 = vshrl.u32 %v220, 7
  %v222 = vsub.s32 0, %v221
  %v223 = vrot.slane %v218, %v222
  %v225 = vpack.i.b16 %v204, %v204
  %v227 = vlaneseq
  %v228 = vshrl.u32 %v227, 7
  %v229 = vsub.s32 0, %v228
  %v230 = vrot.slane %v225, %v229
  %v232 = vpack.i.b16 %v205, %v205
  %v234 = vlaneseq
  %v235 = vshrl.u32 %v234, 7
  %v236 = vsub.s32 0, %v235
  %v237 = vrot.slane %v232, %v236
  %v239 = vpack.i.b16 %v206, %v206
  %v241 = vlaneseq
  %v242 = vshrl.u32 %v241, 7
  %v243 = vsub.s32 0, %v242
  %v244 = vrot.slane %v239, %v243
  %v246 = vpack.i.b16 %v207, %v207
  %v248 = vlaneseq
  %v249 = vshrl.u32 %v248, 7
  %v250 = vsub.s32 0, %v249
  %v251 = vrot.slane %v246, %v250
  %v253 = vpack.i.b16 %v208, %v208
  %v255 = vlaneseq
  %v256 = vshrl.u32 %v255, 7
  %v257 = vsub.s32 0, %v256
  %v258 = vrot.slane %v253, %v257
  %v260 = vpack.i.b16 %v209, %v209
  %v262 = vlaneseq
  %v263 = vshrl.u32 %v262, 7
  %v264 = vsub.s32 0, %v263
  %v265 = vrot.slane %v260, %v264
  %v274 = vunpack.c.l.b16 %v216
  %v275 = vunpack.c.l.b16 %v223
  %v276 = vunpack.c.l.b16 %v230
  %v277 = vunpack.c.l.b16 %v237
  %v278 = vunpack.c.l.b16 %v244
  %v279 = vunpack.c.l.b16 %v251
  %v280 = vunpack.c.l.b16 %v258
  %v281 = vunpack.c.l.b16 %v265
  %v282 = vpack.c.b16 %v275, %v274
  %v283 = vpack.c.b16 %v277, %v276
  %v284 = vpack.c.b16 %v279, %v278
  %v285 = vpack.c.b16 %v281, %v280
  %v290 = vadd.bf16 %v156, %v282
  %v291 = vadd.bf16 %v157, %v283
  %v292 = vadd.bf16 %v158, %v284
  %v293 = vadd.bf16 %v159, %v285
  %v294 = vmul.bf16 %v290, 1045249613
  %v295 = vmul.bf16 %v291, 1045249613
  %v296 = vmul.bf16 %v292, 1045249613
  %v297 = vmul.bf16 %v293, 1045249613
  %v298 = vmax.bf16 %v290, %v294
  %v299 = vmax.bf16 %v291, %v295
  %v300 = vmax.bf16 %v292, %v296
  %v301 = vmax.bf16 %v293, %v297
  %v302 = vld [vmem:[%s1] sm:$0xf]
  %v303 = vld [vmem:[%s1 + $0x4] sm:$0xf]
  %v304 = vld [vmem:[%s1 + $0x8] sm:$0xf]
  %v305 = vld [vmem:[%s1 + $0xc] sm:$0xf]
  %v306 = vld [vmem:[%s1 + $0x10] sm:$0xf]
  %v307 = vld [vmem:[%s1 + $0x14] sm:$0xf]
  %v308 = vld [vmem:[%s1 + $0x18] sm:$0xf]
  %v309 = vld [vmem:[%s1 + $0x1c] sm:$0xf]
  %v310 = vld [vmem:[%s1 + $0x20] sm:$0xf]
  %v311 = vld [vmem:[%s1 + $0x24] sm:$0xf]
  %v312 = vld [vmem:[%s1 + $0x28] sm:$0xf]
  %v313 = vld [vmem:[%s1 + $0x2c] sm:$0xf]
  %v314 = vld [vmem:[%s1 + $0x30] sm:$0xf]
  %v315 = vld [vmem:[%s1 + $0x34] sm:$0xf]
  %v316 = vld [vmem:[%s1 + $0x38] sm:$0xf]
  %v317 = vld [vmem:[%s1 + $0x3c] sm:$0xf]
  %v318 = vld [vmem:[%s1 + $0x40] sm:$0xf]
  %v319 = vld [vmem:[%s1 + $0x44] sm:$0xf]
  %v320 = vld [vmem:[%s1 + $0x48] sm:$0xf]
  %v321 = vld [vmem:[%s1 + $0x4c] sm:$0xf]
  %v322 = vld [vmem:[%s1 + $0x50] sm:$0xf]
  %v323 = vld [vmem:[%s1 + $0x54] sm:$0xf]
  %v324 = vld [vmem:[%s1 + $0x58] sm:$0xf]
  %v325 = vld [vmem:[%s1 + $0x5c] sm:$0xf]
  %v326 = vld [vmem:[%s1 + $0x60] sm:$0xf]
  %v327 = vld [vmem:[%s1 + $0x64] sm:$0xf]
  %v328 = vld [vmem:[%s1 + $0x68] sm:$0xf]
  %v329 = vld [vmem:[%s1 + $0x6c] sm:$0xf]
  %v330 = vld [vmem:[%s1 + $0x70] sm:$0xf]
  %v331 = vld [vmem:[%s1 + $0x74] sm:$0xf]
  %v332 = vld [vmem:[%s1 + $0x78] sm:$0xf]
  %v333 = vld [vmem:[%s1 + $0x7c] sm:$0xf]
  %v334 = vld [vmem:[%s1 + $0x80] sm:$0xf]
  %v335 = vld [vmem:[%s1 + $0x84] sm:$0xf]
  %v336 = vld [vmem:[%s1 + $0x88] sm:$0xf]
  %v337 = vld [vmem:[%s1 + $0x8c] sm:$0xf]
  %v338 = vld [vmem:[%s1 + $0x90] sm:$0xf]
  %v339 = vld [vmem:[%s1 + $0x94] sm:$0xf]
  %v340 = vld [vmem:[%s1 + $0x98] sm:$0xf]
  %v341 = vld [vmem:[%s1 + $0x9c] sm:$0xf]
  %v342 = vld [vmem:[%s1 + $0xa0] sm:$0xf]
  %v343 = vld [vmem:[%s1 + $0xa4] sm:$0xf]
  %v344 = vld [vmem:[%s1 + $0xa8] sm:$0xf]
  %v345 = vld [vmem:[%s1 + $0xac] sm:$0xf]
  %v346 = vld [vmem:[%s1 + $0xb0] sm:$0xf]
  %v347 = vld [vmem:[%s1 + $0xb4] sm:$0xf]
  %v348 = vld [vmem:[%s1 + $0xb8] sm:$0xf]
  %v349 = vld [vmem:[%s1 + $0xbc] sm:$0xf]
  %v350 = vld [vmem:[%s1 + $0xc0] sm:$0xf]
  %v351 = vld [vmem:[%s1 + $0xc4] sm:$0xf]
  %v352 = vld [vmem:[%s1 + $0xc8] sm:$0xf]
  %v353 = vld [vmem:[%s1 + $0xcc] sm:$0xf]
  %v354 = vld [vmem:[%s1 + $0xd0] sm:$0xf]
  %v355 = vld [vmem:[%s1 + $0xd4] sm:$0xf]
  %v356 = vld [vmem:[%s1 + $0xd8] sm:$0xf]
  %v357 = vld [vmem:[%s1 + $0xdc] sm:$0xf]
  %v358 = vld [vmem:[%s1 + $0xe0] sm:$0xf]
  %v359 = vld [vmem:[%s1 + $0xe4] sm:$0xf]
  %v360 = vld [vmem:[%s1 + $0xe8] sm:$0xf]
  %v361 = vld [vmem:[%s1 + $0xec] sm:$0xf]
  %v362 = vld [vmem:[%s1 + $0xf0] sm:$0xf]
  %v363 = vld [vmem:[%s1 + $0xf4] sm:$0xf]
  %v364 = vld [vmem:[%s1 + $0xf8] sm:$0xf]
  %v365 = vld [vmem:[%s1 + $0xfc] sm:$0xf]
  %v366 = vld [vmem:[%s1 + $0x100] sm:$0xf]
  %v367 = vld [vmem:[%s1 + $0x104] sm:$0xf]
  %v368 = vld [vmem:[%s1 + $0x108] sm:$0xf]
  %v369 = vld [vmem:[%s1 + $0x10c] sm:$0xf]
  %v370 = vld [vmem:[%s1 + $0x110] sm:$0xf]
  %v371 = vld [vmem:[%s1 + $0x114] sm:$0xf]
  %v372 = vld [vmem:[%s1 + $0x118] sm:$0xf]
  %v373 = vld [vmem:[%s1 + $0x11c] sm:$0xf]
  %v374 = vld [vmem:[%s1 + $0x120] sm:$0xf]
  %v375 = vld [vmem:[%s1 + $0x124] sm:$0xf]
  %v376 = vld [vmem:[%s1 + $0x128] sm:$0xf]
  %v377 = vld [vmem:[%s1 + $0x12c] sm:$0xf]
  %v378 = vld [vmem:[%s1 + $0x130] sm:$0xf]
  %v379 = vld [vmem:[%s1 + $0x134] sm:$0xf]
  %v380 = vld [vmem:[%s1 + $0x138] sm:$0xf]
  %v381 = vld [vmem:[%s1 + $0x13c] sm:$0xf]
  %v382 = vld [vmem:[%s1 + $0x140] sm:$0xf]
  %v383 = vld [vmem:[%s1 + $0x144] sm:$0xf]
  %v384 = vld [vmem:[%s1 + $0x148] sm:$0xf]
  %v385 = vld [vmem:[%s1 + $0x14c] sm:$0xf]
  %v386 = vld [vmem:[%s1 + $0x150] sm:$0xf]
  %v387 = vld [vmem:[%s1 + $0x154] sm:$0xf]
  %v388 = vld [vmem:[%s1 + $0x158] sm:$0xf]
  %v389 = vld [vmem:[%s1 + $0x15c] sm:$0xf]
  %v390 = vld [vmem:[%s1 + $0x160] sm:$0xf]
  %v391 = vld [vmem:[%s1 + $0x164] sm:$0xf]
  %v392 = vld [vmem:[%s1 + $0x168] sm:$0xf]
  %v393 = vld [vmem:[%s1 + $0x16c] sm:$0xf]
  %v394 = vld [vmem:[%s1 + $0x170] sm:$0xf]
  %v395 = vld [vmem:[%s1 + $0x174] sm:$0xf]
  %v396 = vld [vmem:[%s1 + $0x178] sm:$0xf]
  %v397 = vld [vmem:[%s1 + $0x17c] sm:$0xf]
  %v398 = vld [vmem:[%s1 + $0x180] sm:$0xf]
  %v399 = vld [vmem:[%s1 + $0x184] sm:$0xf]
  %v400 = vld [vmem:[%s1 + $0x188] sm:$0xf]
  %v401 = vld [vmem:[%s1 + $0x18c] sm:$0xf]
  %v402 = vld [vmem:[%s1 + $0x190] sm:$0xf]
  %v403 = vld [vmem:[%s1 + $0x194] sm:$0xf]
  %v404 = vld [vmem:[%s1 + $0x198] sm:$0xf]
  %v405 = vld [vmem:[%s1 + $0x19c] sm:$0xf]
  %v406 = vld [vmem:[%s1 + $0x1a0] sm:$0xf]
  %v407 = vld [vmem:[%s1 + $0x1a4] sm:$0xf]
  %v408 = vld [vmem:[%s1 + $0x1a8] sm:$0xf]
  %v409 = vld [vmem:[%s1 + $0x1ac] sm:$0xf]
  %v410 = vld [vmem:[%s1 + $0x1b0] sm:$0xf]
  %v411 = vld [vmem:[%s1 + $0x1b4] sm:$0xf]
  %v412 = vld [vmem:[%s1 + $0x1b8] sm:$0xf]
  %v413 = vld [vmem:[%s1 + $0x1bc] sm:$0xf]
  %v414 = vld [vmem:[%s1 + $0x1c0] sm:$0xf]
  %v415 = vld [vmem:[%s1 + $0x1c4] sm:$0xf]
  %v416 = vld [vmem:[%s1 + $0x1c8] sm:$0xf]
  %v417 = vld [vmem:[%s1 + $0x1cc] sm:$0xf]
  %v418 = vld [vmem:[%s1 + $0x1d0] sm:$0xf]
  %v419 = vld [vmem:[%s1 + $0x1d4] sm:$0xf]
  %v420 = vld [vmem:[%s1 + $0x1d8] sm:$0xf]
  %v421 = vld [vmem:[%s1 + $0x1dc] sm:$0xf]
  %v422 = vld [vmem:[%s1 + $0x1e0] sm:$0xf]
  %v423 = vld [vmem:[%s1 + $0x1e4] sm:$0xf]
  %v424 = vld [vmem:[%s1 + $0x1e8] sm:$0xf]
  %v425 = vld [vmem:[%s1 + $0x1ec] sm:$0xf]
  %v426 = vld [vmem:[%s1 + $0x1f0] sm:$0xf]
  %v427 = vld [vmem:[%s1 + $0x1f4] sm:$0xf]
  %v428 = vld [vmem:[%s1 + $0x1f8] sm:$0xf]
  %v429 = vld [vmem:[%s1 + $0x1fc] sm:$0xf]
  %v430 = vld [vmem:[%s4] sm:$0x1]
  %v432 = vlaneseq
  %v433 = vshrl.u32 %v432, 7
  %v434 = vsub.s32 0, %v433
  %v435 = vrot.slane %v430, %v434
  %v441 = vunpack.c.l.b16 %v298
  %v442 = vunpack.c.h.b16 %v298
  %v443 = vunpack.c.l.b16 %v299
  %v444 = vunpack.c.h.b16 %v299
  %v445 = vunpack.c.l.b16 %v300
  %v446 = vunpack.c.h.b16 %v300
  %v447 = vunpack.c.l.b16 %v301
  %v448 = vunpack.c.h.b16 %v301
  %v449 = vpack.c.b16 %v441, %v441
  %v450 = vpack.c.b16 %v442, %v442
  %v451 = vpack.c.b16 %v443, %v443
  %v452 = vpack.c.b16 %v444, %v444
  %v453 = vpack.c.b16 %v445, %v445
  %v454 = vpack.c.b16 %v446, %v446
  %v455 = vpack.c.b16 %v447, %v447
  %v456 = vpack.c.b16 %v448, %v448
  %v593 = vunpack.c.l.b16 %v302
  %v594 = vunpack.c.l.b16 %v303
  %v595 = vunpack.c.l.b16 %v304
  %v596 = vunpack.c.l.b16 %v305
  %v597 = vunpack.c.l.b16 %v306
  %v598 = vunpack.c.l.b16 %v307
  %v599 = vunpack.c.l.b16 %v308
  %v600 = vunpack.c.l.b16 %v309
  %v601 = vunpack.c.l.b16 %v310
  %v602 = vunpack.c.l.b16 %v311
  %v603 = vunpack.c.l.b16 %v312
  %v604 = vunpack.c.l.b16 %v313
  %v605 = vunpack.c.l.b16 %v314
  %v606 = vunpack.c.l.b16 %v315
  %v607 = vunpack.c.l.b16 %v316
  %v608 = vunpack.c.l.b16 %v317
  %v609 = vunpack.c.l.b16 %v318
  %v610 = vunpack.c.l.b16 %v319
  %v611 = vunpack.c.l.b16 %v320
  %v612 = vunpack.c.l.b16 %v321
  %v613 = vunpack.c.l.b16 %v322
  %v614 = vunpack.c.l.b16 %v323
  %v615 = vunpack.c.l.b16 %v324
  %v616 = vunpack.c.l.b16 %v325
  %v617 = vunpack.c.l.b16 %v326
  %v618 = vunpack.c.l.b16 %v327
  %v619 = vunpack.c.l.b16 %v328
  %v620 = vunpack.c.l.b16 %v329
  %v621 = vunpack.c.l.b16 %v330
  %v622 = vunpack.c.l.b16 %v331
  %v623 = vunpack.c.l.b16 %v332
  %v624 = vunpack.c.l.b16 %v333
  %v625 = vunpack.c.l.b16 %v334
  %v626 = vunpack.c.l.b16 %v335
  %v627 = vunpack.c.l.b16 %v336
  %v628 = vunpack.c.l.b16 %v337
  %v629 = vunpack.c.l.b16 %v338
  %v630 = vunpack.c.l.b16 %v339
  %v631 = vunpack.c.l.b16 %v340
  %v632 = vunpack.c.l.b16 %v341
  %v633 = vunpack.c.l.b16 %v342
  %v634 = vunpack.c.l.b16 %v343
  %v635 = vunpack.c.l.b16 %v344
  %v636 = vunpack.c.l.b16 %v345
  %v637 = vunpack.c.l.b16 %v346
  %v638 = vunpack.c.l.b16 %v347
  %v639 = vunpack.c.l.b16 %v348
  %v640 = vunpack.c.l.b16 %v349
  %v641 = vunpack.c.l.b16 %v350
  %v642 = vunpack.c.l.b16 %v351
  %v643 = vunpack.c.l.b16 %v352
  %v644 = vunpack.c.l.b16 %v353
  %v645 = vunpack.c.l.b16 %v354
  %v646 = vunpack.c.l.b16 %v355
  %v647 = vunpack.c.l.b16 %v356
  %v648 = vunpack.c.l.b16 %v357
  %v649 = vunpack.c.l.b16 %v358
  %v650 = vunpack.c.l.b16 %v359
  %v651 = vunpack.c.l.b16 %v360
  %v652 = vunpack.c.l.b16 %v361
  %v653 = vunpack.c.l.b16 %v362
  %v654 = vunpack.c.l.b16 %v363
  %v655 = vunpack.c.l.b16 %v364
  %v656 = vunpack.c.l.b16 %v365
  %v657 = vunpack.c.l.b16 %v366
  %v658 = vunpack.c.l.b16 %v367
  %v659 = vunpack.c.l.b16 %v368
  %v660 = vunpack.c.l.b16 %v369
  %v661 = vunpack.c.l.b16 %v370
  %v662 = vunpack.c.l.b16 %v371
  %v663 = vunpack.c.l.b16 %v372
  %v664 = vunpack.c.l.b16 %v373
  %v665 = vunpack.c.l.b16 %v374
  %v666 = vunpack.c.l.b16 %v375
  %v667 = vunpack.c.l.b16 %v376
  %v668 = vunpack.c.l.b16 %v377
  %v669 = vunpack.c.l.b16 %v378
  %v670 = vunpack.c.l.b16 %v379
  %v671 = vunpack.c.l.b16 %v380
  %v672 = vunpack.c.l.b16 %v381
  %v673 = vunpack.c.l.b16 %v382
  %v674 = vunpack.c.l.b16 %v383
  %v675 = vunpack.c.l.b16 %v384
  %v676 = vunpack.c.l.b16 %v385
  %v677 = vunpack.c.l.b16 %v386
  %v678 = vunpack.c.l.b16 %v387
  %v679 = vunpack.c.l.b16 %v388
  %v680 = vunpack.c.l.b16 %v389
  %v681 = vunpack.c.l.b16 %v390
  %v682 = vunpack.c.l.b16 %v391
  %v683 = vunpack.c.l.b16 %v392
  %v684 = vunpack.c.l.b16 %v393
  %v685 = vunpack.c.l.b16 %v394
  %v686 = vunpack.c.l.b16 %v395
  %v687 = vunpack.c.l.b16 %v396
  %v688 = vunpack.c.l.b16 %v397
  %v689 = vunpack.c.l.b16 %v398
  %v690 = vunpack.c.l.b16 %v399
  %v691 = vunpack.c.l.b16 %v400
  %v692 = vunpack.c.l.b16 %v401
  %v693 = vunpack.c.l.b16 %v402
  %v694 = vunpack.c.l.b16 %v403
  %v695 = vunpack.c.l.b16 %v404
  %v696 = vunpack.c.l.b16 %v405
  %v697 = vunpack.c.l.b16 %v406
  %v698 = vunpack.c.l.b16 %v407
  %v699 = vunpack.c.l.b16 %v408
  %v700 = vunpack.c.l.b16 %v409
  %v701 = vunpack.c.l.b16 %v410
  %v702 = vunpack.c.l.b16 %v411
  %v703 = vunpack.c.l.b16 %v412
  %v704 = vunpack.c.l.b16 %v413
  %v705 = vunpack.c.l.b16 %v414
  %v706 = vunpack.c.l.b16 %v415
  %v707 = vunpack.c.l.b16 %v416
  %v708 = vunpack.c.l.b16 %v417
  %v709 = vunpack.c.l.b16 %v418
  %v710 = vunpack.c.l.b16 %v419
  %v711 = vunpack.c.l.b16 %v420
  %v712 = vunpack.c.l.b16 %v421
  %v713 = vunpack.c.l.b16 %v422
  %v714 = vunpack.c.l.b16 %v423
  %v715 = vunpack.c.l.b16 %v424
  %v716 = vunpack.c.l.b16 %v425
  %v717 = vunpack.c.l.b16 %v426
  %v718 = vunpack.c.l.b16 %v427
  %v719 = vunpack.c.l.b16 %v428
  %v720 = vunpack.c.l.b16 %v429
  %v721 = vpack.c.b16 %v594, %v593
  %v722 = vpack.c.b16 %v596, %v595
  %v723 = vpack.c.b16 %v598, %v597
  %v724 = vpack.c.b16 %v600, %v599
  %v725 = vpack.c.b16 %v602, %v601
  %v726 = vpack.c.b16 %v604, %v603
  %v727 = vpack.c.b16 %v606, %v605
  %v728 = vpack.c.b16 %v608, %v607
  %v729 = vpack.c.b16 %v610, %v609
  %v730 = vpack.c.b16 %v612, %v611
  %v731 = vpack.c.b16 %v614, %v613
  %v732 = vpack.c.b16 %v616, %v615
  %v733 = vpack.c.b16 %v618, %v617
  %v734 = vpack.c.b16 %v620, %v619
  %v735 = vpack.c.b16 %v622, %v621
  %v736 = vpack.c.b16 %v624, %v623
  %v737 = vpack.c.b16 %v626, %v625
  %v738 = vpack.c.b16 %v628, %v627
  %v739 = vpack.c.b16 %v630, %v629
  %v740 = vpack.c.b16 %v632, %v631
  %v741 = vpack.c.b16 %v634, %v633
  %v742 = vpack.c.b16 %v636, %v635
  %v743 = vpack.c.b16 %v638, %v637
  %v744 = vpack.c.b16 %v640, %v639
  %v745 = vpack.c.b16 %v642, %v641
  %v746 = vpack.c.b16 %v644, %v643
  %v747 = vpack.c.b16 %v646, %v645
  %v748 = vpack.c.b16 %v648, %v647
  %v749 = vpack.c.b16 %v650, %v649
  %v750 = vpack.c.b16 %v652, %v651
  %v751 = vpack.c.b16 %v654, %v653
  %v752 = vpack.c.b16 %v656, %v655
  %v753 = vpack.c.b16 %v658, %v657
  %v754 = vpack.c.b16 %v660, %v659
  %v755 = vpack.c.b16 %v662, %v661
  %v756 = vpack.c.b16 %v664, %v663
  %v757 = vpack.c.b16 %v666, %v665
  %v758 = vpack.c.b16 %v668, %v667
  %v759 = vpack.c.b16 %v670, %v669
  %v760 = vpack.c.b16 %v672, %v671
  %v761 = vpack.c.b16 %v674, %v673
  %v762 = vpack.c.b16 %v676, %v675
  %v763 = vpack.c.b16 %v678, %v677
  %v764 = vpack.c.b16 %v680, %v679
  %v765 = vpack.c.b16 %v682, %v681
  %v766 = vpack.c.b16 %v684, %v683
  %v767 = vpack.c.b16 %v686, %v685
  %v768 = vpack.c.b16 %v688, %v687
  %v769 = vpack.c.b16 %v690, %v689
  %v770 = vpack.c.b16 %v692, %v691
  %v771 = vpack.c.b16 %v694, %v693
  %v772 = vpack.c.b16 %v696, %v695
  %v773 = vpack.c.b16 %v698, %v697
  %v774 = vpack.c.b16 %v700, %v699
  %v775 = vpack.c.b16 %v702, %v701
  %v776 = vpack.c.b16 %v704, %v703
  %v777 = vpack.c.b16 %v706, %v705
  %v778 = vpack.c.b16 %v708, %v707
  %v779 = vpack.c.b16 %v710, %v709
  %v780 = vpack.c.b16 %v712, %v711
  %v781 = vpack.c.b16 %v714, %v713
  %v782 = vpack.c.b16 %v716, %v715
  %v783 = vpack.c.b16 %v718, %v717
  %v784 = vpack.c.b16 %v720, %v719
  %849 = vmatprep.subr.bf16.mxu0 0
  %850 = vmatpush1.bf16.msra.mxu0 %v728
  %851 = vmatprep.subr.bf16.mxu0 0
  %852 = vmatpush1.bf16.msra.mxu0 %v727
  %853 = vmatprep.subr.bf16.mxu0 0
  %854 = vmatpush1.bf16.msra.mxu0 %v726
  %855 = vmatprep.subr.bf16.mxu0 0
  %856 = vmatpush1.bf16.msra.mxu0 %v725
  %857 = vmatprep.subr.bf16.mxu0 0
  %858 = vmatpush1.bf16.msra.mxu0 %v724
  %859 = vmatprep.subr.bf16.mxu0 0
  %860 = vmatpush1.bf16.msra.mxu0 %v723
  %861 = vmatprep.subr.bf16.mxu0 0
  %862 = vmatpush1.bf16.msra.mxu0 %v722
  %863 = vmatprep.subr.bf16.mxu0 0
  %864 = vmatpush1.bf16.msra.mxu0 %v721
  %865 = vmatprep.subr.bf16.mxu0 0
  %866 = vmatpush2.bf16.msra.mxu0 %v736
  %867 = vmatprep.subr.bf16.mxu0 0
  %868 = vmatpush2.bf16.msra.mxu0 %v735
  %869 = vmatprep.subr.bf16.mxu0 0
  %870 = vmatpush2.bf16.msra.mxu0 %v734
  %871 = vmatprep.subr.bf16.mxu0 0
  %872 = vmatpush2.bf16.msra.mxu0 %v733
  %873 = vmatprep.subr.bf16.mxu0 0
  %874 = vmatpush2.bf16.msra.mxu0 %v732
  %875 = vmatprep.subr.bf16.mxu0 0
  %876 = vmatpush2.bf16.msra.mxu0 %v731
  %877 = vmatprep.subr.bf16.mxu0 0
  %878 = vmatpush2.bf16.msra.mxu0 %v730
  %879 = vmatprep.subr.bf16.mxu0 0
  %880 = vmatpush2.bf16.msra.mxu0 %v729
  %881 = vmatprep.mubr.bf16.mxu0 %v450
  %882 = vmatmul.mubr.bf16.gmra.mxu0 %v449
  %v883 = vpop.f32.mrf.mxu0
  %v884 = vadd.f32 %v435, %v883
  %v885 = vpop.f32.mrf.mxu0
  %v886 = vpop.f32.mrf.mxu0
  %v887 = vpop.f32.mrf.mxu0
  %888 = vdwg.mxu0
  %889 = vmatprep.subr.bf16.mxu0 0
  %890 = vmatpush1.bf16.msra.mxu0 %v744
  %891 = vmatprep.subr.bf16.mxu0 0
  %892 = vmatpush1.bf16.msra.mxu0 %v743
  %893 = vmatprep.subr.bf16.mxu0 0
  %894 = vmatpush1.bf16.msra.mxu0 %v742
  %895 = vmatprep.subr.bf16.mxu0 0
  %896 = vmatpush1.bf16.msra.mxu0 %v741
  %897 = vmatprep.subr.bf16.mxu0 0
  %898 = vmatpush1.bf16.msra.mxu0 %v740
  %899 = vmatprep.subr.bf16.mxu0 0
  %900 = vmatpush1.bf16.msra.mxu0 %v739
  %901 = vmatprep.subr.bf16.mxu0 0
  %902 = vmatpush1.bf16.msra.mxu0 %v738
  %903 = vmatprep.subr.bf16.mxu0 0
  %904 = vmatpush1.bf16.msra.mxu0 %v737
  %905 = vmatprep.subr.bf16.mxu0 0
  %906 = vmatpush2.bf16.msra.mxu0 %v752
  %907 = vmatprep.subr.bf16.mxu0 0
  %908 = vmatpush2.bf16.msra.mxu0 %v751
  %909 = vmatprep.subr.bf16.mxu0 0
  %910 = vmatpush2.bf16.msra.mxu0 %v750
  %911 = vmatprep.subr.bf16.mxu0 0
  %912 = vmatpush2.bf16.msra.mxu0 %v749
  %913 = vmatprep.subr.bf16.mxu0 0
  %914 = vmatpush2.bf16.msra.mxu0 %v748
  %915 = vmatprep.subr.bf16.mxu0 0
  %916 = vmatpush2.bf16.msra.mxu0 %v747
  %917 = vmatprep.subr.bf16.mxu0 0
  %918 = vmatpush2.bf16.msra.mxu0 %v746
  %919 = vmatprep.subr.bf16.mxu0 0
  %920 = vmatpush2.bf16.msra.mxu0 %v745
  %921 = vmatprep.mubr.bf16.mxu0 %v452
  %922 = vmatmul.mubr.bf16.gmra.mxu0 %v451
  %v923 = vpop.f32.mrf.mxu0
  %v924 = vadd.f32 %v884, %v923
  %v925 = vpop.f32.mrf.mxu0
  %v926 = vpop.f32.mrf.mxu0
  %v927 = vpop.f32.mrf.mxu0
  %928 = vdwg.mxu0
  %929 = vmatprep.subr.bf16.mxu0 0
  %930 = vmatpush1.bf16.msra.mxu0 %v760
  %931 = vmatprep.subr.bf16.mxu0 0
  %932 = vmatpush1.bf16.msra.mxu0 %v759
  %933 = vmatprep.subr.bf16.mxu0 0
  %934 = vmatpush1.bf16.msra.mxu0 %v758
  %935 = vmatprep.subr.bf16.mxu0 0
  %936 = vmatpush1.bf16.msra.mxu0 %v757
  %937 = vmatprep.subr.bf16.mxu0 0
  %938 = vmatpush1.bf16.msra.mxu0 %v756
  %939 = vmatprep.subr.bf16.mxu0 0
  %940 = vmatpush1.bf16.msra.mxu0 %v755
  %941 = vmatprep.subr.bf16.mxu0 0
  %942 = vmatpush1.bf16.msra.mxu0 %v754
  %943 = vmatprep.subr.bf16.mxu0 0
  %944 = vmatpush1.bf16.msra.mxu0 %v753
  %945 = vmatprep.subr.bf16.mxu0 0
  %946 = vmatpush2.bf16.msra.mxu0 %v768
  %947 = vmatprep.subr.bf16.mxu0 0
  %948 = vmatpush2.bf16.msra.mxu0 %v767
  %949 = vmatprep.subr.bf16.mxu0 0
  %950 = vmatpush2.bf16.msra.mxu0 %v766
  %951 = vmatprep.subr.bf16.mxu0 0
  %952 = vmatpush2.bf16.msra.mxu0 %v765
  %953 = vmatprep.subr.bf16.mxu0 0
  %954 = vmatpush2.bf16.msra.mxu0 %v764
  %955 = vmatprep.subr.bf16.mxu0 0
  %956 = vmatpush2.bf16.msra.mxu0 %v763
  %957 = vmatprep.subr.bf16.mxu0 0
  %958 = vmatpush2.bf16.msra.mxu0 %v762
  %959 = vmatprep.subr.bf16.mxu0 0
  %960 = vmatpush2.bf16.msra.mxu0 %v761
  %961 = vmatprep.mubr.bf16.mxu0 %v454
  %962 = vmatmul.mubr.bf16.gmra.mxu0 %v453
  %v963 = vpop.f32.mrf.mxu0
  %v964 = vadd.f32 %v924, %v963
  %v965 = vpop.f32.mrf.mxu0
  %v966 = vpop.f32.mrf.mxu0
  %v967 = vpop.f32.mrf.mxu0
  %968 = vdwg.mxu0
  %969 = vmatprep.subr.bf16.mxu0 0
  %970 = vmatpush1.bf16.msra.mxu0 %v776
  %971 = vmatprep.subr.bf16.mxu0 0
  %972 = vmatpush1.bf16.msra.mxu0 %v775
  %973 = vmatprep.subr.bf16.mxu0 0
  %974 = vmatpush1.bf16.msra.mxu0 %v774
  %975 = vmatprep.subr.bf16.mxu0 0
  %976 = vmatpush1.bf16.msra.mxu0 %v773
  %977 = vmatprep.subr.bf16.mxu0 0
  %978 = vmatpush1.bf16.msra.mxu0 %v772
  %979 = vmatprep.subr.bf16.mxu0 0
  %980 = vmatpush1.bf16.msra.mxu0 %v771
  %981 = vmatprep.subr.bf16.mxu0 0
  %982 = vmatpush1.bf16.msra.mxu0 %v770
  %983 = vmatprep.subr.bf16.mxu0 0
  %984 = vmatpush1.bf16.msra.mxu0 %v769
  %985 = vmatprep.subr.bf16.mxu0 0
  %986 = vmatpush2.bf16.msra.mxu0 %v784
  %987 = vmatprep.subr.bf16.mxu0 0
  %988 = vmatpush2.bf16.msra.mxu0 %v783
  %989 = vmatprep.subr.bf16.mxu0 0
  %990 = vmatpush2.bf16.msra.mxu0 %v782
  %991 = vmatprep.subr.bf16.mxu0 0
  %992 = vmatpush2.bf16.msra.mxu0 %v781
  %993 = vmatprep.subr.bf16.mxu0 0
  %994 = vmatpush2.bf16.msra.mxu0 %v780
  %995 = vmatprep.subr.bf16.mxu0 0
  %996 = vmatpush2.bf16.msra.mxu0 %v779
  %997 = vmatprep.subr.bf16.mxu0 0
  %998 = vmatpush2.bf16.msra.mxu0 %v778
  %999 = vmatprep.subr.bf16.mxu0 0
  %1000 = vmatpush2.bf16.msra.mxu0 %v777
  %1001 = vmatprep.mubr.bf16.mxu0 %v456
  %1002 = vmatmul.mubr.bf16.gmra.mxu0 %v455
  %v1003 = vpop.f32.mrf.mxu0
  %v1004 = vadd.f32 %v964, %v1003
  %v1005 = vpop.f32.mrf.mxu0
  %v1006 = vpop.f32.mrf.mxu0
  %v1007 = vpop.f32.mrf.mxu0
  %1008 = vdwg.mxu0
  %1009 = vst [vmem:[%s5] sm:$0xff] %v1004
  // Predicated region
  $region22: #{discriminator_forward.9} parent=0 // pred_check
    _
  $region23: #{discriminator_forward.9} parent=0 // pred_check_branch
    %1011 = sbr.rel (0) target = $region25
  $region24: #{discriminator_forward.9} parent=0 // pred_region
    _
  $region25: #{discriminator_forward.9} parent=0 // pred_fallthru
    _
  // Predicated region
  $region26: #{discriminator_forward.9} parent=0 // pred_check
    _
  $region27: #{discriminator_forward.9} parent=0 // pred_check_branch
    %1013 = sbr.rel (0) target = $region29
  $region28: #{discriminator_forward.9} parent=0 // pred_region
    _
  $region29: #{discriminator_forward.9} parent=0 // pred_fallthru
    _

</llo_original>
